<compile_context>
chip_gen: v7x
topology: tpu7x:2x2x1
jax: 0.10.0
libtpu: 0.0.40
codegen_flags: <defaults>
</compile_context>

<pallas_src>
import functools

import numpy as np
import jax
import jax.numpy as jnp
from jax.experimental import pallas as pl
from jax.experimental.pallas import tpu as pltpu


# ------------------------------------------------------------------ glue: small matrices
def _box_matrix(n, r):
    """Band matrix B with B[i,k] = 1/(2r+1) for |i-k|<=r (zero-padded 1-D box)."""
    i = np.arange(n)
    m = (np.abs(i[:, None] - i[None, :]) <= r).astype(np.float32) / float(2 * r + 1)
    return jnp.asarray(m)


def _bilinear_coords(out_size, in_size):
    """PyTorch F.interpolate(bilinear, align_corners=False) source indices/weights."""
    scale = in_size / out_size
    dst = np.arange(out_size, dtype=np.float64)
    src = np.maximum((dst + 0.5) * scale - 0.5, 0.0)
    i0 = np.clip(np.floor(src).astype(np.int64), 0, in_size - 1)
    lam = (src - np.floor(src)).astype(np.float32)
    i1 = np.minimum(i0 + 1, in_size - 1)
    return i0, i1, lam


def _bilinear_matrix(out_size, in_size):
    """Dense (out,in) interpolation matrix: row i has (1-lam) at i0, lam at i1."""
    i0, i1, lam = _bilinear_coords(out_size, in_size)
    m = np.zeros((out_size, in_size), np.float32)
    rows = np.arange(out_size)
    np.add.at(m, (rows, i0), 1.0 - lam)
    np.add.at(m, (rows, i1), lam)
    return jnp.asarray(m)


def _vmem_limit_bytes():
    """Scoped-VMEM limit with headroom (64 MiB physical on v7x, 128 MiB on v5e/v6e)."""
    try:
        cap = int(pltpu.get_tpu_info().vmem_capacity_bytes)
    except Exception:
        cap = 64 * 1024 * 1024          # conservative (v7x-sized) fallback
    return max(32 * 1024 * 1024, min(cap - 16 * 1024 * 1024, 96 * 1024 * 1024))


def _pick_row_tile(H, W, vmem_limit):
    """High-res row tile from a VMEM budget: <=256 rows, multiple of 16, cdiv grid."""
    if H <= 256:
        return H
    # double-buffered fine(3ch) + out(4ch) f32 tiles plus ~5 (th, W) f32 temps
    bytes_per_row = (3 + 4) * W * 4 * 2 + 5 * W * 4
    th = (vmem_limit // 2) // max(bytes_per_row, 1)
    th = max(16, min(256, th))
    th = (th // 16) * 16
    return min(th, H)


# ------------------------------------------------------------------ Pallas kernel
def _refiner_kernel(base_src_ref, base_fgr_ref, base_pha_ref, fine_ref,
                    bh_ref, bw_ref, ph_ref, pwt_ref, out_ref,
                    a_scr, b_scr, *, eps):
    # ---- once per batch plane (row-tile 0): low-res guided filter -> A,b scratch
    @pl.when(pl.program_id(1) == 0)
    def _():
        bh = bh_ref[...]                      # (h, h) band matrix
        bw = bw_ref[...]                      # (w, w) band matrix

        def box(z):                           # zero-padded separable box == Bh @ z @ Bw
            t = jnp.dot(bh, z, preferred_element_type=jnp.float32)
            return jnp.dot(t, bw, preferred_element_type=jnp.float32)

        s0, s1, s2 = base_src_ref[0], base_src_ref[1], base_src_ref[2]
        xs = (s0, s1, s2, (s0 + s1 + s2) * (1.0 / 3.0))            # lr_x channels
        ys = (base_fgr_ref[0], base_fgr_ref[1], base_fgr_ref[2],
              base_pha_ref[0])                                     # lr_y channels
        for c in range(4):                    # statistics stay in f32
            x, y = xs[c], ys[c]
            mean_x = box(x)
            mean_y = box(y)
            cov_xy = box(x * y) - mean_x * mean_y
            var_x = box(x * x) - mean_x * mean_x
            A = cov_xy * pl.reciprocal(var_x + eps, approx=True)
            a_scr[c] = A
            b_scr[c] = mean_y - A * mean_x

    # ---- every row tile: bilinear upsample of A,b on the MXU + fused epilogue
    ph = ph_ref[...]                          # (th, h) bf16 row-interp tile
    pwt = pwt_ref[...]                        # (w, W)  bf16 col-interp (pre-transposed)
    f0, f1, f2 = fine_ref[0], fine_ref[1], fine_ref[2]
    hr = (f0, f1, f2, (f0 + f1 + f2) * (1.0 / 3.0))                # hr_x channels
    # TODO(synk): replace the dense column-interp matmul with a 2-tap
    # pltpu.roll-based blend to relieve the MXU on v5e.
    for c in range(4):
        a_row = jnp.dot(ph, a_scr[c].astype(jnp.bfloat16),
                        preferred_element_type=jnp.float32)
        b_row = jnp.dot(ph, b_scr[c].astype(jnp.bfloat16),
                        preferred_element_type=jnp.float32)
        a_hr = jnp.dot(a_row.astype(jnp.bfloat16), pwt,
                       preferred_element_type=jnp.float32)
        b_hr = jnp.dot(b_row.astype(jnp.bfloat16), pwt,
                       preferred_element_type=jnp.float32)
        out_ref[c] = (a_hr * hr[c] + b_hr).astype(out_ref.dtype)


def _guided_filter_refine(base_src, base_fgr, base_pha, fine_src, *, r, eps):
    """Fused guided-filter refiner: returns (B, 4, H, W) = A_up*hr_x + b_up."""
    B, _, h, w = base_src.shape
    _, _, H, W = fine_src.shape

    bh = _box_matrix(h, r)                               # (h, h) f32
    bw = _box_matrix(w, r)                               # (w, w) f32
    ph = _bilinear_matrix(H, h).astype(jnp.bfloat16)     # (H, h)
    pwt = _bilinear_matrix(W, w).T.astype(jnp.bfloat16)  # (w, W)

    vmem_limit = _vmem_limit_bytes()
    th = _pick_row_tile(H, W, vmem_limit)
    n_row_tiles = pl.cdiv(H, th)

    kernel = functools.partial(_refiner_kernel, eps=eps)
    return pl.pallas_call(
        kernel,
        out_shape=jax.ShapeDtypeStruct((B, 4, H, W), jnp.float32),
        grid=(B, n_row_tiles),
        in_specs=[
            pl.BlockSpec((None, 3, h, w), lambda b, t: (b, 0, 0, 0)),   # base_src
            pl.BlockSpec((None, 3, h, w), lambda b, t: (b, 0, 0, 0)),   # base_fgr
            pl.BlockSpec((None, 1, h, w), lambda b, t: (b, 0, 0, 0)),   # base_pha
            pl.BlockSpec((None, 3, th, W), lambda b, t: (b, 0, t, 0)),  # fine_src tile
            pl.BlockSpec((h, h), lambda b, t: (0, 0)),                  # box_h (shared)
            pl.BlockSpec((w, w), lambda b, t: (0, 0)),                  # box_w (shared)
            pl.BlockSpec((th, h), lambda b, t: (t, 0)),                 # Ph row tile
            pl.BlockSpec((w, W), lambda b, t: (0, 0)),                  # Pw^T (shared)
        ],
        out_specs=pl.BlockSpec((None, 4, th, W), lambda b, t: (b, 0, t, 0)),
        scratch_shapes=[pltpu.VMEM((4, h, w), jnp.float32),   # A (per-plane, hoisted)
                        pltpu.VMEM((4, h, w), jnp.float32)],  # b (per-plane, hoisted)
        compiler_params=pltpu.CompilerParams(
            dimension_semantics=("parallel", "arbitrary"),
            vmem_limit_bytes=vmem_limit),
    )(base_src.astype(jnp.float32), base_fgr.astype(jnp.float32),
      base_pha.astype(jnp.float32), fine_src.astype(jnp.float32),
      bh, bw, ph, pwt)


# ------------------------------------------------------------------ module forward
def forward_single_frame(fine_src, base_src, base_fgr, base_pha, *, r=1, eps=1e-5):
    out = _guided_filter_refine(base_src, base_fgr, base_pha, fine_src, r=r, eps=eps)
    return out[:, :3], out[:, 3:4]


def fast_guided_filter_refiner(fine_src, base_src, base_fgr, base_pha, base_hid=None):
    """Matches FastGuidedFilterRefiner.forward (base_hid is unused by the reference)."""
    del base_hid
    if fine_src.ndim == 5:                    # time-series path: flatten (B, T)
        B, T = fine_src.shape[:2]
        flat = lambda t: t.reshape((B * T,) + t.shape[2:])
        fgr, pha = forward_single_frame(flat(fine_src), flat(base_src),
                                        flat(base_fgr), flat(base_pha))
        unflat = lambda t: t.reshape((B, T) + t.shape[1:])
        return unflat(fgr), unflat(pha)
    return forward_single_frame(fine_src, base_src, base_fgr, base_pha)


# ------------------------------------------------------------------ pure-JAX reference
def _reference(fine_src, base_src, base_fgr, base_pha, r=1, eps=1e-5):
    def box(x):
        k = 2 * r + 1
        hh, ww = x.shape[-2], x.shape[-1]
        xp = jnp.pad(x, ((0, 0), (0, 0), (0, 0), (r, r)))
        x = sum(xp[..., :, d:d + ww] for d in range(k)) / k
        xp = jnp.pad(x, ((0, 0), (0, 0), (r, r), (0, 0)))
        x = sum(xp[..., d:d + hh, :] for d in range(k)) / k
        return x

    def upsample(x, H, W):
        i0, i1, lam = _bilinear_coords(H, x.shape[-2])
        lam = lam[:, None]
        x = jnp.take(x, i0, axis=-2) * (1 - lam) + jnp.take(x, i1, axis=-2) * lam
        j0, j1, mu = _bilinear_coords(W, x.shape[-1])
        x = jnp.take(x, j0, axis=-1) * (1 - mu) + jnp.take(x, j1, axis=-1) * mu
        return x

    fine_gray = jnp.mean(fine_src, axis=1, keepdims=True)
    base_gray = jnp.mean(base_src, axis=1, keepdims=True)
    hr_x = jnp.concatenate([fine_src, fine_gray], axis=1)
    lr_x = jnp.concatenate([base_src, base_gray], axis=1)
    lr_y = jnp.concatenate([base_fgr, base_pha], axis=1)

    mean_x = box(lr_x)
    mean_y = box(lr_y)
    cov_xy = box(lr_x * lr_y) - mean_x * mean_y
    var_x = box(lr_x * lr_x) - mean_x * mean_x
    A = cov_xy / (var_x + eps)
    b = mean_y - A * mean_x
    H, W = hr_x.shape[-2:]
    A = upsample(A, H, W)
    b = upsample(b, H, W)
    out = A * hr_x + b
    return out[:, :3], out[:, 3:4]


# ------------------------------------------------------------------ main
if __name__ == "__main__":
    key = jax.random.PRNGKey(0)
    k1, k2, k3, k4, k5 = jax.random.split(key, 5)

    B = 2
    H, W = 32, 32          # high-res (fine) frame
    h, w = 16, 16          # low-res (base) frame

    fine_src = jax.random.normal(k1, (B, 3, H, W), jnp.float32)
    base_src = jax.random.normal(k2, (B, 3, h, w), jnp.float32)
    base_fgr = jax.random.normal(k3, (B, 3, h, w), jnp.float32)
    base_pha = jax.random.normal(k4, (B, 1, h, w), jnp.float32)
    base_hid = jax.random.normal(k5, (B, 16, h, w), jnp.float32)   # unused by the module

    fwd = jax.jit(fast_guided_filter_refiner)
    fgr, pha = fwd(fine_src, base_src, base_fgr, base_pha, base_hid)
    jax.block_until_ready((fgr, pha))

    assert fgr.shape == (B, 3, H, W), fgr.shape
    assert pha.shape == (B, 1, H, W), pha.shape
    assert bool(jnp.all(jnp.isfinite(fgr))) and bool(jnp.all(jnp.isfinite(pha)))

    # Sanity check against a pure-JAX (non-Pallas) reference of the same module.
    ref_fgr, ref_pha = _reference(fine_src, base_src, base_fgr, base_pha)

    def rel_err(a, b):
        return float(jnp.linalg.norm((a - b).ravel()) /
                     (jnp.linalg.norm(b.ravel()) + 1e-12))

    assert rel_err(fgr, ref_fgr) < 5e-2, rel_err(fgr, ref_fgr)
    assert rel_err(pha, ref_pha) < 5e-2, rel_err(pha, ref_pha)

    print("KERNEL_OK")
</pallas_src>

<mosaic_0001>
module attributes {stable_mosaic.version = 11 : i64} {
  func.func @_refiner_kernel(%arg0: i32, %arg1: i32, %arg2: memref<1x3x16x16xf32, #tpu.memory_space<vmem>>, %arg3: memref<1x3x16x16xf32, #tpu.memory_space<vmem>>, %arg4: memref<1x1x16x16xf32, #tpu.memory_space<vmem>>, %arg5: memref<1x3x32x32xf32, #tpu.memory_space<vmem>>, %arg6: memref<16x16xf32, #tpu.memory_space<vmem>>, %arg7: memref<16x16xf32, #tpu.memory_space<vmem>>, %arg8: memref<32x16xbf16, #tpu.memory_space<vmem>>, %arg9: memref<16x32xbf16, #tpu.memory_space<vmem>>, %arg10: memref<1x4x32x32xf32, #tpu.memory_space<vmem>>, %arg11: memref<4x16x16xf32, #tpu.memory_space<vmem>>, %arg12: memref<4x16x16xf32, #tpu.memory_space<vmem>>) attributes {dimension_semantics = [#tpu.dimension_semantics<parallel>, #tpu.dimension_semantics<arbitrary>], iteration_bounds = array<i64: 2, 1>, scalar_prefetch = 0 : i64, scratch_operands = 2 : i64, tpu.core_type = #tpu.core_type<tc>, window_params = [{transform_indices = @transform_0, window_bounds = array<i64: 1, 3, 16, 16>}, {transform_indices = @transform_1, window_bounds = array<i64: 1, 3, 16, 16>}, {transform_indices = @transform_2, window_bounds = array<i64: 1, 1, 16, 16>}, {transform_indices = @transform_3, window_bounds = array<i64: 1, 3, 32, 32>}, {pipeline_mode = #tpu.pipeline_mode<synchronous>, transform_indices = @transform_4, window_bounds = array<i64: 16, 16>}, {pipeline_mode = #tpu.pipeline_mode<synchronous>, transform_indices = @transform_5, window_bounds = array<i64: 16, 16>}, {transform_indices = @transform_6, window_bounds = array<i64: 32, 16>}, {pipeline_mode = #tpu.pipeline_mode<synchronous>, transform_indices = @transform_7, window_bounds = array<i64: 16, 32>}, {transform_indices = @transform_8, window_bounds = array<i64: 1, 4, 32, 32>}]} {
    %c0_i32 = arith.constant 0 : i32
    %0 = arith.cmpi eq, %arg1, %c0_i32 : i32
    %1 = arith.extui %0 : i1 to i32
    %c0_i32_0 = arith.constant 0 : i32
    %2 = arith.cmpi ne, %1, %c0_i32_0 : i32
    scf.if %2 {
      %c0_69 = arith.constant 0 : index
      %c0_70 = arith.constant 0 : index
      %83 = vector.load %arg6[%c0_69, %c0_70] : memref<16x16xf32, #tpu.memory_space<vmem>>, vector<16x16xf32>
      %c0_71 = arith.constant 0 : index
      %c0_72 = arith.constant 0 : index
      %84 = vector.load %arg7[%c0_71, %c0_72] : memref<16x16xf32, #tpu.memory_space<vmem>>, vector<16x16xf32>
      %c0_73 = arith.constant 0 : index
      %c0_74 = arith.constant 0 : index
      %c0_75 = arith.constant 0 : index
      %c0_76 = arith.constant 0 : index
      %85 = vector.load %arg2[%c0_73, %c0_74, %c0_75, %c0_76] : memref<1x3x16x16xf32, #tpu.memory_space<vmem>>, vector<1x1x16x16xf32>
      %86 = vector.shape_cast %85 : vector<1x1x16x16xf32> to vector<16x16xf32>
      %c0_77 = arith.constant 0 : index
      %c1_78 = arith.constant 1 : index
      %c0_79 = arith.constant 0 : index
      %c0_80 = arith.constant 0 : index
      %87 = vector.load %arg2[%c0_77, %c1_78, %c0_79, %c0_80] : memref<1x3x16x16xf32, #tpu.memory_space<vmem>>, vector<1x1x16x16xf32>
      %88 = vector.shape_cast %87 : vector<1x1x16x16xf32> to vector<16x16xf32>
      %c0_81 = arith.constant 0 : index
      %c2_82 = arith.constant 2 : index
      %c0_83 = arith.constant 0 : index
      %c0_84 = arith.constant 0 : index
      %89 = vector.load %arg2[%c0_81, %c2_82, %c0_83, %c0_84] : memref<1x3x16x16xf32, #tpu.memory_space<vmem>>, vector<1x1x16x16xf32>
      %90 = vector.shape_cast %89 : vector<1x1x16x16xf32> to vector<16x16xf32>
      %91 = arith.addf %86, %88 : vector<16x16xf32>
      %92 = arith.addf %91, %90 : vector<16x16xf32>
      %cst_85 = arith.constant 0.333333343 : f32
      %93 = vector.broadcast %cst_85 : f32 to vector<16x16xf32>
      %94 = arith.mulf %92, %93 : vector<16x16xf32>
      %c0_86 = arith.constant 0 : index
      %c0_87 = arith.constant 0 : index
      %c0_88 = arith.constant 0 : index
      %c0_89 = arith.constant 0 : index
      %95 = vector.load %arg3[%c0_86, %c0_87, %c0_88, %c0_89] : memref<1x3x16x16xf32, #tpu.memory_space<vmem>>, vector<1x1x16x16xf32>
      %96 = vector.shape_cast %95 : vector<1x1x16x16xf32> to vector<16x16xf32>
      %c0_90 = arith.constant 0 : index
      %c1_91 = arith.constant 1 : index
      %c0_92 = arith.constant 0 : index
      %c0_93 = arith.constant 0 : index
      %97 = vector.load %arg3[%c0_90, %c1_91, %c0_92, %c0_93] : memref<1x3x16x16xf32, #tpu.memory_space<vmem>>, vector<1x1x16x16xf32>
      %98 = vector.shape_cast %97 : vector<1x1x16x16xf32> to vector<16x16xf32>
      %c0_94 = arith.constant 0 : index
      %c2_95 = arith.constant 2 : index
      %c0_96 = arith.constant 0 : index
      %c0_97 = arith.constant 0 : index
      %99 = vector.load %arg3[%c0_94, %c2_95, %c0_96, %c0_97] : memref<1x3x16x16xf32, #tpu.memory_space<vmem>>, vector<1x1x16x16xf32>
      %100 = vector.shape_cast %99 : vector<1x1x16x16xf32> to vector<16x16xf32>
      %c0_98 = arith.constant 0 : index
      %c0_99 = arith.constant 0 : index
      %c0_100 = arith.constant 0 : index
      %c0_101 = arith.constant 0 : index
      %101 = vector.load %arg4[%c0_98, %c0_99, %c0_100, %c0_101] : memref<1x1x16x16xf32, #tpu.memory_space<vmem>>, vector<1x1x16x16xf32>
      %102 = vector.shape_cast %101 : vector<1x1x16x16xf32> to vector<16x16xf32>
      %cst_102 = arith.constant dense<0.000000e+00> : vector<16x16xf32>
      %103 = tpu.matmul %83, %86, %cst_102 {dimension_numbers = #tpu.dot_dimension_numbers<[1], [0], [0], [1], [0, 0, 1, 1], [], []>} : vector<16x16xf32>, vector<16x16xf32>, vector<16x16xf32> -> vector<16x16xf32>
      %cst_103 = arith.constant dense<0.000000e+00> : vector<16x16xf32>
      %104 = tpu.matmul %103, %84, %cst_103 {dimension_numbers = #tpu.dot_dimension_numbers<[1], [0], [0], [1], [0, 0, 1, 1], [], []>} : vector<16x16xf32>, vector<16x16xf32>, vector<16x16xf32> -> vector<16x16xf32>
      %cst_104 = arith.constant dense<0.000000e+00> : vector<16x16xf32>
      %105 = tpu.matmul %83, %96, %cst_104 {dimension_numbers = #tpu.dot_dimension_numbers<[1], [0], [0], [1], [0, 0, 1, 1], [], []>} : vector<16x16xf32>, vector<16x16xf32>, vector<16x16xf32> -> vector<16x16xf32>
      %cst_105 = arith.constant dense<0.000000e+00> : vector<16x16xf32>
      %106 = tpu.matmul %105, %84, %cst_105 {dimension_numbers = #tpu.dot_dimension_numbers<[1], [0], [0], [1], [0, 0, 1, 1], [], []>} : vector<16x16xf32>, vector<16x16xf32>, vector<16x16xf32> -> vector<16x16xf32>
      %107 = arith.mulf %86, %96 : vector<16x16xf32>
      %cst_106 = arith.constant dense<0.000000e+00> : vector<16x16xf32>
      %108 = tpu.matmul %83, %107, %cst_106 {dimension_numbers = #tpu.dot_dimension_numbers<[1], [0], [0], [1], [0, 0, 1, 1], [], []>} : vector<16x16xf32>, vector<16x16xf32>, vector<16x16xf32> -> vector<16x16xf32>
      %cst_107 = arith.constant dense<0.000000e+00> : vector<16x16xf32>
      %109 = tpu.matmul %108, %84, %cst_107 {dimension_numbers = #tpu.dot_dimension_numbers<[1], [0], [0], [1], [0, 0, 1, 1], [], []>} : vector<16x16xf32>, vector<16x16xf32>, vector<16x16xf32> -> vector<16x16xf32>
      %110 = arith.mulf %104, %106 : vector<16x16xf32>
      %111 = arith.subf %109, %110 : vector<16x16xf32>
      %112 = arith.mulf %86, %86 : vector<16x16xf32>
      %cst_108 = arith.constant dense<0.000000e+00> : vector<16x16xf32>
      %113 = tpu.matmul %83, %112, %cst_108 {dimension_numbers = #tpu.dot_dimension_numbers<[1], [0], [0], [1], [0, 0, 1, 1], [], []>} : vector<16x16xf32>, vector<16x16xf32>, vector<16x16xf32> -> vector<16x16xf32>
      %cst_109 = arith.constant dense<0.000000e+00> : vector<16x16xf32>
      %114 = tpu.matmul %113, %84, %cst_109 {dimension_numbers = #tpu.dot_dimension_numbers<[1], [0], [0], [1], [0, 0, 1, 1], [], []>} : vector<16x16xf32>, vector<16x16xf32>, vector<16x16xf32> -> vector<16x16xf32>
      %115 = arith.mulf %104, %104 : vector<16x16xf32>
      %116 = arith.subf %114, %115 : vector<16x16xf32>
      %cst_110 = arith.constant 9.99999974E-6 : f32
      %117 = vector.broadcast %cst_110 : f32 to vector<16x16xf32>
      %118 = arith.addf %116, %117 : vector<16x16xf32>
      %119 = tpu.reciprocal %118 {approx = true} : vector<16x16xf32> -> vector<16x16xf32>
      %120 = arith.mulf %111, %119 : vector<16x16xf32>
      %c0_111 = arith.constant 0 : index
      %c0_112 = arith.constant 0 : index
      %c0_113 = arith.constant 0 : index
      %121 = vector.load %arg11[%c0_111, %c0_112, %c0_113] : memref<4x16x16xf32, #tpu.memory_space<vmem>>, vector<1x16x16xf32>
      %122 = vector.shape_cast %121 : vector<1x16x16xf32> to vector<16x16xf32>
      %123 = vector.shape_cast %120 : vector<16x16xf32> to vector<1x16x16xf32>
      tpu.vector_store %arg11[%c0_111, %c0_112, %c0_113], %123 {strides = array<i32>} : memref<4x16x16xf32, #tpu.memory_space<vmem>>, vector<1x16x16xf32>,
      %124 = arith.mulf %120, %104 : vector<16x16xf32>
      %125 = arith.subf %106, %124 : vector<16x16xf32>
      %c0_114 = arith.constant 0 : index
      %c0_115 = arith.constant 0 : index
      %c0_116 = arith.constant 0 : index
      %126 = vector.load %arg12[%c0_114, %c0_115, %c0_116] : memref<4x16x16xf32, #tpu.memory_space<vmem>>, vector<1x16x16xf32>
      %127 = vector.shape_cast %126 : vector<1x16x16xf32> to vector<16x16xf32>
      %128 = vector.shape_cast %125 : vector<16x16xf32> to vector<1x16x16xf32>
      tpu.vector_store %arg12[%c0_114, %c0_115, %c0_116], %128 {strides = array<i32>} : memref<4x16x16xf32, #tpu.memory_space<vmem>>, vector<1x16x16xf32>,
      %cst_117 = arith.constant dense<0.000000e+00> : vector<16x16xf32>
      %129 = tpu.matmul %83, %88, %cst_117 {dimension_numbers = #tpu.dot_dimension_numbers<[1], [0], [0], [1], [0, 0, 1, 1], [], []>} : vector<16x16xf32>, vector<16x16xf32>, vector<16x16xf32> -> vector<16x16xf32>
      %cst_118 = arith.constant dense<0.000000e+00> : vector<16x16xf32>
      %130 = tpu.matmul %129, %84, %cst_118 {dimension_numbers = #tpu.dot_dimension_numbers<[1], [0], [0], [1], [0, 0, 1, 1], [], []>} : vector<16x16xf32>, vector<16x16xf32>, vector<16x16xf32> -> vector<16x16xf32>
      %cst_119 = arith.constant dense<0.000000e+00> : vector<16x16xf32>
      %131 = tpu.matmul %83, %98, %cst_119 {dimension_numbers = #tpu.dot_dimension_numbers<[1], [0], [0], [1], [0, 0, 1, 1], [], []>} : vector<16x16xf32>, vector<16x16xf32>, vector<16x16xf32> -> vector<16x16xf32>
      %cst_120 = arith.constant dense<0.000000e+00> : vector<16x16xf32>
      %132 = tpu.matmul %131, %84, %cst_120 {dimension_numbers = #tpu.dot_dimension_numbers<[1], [0], [0], [1], [0, 0, 1, 1], [], []>} : vector<16x16xf32>, vector<16x16xf32>, vector<16x16xf32> -> vector<16x16xf32>
      %133 = arith.mulf %88, %98 : vector<16x16xf32>
      %cst_121 = arith.constant dense<0.000000e+00> : vector<16x16xf32>
      %134 = tpu.matmul %83, %133, %cst_121 {dimension_numbers = #tpu.dot_dimension_numbers<[1], [0], [0], [1], [0, 0, 1, 1], [], []>} : vector<16x16xf32>, vector<16x16xf32>, vector<16x16xf32> -> vector<16x16xf32>
      %cst_122 = arith.constant dense<0.000000e+00> : vector<16x16xf32>
      %135 = tpu.matmul %134, %84, %cst_122 {dimension_numbers = #tpu.dot_dimension_numbers<[1], [0], [0], [1], [0, 0, 1, 1], [], []>} : vector<16x16xf32>, vector<16x16xf32>, vector<16x16xf32> -> vector<16x16xf32>
      %136 = arith.mulf %130, %132 : vector<16x16xf32>
      %137 = arith.subf %135, %136 : vector<16x16xf32>
      %138 = arith.mulf %88, %88 : vector<16x16xf32>
      %cst_123 = arith.constant dense<0.000000e+00> : vector<16x16xf32>
      %139 = tpu.matmul %83, %138, %cst_123 {dimension_numbers = #tpu.dot_dimension_numbers<[1], [0], [0], [1], [0, 0, 1, 1], [], []>} : vector<16x16xf32>, vector<16x16xf32>, vector<16x16xf32> -> vector<16x16xf32>
      %cst_124 = arith.constant dense<0.000000e+00> : vector<16x16xf32>
      %140 = tpu.matmul %139, %84, %cst_124 {dimension_numbers = #tpu.dot_dimension_numbers<[1], [0], [0], [1], [0, 0, 1, 1], [], []>} : vector<16x16xf32>, vector<16x16xf32>, vector<16x16xf32> -> vector<16x16xf32>
      %141 = arith.mulf %130, %130 : vector<16x16xf32>
      %142 = arith.subf %140, %141 : vector<16x16xf32>
      %cst_125 = arith.constant 9.99999974E-6 : f32
      %143 = vector.broadcast %cst_125 : f32 to vector<16x16xf32>
      %144 = arith.addf %142, %143 : vector<16x16xf32>
      %145 = tpu.reciprocal %144 {approx = true} : vector<16x16xf32> -> vector<16x16xf32>
      %146 = arith.mulf %137, %145 : vector<16x16xf32>
      %c1_126 = arith.constant 1 : index
      %c0_127 = arith.constant 0 : index
      %c0_128 = arith.constant 0 : index
      %147 = vector.load %arg11[%c1_126, %c0_127, %c0_128] : memref<4x16x16xf32, #tpu.memory_space<vmem>>, vector<1x16x16xf32>
      %148 = vector.shape_cast %147 : vector<1x16x16xf32> to vector<16x16xf32>
      %149 = vector.shape_cast %146 : vector<16x16xf32> to vector<1x16x16xf32>
      tpu.vector_store %arg11[%c1_126, %c0_127, %c0_128], %149 {strides = array<i32>} : memref<4x16x16xf32, #tpu.memory_space<vmem>>, vector<1x16x16xf32>,
      %150 = arith.mulf %146, %130 : vector<16x16xf32>
      %151 = arith.subf %132, %150 : vector<16x16xf32>
      %c1_129 = arith.constant 1 : index
      %c0_130 = arith.constant 0 : index
      %c0_131 = arith.constant 0 : index
      %152 = vector.load %arg12[%c1_129, %c0_130, %c0_131] : memref<4x16x16xf32, #tpu.memory_space<vmem>>, vector<1x16x16xf32>
      %153 = vector.shape_cast %152 : vector<1x16x16xf32> to vector<16x16xf32>
      %154 = vector.shape_cast %151 : vector<16x16xf32> to vector<1x16x16xf32>
      tpu.vector_store %arg12[%c1_129, %c0_130, %c0_131], %154 {strides = array<i32>} : memref<4x16x16xf32, #tpu.memory_space<vmem>>, vector<1x16x16xf32>,
      %cst_132 = arith.constant dense<0.000000e+00> : vector<16x16xf32>
      %155 = tpu.matmul %83, %90, %cst_132 {dimension_numbers = #tpu.dot_dimension_numbers<[1], [0], [0], [1], [0, 0, 1, 1], [], []>} : vector<16x16xf32>, vector<16x16xf32>, vector<16x16xf32> -> vector<16x16xf32>
      %cst_133 = arith.constant dense<0.000000e+00> : vector<16x16xf32>
      %156 = tpu.matmul %155, %84, %cst_133 {dimension_numbers = #tpu.dot_dimension_numbers<[1], [0], [0], [1], [0, 0, 1, 1], [], []>} : vector<16x16xf32>, vector<16x16xf32>, vector<16x16xf32> -> vector<16x16xf32>
      %cst_134 = arith.constant dense<0.000000e+00> : vector<16x16xf32>
      %157 = tpu.matmul %83, %100, %cst_134 {dimension_numbers = #tpu.dot_dimension_numbers<[1], [0], [0], [1], [0, 0, 1, 1], [], []>} : vector<16x16xf32>, vector<16x16xf32>, vector<16x16xf32> -> vector<16x16xf32>
      %cst_135 = arith.constant dense<0.000000e+00> : vector<16x16xf32>
      %158 = tpu.matmul %157, %84, %cst_135 {dimension_numbers = #tpu.dot_dimension_numbers<[1], [0], [0], [1], [0, 0, 1, 1], [], []>} : vector<16x16xf32>, vector<16x16xf32>, vector<16x16xf32> -> vector<16x16xf32>
      %159 = arith.mulf %90, %100 : vector<16x16xf32>
      %cst_136 = arith.constant dense<0.000000e+00> : vector<16x16xf32>
      %160 = tpu.matmul %83, %159, %cst_136 {dimension_numbers = #tpu.dot_dimension_numbers<[1], [0], [0], [1], [0, 0, 1, 1], [], []>} : vector<16x16xf32>, vector<16x16xf32>, vector<16x16xf32> -> vector<16x16xf32>
      %cst_137 = arith.constant dense<0.000000e+00> : vector<16x16xf32>
      %161 = tpu.matmul %160, %84, %cst_137 {dimension_numbers = #tpu.dot_dimension_numbers<[1], [0], [0], [1], [0, 0, 1, 1], [], []>} : vector<16x16xf32>, vector<16x16xf32>, vector<16x16xf32> -> vector<16x16xf32>
      %162 = arith.mulf %156, %158 : vector<16x16xf32>
      %163 = arith.subf %161, %162 : vector<16x16xf32>
      %164 = arith.mulf %90, %90 : vector<16x16xf32>
      %cst_138 = arith.constant dense<0.000000e+00> : vector<16x16xf32>
      %165 = tpu.matmul %83, %164, %cst_138 {dimension_numbers = #tpu.dot_dimension_numbers<[1], [0], [0], [1], [0, 0, 1, 1], [], []>} : vector<16x16xf32>, vector<16x16xf32>, vector<16x16xf32> -> vector<16x16xf32>
      %cst_139 = arith.constant dense<0.000000e+00> : vector<16x16xf32>
      %166 = tpu.matmul %165, %84, %cst_139 {dimension_numbers = #tpu.dot_dimension_numbers<[1], [0], [0], [1], [0, 0, 1, 1], [], []>} : vector<16x16xf32>, vector<16x16xf32>, vector<16x16xf32> -> vector<16x16xf32>
      %167 = arith.mulf %156, %156 : vector<16x16xf32>
      %168 = arith.subf %166, %167 : vector<16x16xf32>
      %cst_140 = arith.constant 9.99999974E-6 : f32
      %169 = vector.broadcast %cst_140 : f32 to vector<16x16xf32>
      %170 = arith.addf %168, %169 : vector<16x16xf32>
      %171 = tpu.reciprocal %170 {approx = true} : vector<16x16xf32> -> vector<16x16xf32>
      %172 = arith.mulf %163, %171 : vector<16x16xf32>
      %c2_141 = arith.constant 2 : index
      %c0_142 = arith.constant 0 : index
      %c0_143 = arith.constant 0 : index
      %173 = vector.load %arg11[%c2_141, %c0_142, %c0_143] : memref<4x16x16xf32, #tpu.memory_space<vmem>>, vector<1x16x16xf32>
      %174 = vector.shape_cast %173 : vector<1x16x16xf32> to vector<16x16xf32>
      %175 = vector.shape_cast %172 : vector<16x16xf32> to vector<1x16x16xf32>
      tpu.vector_store %arg11[%c2_141, %c0_142, %c0_143], %175 {strides = array<i32>} : memref<4x16x16xf32, #tpu.memory_space<vmem>>, vector<1x16x16xf32>,
      %176 = arith.mulf %172, %156 : vector<16x16xf32>
      %177 = arith.subf %158, %176 : vector<16x16xf32>
      %c2_144 = arith.constant 2 : index
      %c0_145 = arith.constant 0 : index
      %c0_146 = arith.constant 0 : index
      %178 = vector.load %arg12[%c2_144, %c0_145, %c0_146] : memref<4x16x16xf32, #tpu.memory_space<vmem>>, vector<1x16x16xf32>
      %179 = vector.shape_cast %178 : vector<1x16x16xf32> to vector<16x16xf32>
      %180 = vector.shape_cast %177 : vector<16x16xf32> to vector<1x16x16xf32>
      tpu.vector_store %arg12[%c2_144, %c0_145, %c0_146], %180 {strides = array<i32>} : memref<4x16x16xf32, #tpu.memory_space<vmem>>, vector<1x16x16xf32>,
      %cst_147 = arith.constant dense<0.000000e+00> : vector<16x16xf32>
      %181 = tpu.matmul %83, %94, %cst_147 {dimension_numbers = #tpu.dot_dimension_numbers<[1], [0], [0], [1], [0, 0, 1, 1], [], []>} : vector<16x16xf32>, vector<16x16xf32>, vector<16x16xf32> -> vector<16x16xf32>
      %cst_148 = arith.constant dense<0.000000e+00> : vector<16x16xf32>
      %182 = tpu.matmul %181, %84, %cst_148 {dimension_numbers = #tpu.dot_dimension_numbers<[1], [0], [0], [1], [0, 0, 1, 1], [], []>} : vector<16x16xf32>, vector<16x16xf32>, vector<16x16xf32> -> vector<16x16xf32>
      %cst_149 = arith.constant dense<0.000000e+00> : vector<16x16xf32>
      %183 = tpu.matmul %83, %102, %cst_149 {dimension_numbers = #tpu.dot_dimension_numbers<[1], [0], [0], [1], [0, 0, 1, 1], [], []>} : vector<16x16xf32>, vector<16x16xf32>, vector<16x16xf32> -> vector<16x16xf32>
      %cst_150 = arith.constant dense<0.000000e+00> : vector<16x16xf32>
      %184 = tpu.matmul %183, %84, %cst_150 {dimension_numbers = #tpu.dot_dimension_numbers<[1], [0], [0], [1], [0, 0, 1, 1], [], []>} : vector<16x16xf32>, vector<16x16xf32>, vector<16x16xf32> -> vector<16x16xf32>
      %185 = arith.mulf %94, %102 : vector<16x16xf32>
      %cst_151 = arith.constant dense<0.000000e+00> : vector<16x16xf32>
      %186 = tpu.matmul %83, %185, %cst_151 {dimension_numbers = #tpu.dot_dimension_numbers<[1], [0], [0], [1], [0, 0, 1, 1], [], []>} : vector<16x16xf32>, vector<16x16xf32>, vector<16x16xf32> -> vector<16x16xf32>
      %cst_152 = arith.constant dense<0.000000e+00> : vector<16x16xf32>
      %187 = tpu.matmul %186, %84, %cst_152 {dimension_numbers = #tpu.dot_dimension_numbers<[1], [0], [0], [1], [0, 0, 1, 1], [], []>} : vector<16x16xf32>, vector<16x16xf32>, vector<16x16xf32> -> vector<16x16xf32>
      %188 = arith.mulf %182, %184 : vector<16x16xf32>
      %189 = arith.subf %187, %188 : vector<16x16xf32>
      %190 = arith.mulf %94, %94 : vector<16x16xf32>
      %cst_153 = arith.constant dense<0.000000e+00> : vector<16x16xf32>
      %191 = tpu.matmul %83, %190, %cst_153 {dimension_numbers = #tpu.dot_dimension_numbers<[1], [0], [0], [1], [0, 0, 1, 1], [], []>} : vector<16x16xf32>, vector<16x16xf32>, vector<16x16xf32> -> vector<16x16xf32>
      %cst_154 = arith.constant dense<0.000000e+00> : vector<16x16xf32>
      %192 = tpu.matmul %191, %84, %cst_154 {dimension_numbers = #tpu.dot_dimension_numbers<[1], [0], [0], [1], [0, 0, 1, 1], [], []>} : vector<16x16xf32>, vector<16x16xf32>, vector<16x16xf32> -> vector<16x16xf32>
      %193 = arith.mulf %182, %182 : vector<16x16xf32>
      %194 = arith.subf %192, %193 : vector<16x16xf32>
      %cst_155 = arith.constant 9.99999974E-6 : f32
      %195 = vector.broadcast %cst_155 : f32 to vector<16x16xf32>
      %196 = arith.addf %194, %195 : vector<16x16xf32>
      %197 = tpu.reciprocal %196 {approx = true} : vector<16x16xf32> -> vector<16x16xf32>
      %198 = arith.mulf %189, %197 : vector<16x16xf32>
      %c3_156 = arith.constant 3 : index
      %c0_157 = arith.constant 0 : index
      %c0_158 = arith.constant 0 : index
      %199 = vector.load %arg11[%c3_156, %c0_157, %c0_158] : memref<4x16x16xf32, #tpu.memory_space<vmem>>, vector<1x16x16xf32>
      %200 = vector.shape_cast %199 : vector<1x16x16xf32> to vector<16x16xf32>
      %201 = vector.shape_cast %198 : vector<16x16xf32> to vector<1x16x16xf32>
      tpu.vector_store %arg11[%c3_156, %c0_157, %c0_158], %201 {strides = array<i32>} : memref<4x16x16xf32, #tpu.memory_space<vmem>>, vector<1x16x16xf32>,
      %202 = arith.mulf %198, %182 : vector<16x16xf32>
      %203 = arith.subf %184, %202 : vector<16x16xf32>
      %c3_159 = arith.constant 3 : index
      %c0_160 = arith.constant 0 : index
      %c0_161 = arith.constant 0 : index
      %204 = vector.load %arg12[%c3_159, %c0_160, %c0_161] : memref<4x16x16xf32, #tpu.memory_space<vmem>>, vector<1x16x16xf32>
      %205 = vector.shape_cast %204 : vector<1x16x16xf32> to vector<16x16xf32>
      %206 = vector.shape_cast %203 : vector<16x16xf32> to vector<1x16x16xf32>
      tpu.vector_store %arg12[%c3_159, %c0_160, %c0_161], %206 {strides = array<i32>} : memref<4x16x16xf32, #tpu.memory_space<vmem>>, vector<1x16x16xf32>,
    } else {
    }
    %c0 = arith.constant 0 : index
    %c0_1 = arith.constant 0 : index
    %3 = vector.load %arg8[%c0, %c0_1] : memref<32x16xbf16, #tpu.memory_space<vmem>>, vector<32x16xbf16>
    %c0_2 = arith.constant 0 : index
    %c0_3 = arith.constant 0 : index
    %4 = vector.load %arg9[%c0_2, %c0_3] : memref<16x32xbf16, #tpu.memory_space<vmem>>, vector<16x32xbf16>
    %c0_4 = arith.constant 0 : index
    %c0_5 = arith.constant 0 : index
    %c0_6 = arith.constant 0 : index
    %c0_7 = arith.constant 0 : index
    %5 = vector.load %arg5[%c0_4, %c0_5, %c0_6, %c0_7] : memref<1x3x32x32xf32, #tpu.memory_space<vmem>>, vector<1x1x32x32xf32>
    %6 = vector.shape_cast %5 : vector<1x1x32x32xf32> to vector<32x32xf32>
    %c0_8 = arith.constant 0 : index
    %c1 = arith.constant 1 : index
    %c0_9 = arith.constant 0 : index
    %c0_10 = arith.constant 0 : index
    %7 = vector.load %arg5[%c0_8, %c1, %c0_9, %c0_10] : memref<1x3x32x32xf32, #tpu.memory_space<vmem>>, vector<1x1x32x32xf32>
    %8 = vector.shape_cast %7 : vector<1x1x32x32xf32> to vector<32x32xf32>
    %c0_11 = arith.constant 0 : index
    %c2 = arith.constant 2 : index
    %c0_12 = arith.constant 0 : index
    %c0_13 = arith.constant 0 : index
    %9 = vector.load %arg5[%c0_11, %c2, %c0_12, %c0_13] : memref<1x3x32x32xf32, #tpu.memory_space<vmem>>, vector<1x1x32x32xf32>
    %10 = vector.shape_cast %9 : vector<1x1x32x32xf32> to vector<32x32xf32>
    %11 = arith.addf %6, %8 : vector<32x32xf32>
    %12 = arith.addf %11, %10 : vector<32x32xf32>
    %cst = arith.constant 0.333333343 : f32
    %13 = vector.broadcast %cst : f32 to vector<32x32xf32>
    %14 = arith.mulf %12, %13 : vector<32x32xf32>
    %c0_14 = arith.constant 0 : index
    %c0_15 = arith.constant 0 : index
    %c0_16 = arith.constant 0 : index
    %15 = vector.load %arg11[%c0_14, %c0_15, %c0_16] : memref<4x16x16xf32, #tpu.memory_space<vmem>>, vector<1x16x16xf32>
    %16 = vector.shape_cast %15 : vector<1x16x16xf32> to vector<16x16xf32>
    %17 = arith.truncf %16 : vector<16x16xf32> to vector<16x16xbf16>
    %cst_17 = arith.constant dense<0.000000e+00> : vector<32x16xf32>
    %18 = tpu.matmul %3, %17, %cst_17 {dimension_numbers = #tpu.dot_dimension_numbers<[1], [0], [0], [1], [0, 0, 1, 1], [], []>} : vector<32x16xbf16>, vector<16x16xbf16>, vector<32x16xf32> -> vector<32x16xf32>
    %c0_18 = arith.constant 0 : index
    %c0_19 = arith.constant 0 : index
    %c0_20 = arith.constant 0 : index
    %19 = vector.load %arg12[%c0_18, %c0_19, %c0_20] : memref<4x16x16xf32, #tpu.memory_space<vmem>>, vector<1x16x16xf32>
    %20 = vector.shape_cast %19 : vector<1x16x16xf32> to vector<16x16xf32>
    %21 = arith.truncf %20 : vector<16x16xf32> to vector<16x16xbf16>
    %cst_21 = arith.constant dense<0.000000e+00> : vector<32x16xf32>
    %22 = tpu.matmul %3, %21, %cst_21 {dimension_numbers = #tpu.dot_dimension_numbers<[1], [0], [0], [1], [0, 0, 1, 1], [], []>} : vector<32x16xbf16>, vector<16x16xbf16>, vector<32x16xf32> -> vector<32x16xf32>
    %23 = arith.truncf %18 : vector<32x16xf32> to vector<32x16xbf16>
    %cst_22 = arith.constant dense<0.000000e+00> : vector<32x32xf32>
    %24 = tpu.matmul %23, %4, %cst_22 {dimension_numbers = #tpu.dot_dimension_numbers<[1], [0], [0], [1], [0, 0, 1, 1], [], []>} : vector<32x16xbf16>, vector<16x32xbf16>, vector<32x32xf32> -> vector<32x32xf32>
    %25 = arith.truncf %22 : vector<32x16xf32> to vector<32x16xbf16>
    %cst_23 = arith.constant dense<0.000000e+00> : vector<32x32xf32>
    %26 = tpu.matmul %25, %4, %cst_23 {dimension_numbers = #tpu.dot_dimension_numbers<[1], [0], [0], [1], [0, 0, 1, 1], [], []>} : vector<32x16xbf16>, vector<16x32xbf16>, vector<32x32xf32> -> vector<32x32xf32>
    %27 = arith.mulf %24, %6 : vector<32x32xf32>
    %28 = arith.addf %27, %26 : vector<32x32xf32>
    %c0_24 = arith.constant 0 : index
    %c0_25 = arith.constant 0 : index
    %c0_26 = arith.constant 0 : index
    %c0_27 = arith.constant 0 : index
    %29 = vector.load %arg10[%c0_24, %c0_25, %c0_26, %c0_27] : memref<1x4x32x32xf32, #tpu.memory_space<vmem>>, vector<1x1x32x32xf32>
    %30 = vector.shape_cast %29 : vector<1x1x32x32xf32> to vector<32x32xf32>
    %31 = vector.shape_cast %28 : vector<32x32xf32> to vector<1x1x32x32xf32>
    tpu.vector_store %arg10[%c0_24, %c0_25, %c0_26, %c0_27], %31 {strides = array<i32>} : memref<1x4x32x32xf32, #tpu.memory_space<vmem>>, vector<1x1x32x32xf32>,
    %c1_28 = arith.constant 1 : index
    %c0_29 = arith.constant 0 : index
    %c0_30 = arith.constant 0 : index
    %32 = vector.load %arg11[%c1_28, %c0_29, %c0_30] : memref<4x16x16xf32, #tpu.memory_space<vmem>>, vector<1x16x16xf32>
    %33 = vector.shape_cast %32 : vector<1x16x16xf32> to vector<16x16xf32>
    %34 = arith.truncf %33 : vector<16x16xf32> to vector<16x16xbf16>
    %cst_31 = arith.constant dense<0.000000e+00> : vector<32x16xf32>
    %35 = tpu.matmul %3, %34, %cst_31 {dimension_numbers = #tpu.dot_dimension_numbers<[1], [0], [0], [1], [0, 0, 1, 1], [], []>} : vector<32x16xbf16>, vector<16x16xbf16>, vector<32x16xf32> -> vector<32x16xf32>
    %c1_32 = arith.constant 1 : index
    %c0_33 = arith.constant 0 : index
    %c0_34 = arith.constant 0 : index
    %36 = vector.load %arg12[%c1_32, %c0_33, %c0_34] : memref<4x16x16xf32, #tpu.memory_space<vmem>>, vector<1x16x16xf32>
    %37 = vector.shape_cast %36 : vector<1x16x16xf32> to vector<16x16xf32>
    %38 = arith.truncf %37 : vector<16x16xf32> to vector<16x16xbf16>
    %cst_35 = arith.constant dense<0.000000e+00> : vector<32x16xf32>
    %39 = tpu.matmul %3, %38, %cst_35 {dimension_numbers = #tpu.dot_dimension_numbers<[1], [0], [0], [1], [0, 0, 1, 1], [], []>} : vector<32x16xbf16>, vector<16x16xbf16>, vector<32x16xf32> -> vector<32x16xf32>
    %40 = arith.truncf %35 : vector<32x16xf32> to vector<32x16xbf16>
    %cst_36 = arith.constant dense<0.000000e+00> : vector<32x32xf32>
    %41 = tpu.matmul %40, %4, %cst_36 {dimension_numbers = #tpu.dot_dimension_numbers<[1], [0], [0], [1], [0, 0, 1, 1], [], []>} : vector<32x16xbf16>, vector<16x32xbf16>, vector<32x32xf32> -> vector<32x32xf32>
    %42 = arith.truncf %39 : vector<32x16xf32> to vector<32x16xbf16>
    %cst_37 = arith.constant dense<0.000000e+00> : vector<32x32xf32>
    %43 = tpu.matmul %42, %4, %cst_37 {dimension_numbers = #tpu.dot_dimension_numbers<[1], [0], [0], [1], [0, 0, 1, 1], [], []>} : vector<32x16xbf16>, vector<16x32xbf16>, vector<32x32xf32> -> vector<32x32xf32>
    %44 = arith.mulf %41, %8 : vector<32x32xf32>
    %45 = arith.addf %44, %43 : vector<32x32xf32>
    %c0_38 = arith.constant 0 : index
    %c1_39 = arith.constant 1 : index
    %c0_40 = arith.constant 0 : index
    %c0_41 = arith.constant 0 : index
    %46 = vector.load %arg10[%c0_38, %c1_39, %c0_40, %c0_41] : memref<1x4x32x32xf32, #tpu.memory_space<vmem>>, vector<1x1x32x32xf32>
    %47 = vector.shape_cast %46 : vector<1x1x32x32xf32> to vector<32x32xf32>
    %48 = vector.shape_cast %45 : vector<32x32xf32> to vector<1x1x32x32xf32>
    tpu.vector_store %arg10[%c0_38, %c1_39, %c0_40, %c0_41], %48 {strides = array<i32>} : memref<1x4x32x32xf32, #tpu.memory_space<vmem>>, vector<1x1x32x32xf32>,
    %c2_42 = arith.constant 2 : index
    %c0_43 = arith.constant 0 : index
    %c0_44 = arith.constant 0 : index
    %49 = vector.load %arg11[%c2_42, %c0_43, %c0_44] : memref<4x16x16xf32, #tpu.memory_space<vmem>>, vector<1x16x16xf32>
    %50 = vector.shape_cast %49 : vector<1x16x16xf32> to vector<16x16xf32>
    %51 = arith.truncf %50 : vector<16x16xf32> to vector<16x16xbf16>
    %cst_45 = arith.constant dense<0.000000e+00> : vector<32x16xf32>
    %52 = tpu.matmul %3, %51, %cst_45 {dimension_numbers = #tpu.dot_dimension_numbers<[1], [0], [0], [1], [0, 0, 1, 1], [], []>} : vector<32x16xbf16>, vector<16x16xbf16>, vector<32x16xf32> -> vector<32x16xf32>
    %c2_46 = arith.constant 2 : index
    %c0_47 = arith.constant 0 : index
    %c0_48 = arith.constant 0 : index
    %53 = vector.load %arg12[%c2_46, %c0_47, %c0_48] : memref<4x16x16xf32, #tpu.memory_space<vmem>>, vector<1x16x16xf32>
    %54 = vector.shape_cast %53 : vector<1x16x16xf32> to vector<16x16xf32>
    %55 = arith.truncf %54 : vector<16x16xf32> to vector<16x16xbf16>
    %cst_49 = arith.constant dense<0.000000e+00> : vector<32x16xf32>
    %56 = tpu.matmul %3, %55, %cst_49 {dimension_numbers = #tpu.dot_dimension_numbers<[1], [0], [0], [1], [0, 0, 1, 1], [], []>} : vector<32x16xbf16>, vector<16x16xbf16>, vector<32x16xf32> -> vector<32x16xf32>
    %57 = arith.truncf %52 : vector<32x16xf32> to vector<32x16xbf16>
    %cst_50 = arith.constant dense<0.000000e+00> : vector<32x32xf32>
    %58 = tpu.matmul %57, %4, %cst_50 {dimension_numbers = #tpu.dot_dimension_numbers<[1], [0], [0], [1], [0, 0, 1, 1], [], []>} : vector<32x16xbf16>, vector<16x32xbf16>, vector<32x32xf32> -> vector<32x32xf32>
    %59 = arith.truncf %56 : vector<32x16xf32> to vector<32x16xbf16>
    %cst_51 = arith.constant dense<0.000000e+00> : vector<32x32xf32>
    %60 = tpu.matmul %59, %4, %cst_51 {dimension_numbers = #tpu.dot_dimension_numbers<[1], [0], [0], [1], [0, 0, 1, 1], [], []>} : vector<32x16xbf16>, vector<16x32xbf16>, vector<32x32xf32> -> vector<32x32xf32>
    %61 = arith.mulf %58, %10 : vector<32x32xf32>
    %62 = arith.addf %61, %60 : vector<32x32xf32>
    %c0_52 = arith.constant 0 : index
    %c2_53 = arith.constant 2 : index
    %c0_54 = arith.constant 0 : index
    %c0_55 = arith.constant 0 : index
    %63 = vector.load %arg10[%c0_52, %c2_53, %c0_54, %c0_55] : memref<1x4x32x32xf32, #tpu.memory_space<vmem>>, vector<1x1x32x32xf32>
    %64 = vector.shape_cast %63 : vector<1x1x32x32xf32> to vector<32x32xf32>
    %65 = vector.shape_cast %62 : vector<32x32xf32> to vector<1x1x32x32xf32>
    tpu.vector_store %arg10[%c0_52, %c2_53, %c0_54, %c0_55], %65 {strides = array<i32>} : memref<1x4x32x32xf32, #tpu.memory_space<vmem>>, vector<1x1x32x32xf32>,
    %c3 = arith.constant 3 : index
    %c0_56 = arith.constant 0 : index
    %c0_57 = arith.constant 0 : index
    %66 = vector.load %arg11[%c3, %c0_56, %c0_57] : memref<4x16x16xf32, #tpu.memory_space<vmem>>, vector<1x16x16xf32>
    %67 = vector.shape_cast %66 : vector<1x16x16xf32> to vector<16x16xf32>
    %68 = arith.truncf %67 : vector<16x16xf32> to vector<16x16xbf16>
    %cst_58 = arith.constant dense<0.000000e+00> : vector<32x16xf32>
    %69 = tpu.matmul %3, %68, %cst_58 {dimension_numbers = #tpu.dot_dimension_numbers<[1], [0], [0], [1], [0, 0, 1, 1], [], []>} : vector<32x16xbf16>, vector<16x16xbf16>, vector<32x16xf32> -> vector<32x16xf32>
    %c3_59 = arith.constant 3 : index
    %c0_60 = arith.constant 0 : index
    %c0_61 = arith.constant 0 : index
    %70 = vector.load %arg12[%c3_59, %c0_60, %c0_61] : memref<4x16x16xf32, #tpu.memory_space<vmem>>, vector<1x16x16xf32>
    %71 = vector.shape_cast %70 : vector<1x16x16xf32> to vector<16x16xf32>
    %72 = arith.truncf %71 : vector<16x16xf32> to vector<16x16xbf16>
    %cst_62 = arith.constant dense<0.000000e+00> : vector<32x16xf32>
    %73 = tpu.matmul %3, %72, %cst_62 {dimension_numbers = #tpu.dot_dimension_numbers<[1], [0], [0], [1], [0, 0, 1, 1], [], []>} : vector<32x16xbf16>, vector<16x16xbf16>, vector<32x16xf32> -> vector<32x16xf32>
    %74 = arith.truncf %69 : vector<32x16xf32> to vector<32x16xbf16>
    %cst_63 = arith.constant dense<0.000000e+00> : vector<32x32xf32>
    %75 = tpu.matmul %74, %4, %cst_63 {dimension_numbers = #tpu.dot_dimension_numbers<[1], [0], [0], [1], [0, 0, 1, 1], [], []>} : vector<32x16xbf16>, vector<16x32xbf16>, vector<32x32xf32> -> vector<32x32xf32>
    %76 = arith.truncf %73 : vector<32x16xf32> to vector<32x16xbf16>
    %cst_64 = arith.constant dense<0.000000e+00> : vector<32x32xf32>
    %77 = tpu.matmul %76, %4, %cst_64 {dimension_numbers = #tpu.dot_dimension_numbers<[1], [0], [0], [1], [0, 0, 1, 1], [], []>} : vector<32x16xbf16>, vector<16x32xbf16>, vector<32x32xf32> -> vector<32x32xf32>
    %78 = arith.mulf %75, %14 : vector<32x32xf32>
    %79 = arith.addf %78, %77 : vector<32x32xf32>
    %c0_65 = arith.constant 0 : index
    %c3_66 = arith.constant 3 : index
    %c0_67 = arith.constant 0 : index
    %c0_68 = arith.constant 0 : index
    %80 = vector.load %arg10[%c0_65, %c3_66, %c0_67, %c0_68] : memref<1x4x32x32xf32, #tpu.memory_space<vmem>>, vector<1x1x32x32xf32>
    %81 = vector.shape_cast %80 : vector<1x1x32x32xf32> to vector<32x32xf32>
    %82 = vector.shape_cast %79 : vector<32x32xf32> to vector<1x1x32x32xf32>
    tpu.vector_store %arg10[%c0_65, %c3_66, %c0_67, %c0_68], %82 {strides = array<i32>} : memref<1x4x32x32xf32, #tpu.memory_space<vmem>>, vector<1x1x32x32xf32>,
    return
  }
  func.func @transform_0(%arg0: i32, %arg1: i32) -> (i32, i32, i32, i32) {
    %c0_i32 = arith.constant 0 : i32
    %c0_i32_0 = arith.constant 0 : i32
    %c0_i32_1 = arith.constant 0 : i32
    %c0_i32_2 = arith.constant 0 : i32
    return %arg0, %c0_i32, %c0_i32_0, %c0_i32_1 : i32, i32, i32, i32
  }
  func.func @transform_1(%arg0: i32, %arg1: i32) -> (i32, i32, i32, i32) {
    %c0_i32 = arith.constant 0 : i32
    %c0_i32_0 = arith.constant 0 : i32
    %c0_i32_1 = arith.constant 0 : i32
    %c0_i32_2 = arith.constant 0 : i32
    return %arg0, %c0_i32, %c0_i32_0, %c0_i32_1 : i32, i32, i32, i32
  }
  func.func @transform_2(%arg0: i32, %arg1: i32) -> (i32, i32, i32, i32) {
    %c0_i32 = arith.constant 0 : i32
    %c0_i32_0 = arith.constant 0 : i32
    %c0_i32_1 = arith.constant 0 : i32
    %c0_i32_2 = arith.constant 0 : i32
    return %arg0, %c0_i32, %c0_i32_0, %c0_i32_1 : i32, i32, i32, i32
  }
  func.func @transform_3(%arg0: i32, %arg1: i32) -> (i32, i32, i32, i32) {
    %c0_i32 = arith.constant 0 : i32
    %c0_i32_0 = arith.constant 0 : i32
    %c0_i32_1 = arith.constant 0 : i32
    return %arg0, %c0_i32, %arg1, %c0_i32_0 : i32, i32, i32, i32
  }
  func.func @transform_4(%arg0: i32, %arg1: i32) -> (i32, i32) {
    %c0_i32 = arith.constant 0 : i32
    %c0_i32_0 = arith.constant 0 : i32
    %c0_i32_1 = arith.constant 0 : i32
    return %c0_i32, %c0_i32_0 : i32, i32
  }
  func.func @transform_5(%arg0: i32, %arg1: i32) -> (i32, i32) {
    %c0_i32 = arith.constant 0 : i32
    %c0_i32_0 = arith.constant 0 : i32
    %c0_i32_1 = arith.constant 0 : i32
    return %c0_i32, %c0_i32_0 : i32, i32
  }
  func.func @transform_6(%arg0: i32, %arg1: i32) -> (i32, i32) {
    %c0_i32 = arith.constant 0 : i32
    %c0_i32_0 = arith.constant 0 : i32
    return %arg1, %c0_i32 : i32, i32
  }
  func.func @transform_7(%arg0: i32, %arg1: i32) -> (i32, i32) {
    %c0_i32 = arith.constant 0 : i32
    %c0_i32_0 = arith.constant 0 : i32
    %c0_i32_1 = arith.constant 0 : i32
    return %c0_i32, %c0_i32_0 : i32, i32
  }
  func.func @transform_8(%arg0: i32, %arg1: i32) -> (i32, i32, i32, i32) {
    %c0_i32 = arith.constant 0 : i32
    %c0_i32_0 = arith.constant 0 : i32
    %c0_i32_1 = arith.constant 0 : i32
    return %arg0, %c0_i32, %arg1, %c0_i32_0 : i32, i32, i32, i32
  }
}

</mosaic_0001>

<llo_original>
// kernel: fast_guided_filter_refiner.1
$region0: #{fast_guided_filter_refiner.1}
  #allocation0 [shape = 'u32[]', space=smem, size = 0x4, offset = 0x4, fixed_abs, tag = 'smem constant byte address 0x4 - core index']
  #allocation1 [shape = 'u32[144,128]{1,0:T(1,128)}', space=vmem, size = 0x12000, scoped, tag = 'internal scratch']
  #allocation2 [shape = 'f32[4,16,16]{2,1,0:T(8,128)}', space=vmem, size = 0x8000, scoped, tag = 'scratch operand']
  #allocation3 [shape = 'f32[4,16,16]{2,1,0:T(8,128)}', space=vmem, size = 0x8000, scoped, tag = 'scratch operand']
  %s0 = inlined_call_operand.hbm [shape: f32[2,3,16,16], index: 0, kind: input, shape index: {}]
  %s1 = inlined_call_operand.hbm [shape: f32[2,3,16,16], index: 1, kind: input, shape index: {}]
  %s2 = inlined_call_operand.hbm [shape: f32[2,1,16,16], index: 2, kind: input, shape index: {}]
  %s3 = inlined_call_operand.hbm [shape: f32[2,3,32,32], index: 3, kind: input, shape index: {}]
  %s4 = inlined_call_operand.vmem [shape: f32[16,16], index: 4, kind: input, shape index: {}, may-alias: {4,5}]
  %s5 = inlined_call_operand.vmem [shape: f32[16,16], index: 5, kind: input, shape index: {}, may-alias: {4,5}]
  %s6 = inlined_call_operand.hbm [shape: bf16[32,16], index: 6, kind: input, shape index: {}]
  %s7 = inlined_call_operand.vmem [shape: bf16[16,32], index: 7, kind: input, shape index: {}]
  %s8 = inlined_call_operand.vmem [shape: f32[2,4,32,32], index: 8, kind: output, shape index: {}]
  %s9 = sld [smem:[#allocation0]]
  $region89: #{fast_guided_filter_refiner.1} parent=0
    _
  %s11 = ssub.s32 1, %s9
  %s12 = scalar_select 0, %s11, %s9
  $region1: #{fast_guided_filter_refiner.1} parent=0
    #allocation4 [shape = 'u8[49152]{0}', space=vmem, size = 0xc000, scoped, tag = 'input window, operand 0']
    #allocation5 [shape = 's32[2]{0}', space=sflag, size = 0x8, scoped, tag = 'scoped memory for fast_guided_filter_refiner.1']
    #allocation6 [shape = 'u8[49152]{0}', space=vmem, size = 0xc000, scoped, tag = 'input window, operand 1']
    #allocation7 [shape = 's32[2]{0}', space=sflag, size = 0x8, scoped, tag = 'scoped memory for fast_guided_filter_refiner.1']
    #allocation8 [shape = 'u8[16384]{0}', space=vmem, size = 0x4000, scoped, tag = 'input window, operand 2']
    #allocation9 [shape = 'u8[98304]{0}', space=vmem, size = 0x18000, scoped, tag = 'input window, operand 3']
    #allocation10 [shape = 's32[2]{0}', space=sflag, size = 0x8, scoped, tag = 'scoped memory for fast_guided_filter_refiner.1']
    #allocation11 [shape = 'u8[8192]{0}', space=vmem, size = 0x2000, scoped, tag = 'input window, operand 6, single buffered']
    %13 = vsyncpa [#allocation5], 0
    %s14 = scalar_lea.sflag [#allocation5], 1
    %15 = vsyncpa %s14, 0
    %16 = vsyncpa [#allocation7], 0
    %s17 = scalar_lea.sflag [#allocation7], 1
    %18 = vsyncpa %s17, 0
    %19 = vsyncpa [#allocation10], 0
    %s20 = scalar_lea.sflag [#allocation10], 1
    %21 = vsyncpa %s20, 0
    loop: start=0, step=1, limit=4
    $region2: #{fast_guided_filter_refiner.1} parent=1 // loop_pre_header
      _
    $region3: #{fast_guided_filter_refiner.1} parent=1 // loop_header
      %s23 = sphi 0, %s27
      %p24 = scmp.ge.s32.totalorder %s23, 4
      %s30 = sphi 0, %s42
      %s31 = sphi 0, %s38
      %s32 = sphi 0, %s30
      %s33 = sphi 0, %s31
      %s34 = sphi 0, %s32
      %s35 = sphi 0, %s33
      %s45 = sphi 0, %s47
      %s48 = sphi 0, %s45
      %s49 = sphi 0, %s48
      %s65 = sphi 0, %s49
      %s71 = sphi 0, %s73
      %s74 = sphi 0, %s71
      %s75 = sphi 0, %s74
      %s91 = sphi 0, %s75
      %s97 = sphi 0, %s99
      %s100 = sphi 0, %s97
      %s101 = sphi 0, %s100
      %s117 = sphi 0, %s101
      %s125 = sphi 0, %s127
      %s128 = sphi 0, %s125
      %s129 = sphi 0, %s128
      %s145 = sphi 0, %s129
      %s149 = sphi 0, %s149
      %s151 = sphi 0, %s149
      %s152 = sphi 0, %s151
      %s166 = sphi 0, %s152
      %s170 = sphi 0, %s170
      %s172 = sphi 0, %s170
      %s173 = sphi 0, %s172
      %s187 = sphi 0, %s173
      %s193 = sphi 0, %s195
      %s196 = sphi 0, %s193
      %s197 = sphi 0, %s196
      %s213 = sphi 0, %s197
      %s217 = sphi 0, %s217
      %s219 = sphi 0, %s217
      %s220 = sphi 0, %s219
      %s234 = sphi 0, %s220
      %s242 = sphi 0, %s244
      %s245 = sphi 0, %s242
      %s246 = sphi 0, %s245
      %s262 = sphi 0, %s246
    $region4: #{fast_guided_filter_refiner.1} parent=1 // loop_header_branch
      %26 = sbr.rel (%p24) target = $region8
    $region5: #{fast_guided_filter_refiner.1} parent=1 // loop_body
      %s28 = ssub.s32 %s23, 1
      %s29 = ssub.s32 %s23, 2
      %s36 = sadd.s32 1, %s31
      %p37 = scmp.ge.s32.totalorder %s36, 1
      %s38 = scalar_select %p37, 0, %s36
      %s39 = sadd.s32 1, %s30
      %s40 = scalar_select %p37, %s39, %s30
      %p41 = scmp.ge.s32.totalorder %s40, 2
      %s42 = scalar_select %p41, 0, %s40
      %s43 = ssub.s32 %s30, %s42
      %p44 = scmp.eq.s32.totalorder %s43, 0
      %s46 = sadd.s32 %s45, 1
      %s47 = scalar_select %p44, %s45, %s46
      %p50 = pneg %p44
      %p51 = scmp.eq.s32.totalorder %s23, 1
      %p52 = por %p50, %p51
      %p53 = scmp.ne.s32.totalorder %s45, %s48
      %p54 = scmp.eq.s32.totalorder %s23, 0
      %p55 = por %p53, %p54
      %p56 = scmp.ne.s32.totalorder %s45, %s48
      %p57 = scmp.eq.s32.totalorder %s28, 1
      %p58 = por %p56, %p57
      %p59 = scmp.ne.s32.totalorder %s48, %s49
      %p60 = scmp.eq.s32.totalorder %s28, 0
      %p61 = por %p59, %p60
      %p62 = scmp.ne.s32.totalorder %s48, %s49
      %p63 = scmp.eq.s32.totalorder %s29, 1
      %p64 = por %p62, %p63
      %p66 = scmp.ne.s32.totalorder %s49, %s65
      %p67 = scmp.eq.s32.totalorder %s29, 0
      %p68 = por %p66, %p67
      %s69 = ssub.s32 %s30, %s42
      %p70 = scmp.eq.s32.totalorder %s69, 0
      %s72 = sadd.s32 %s71, 1
      %s73 = scalar_select %p70, %s71, %s72
      %p76 = pneg %p70
      %p77 = scmp.eq.s32.totalorder %s23, 1
      %p78 = por %p76, %p77
      %p79 = scmp.ne.s32.totalorder %s71, %s74
      %p80 = scmp.eq.s32.totalorder %s23, 0
      %p81 = por %p79, %p80
      %p82 = scmp.ne.s32.totalorder %s71, %s74
      %p83 = scmp.eq.s32.totalorder %s28, 1
      %p84 = por %p82, %p83
      %p85 = scmp.ne.s32.totalorder %s74, %s75
      %p86 = scmp.eq.s32.totalorder %s28, 0
      %p87 = por %p85, %p86
      %p88 = scmp.ne.s32.totalorder %s74, %s75
      %p89 = scmp.eq.s32.totalorder %s29, 1
      %p90 = por %p88, %p89
      %p92 = scmp.ne.s32.totalorder %s75, %s91
      %p93 = scmp.eq.s32.totalorder %s29, 0
      %p94 = por %p92, %p93
      %s95 = ssub.s32 %s30, %s42
      %p96 = scmp.eq.s32.totalorder %s95, 0
      %s98 = sadd.s32 %s97, 1
      %s99 = scalar_select %p96, %s97, %s98
      %p102 = pneg %p96
      %p103 = scmp.eq.s32.totalorder %s23, 1
      %p104 = por %p102, %p103
      %p105 = scmp.ne.s32.totalorder %s97, %s100
      %p106 = scmp.eq.s32.totalorder %s23, 0
      %p107 = por %p105, %p106
      %p108 = scmp.ne.s32.totalorder %s97, %s100
      %p109 = scmp.eq.s32.totalorder %s28, 1
      %p110 = por %p108, %p109
      %p111 = scmp.ne.s32.totalorder %s100, %s101
      %p112 = scmp.eq.s32.totalorder %s28, 0
      %p113 = por %p111, %p112
      %p114 = scmp.ne.s32.totalorder %s100, %s101
      %p115 = scmp.eq.s32.totalorder %s29, 1
      %p116 = por %p114, %p115
      %p118 = scmp.ne.s32.totalorder %s101, %s117
      %p119 = scmp.eq.s32.totalorder %s29, 0
      %p120 = por %p118, %p119
      %s121 = ssub.s32 %s30, %s42
      %s122 = ssub.s32 %s31, %s38
      %s123 = sor.u32 %s121, %s122
      %p124 = scmp.eq.s32.totalorder %s123, 0
      %s126 = sadd.s32 %s125, 1
      %s127 = scalar_select %p124, %s125, %s126
      %p130 = pneg %p124
      %p131 = scmp.eq.s32.totalorder %s23, 1
      %p132 = por %p130, %p131
      %p133 = scmp.ne.s32.totalorder %s125, %s128
      %p134 = scmp.eq.s32.totalorder %s23, 0
      %p135 = por %p133, %p134
      %p136 = scmp.ne.s32.totalorder %s125, %s128
      %p137 = scmp.eq.s32.totalorder %s28, 1
      %p138 = por %p136, %p137
      %p139 = scmp.ne.s32.totalorder %s128, %s129
      %p140 = scmp.eq.s32.totalorder %s28, 0
      %p141 = por %p139, %p140
      %p142 = scmp.ne.s32.totalorder %s128, %s129
      %p143 = scmp.eq.s32.totalorder %s29, 1
      %p144 = por %p142, %p143
      %p146 = scmp.ne.s32.totalorder %s129, %s145
      %p147 = scmp.eq.s32.totalorder %s29, 0
      %p148 = por %p146, %p147
      %s150 = sadd.s32 %s149, 1
      %p153 = scmp.eq.s32.totalorder %s23, 1
      %p154 = scmp.ne.s32.totalorder %s149, %s151
      %p155 = scmp.eq.s32.totalorder %s23, 0
      %p156 = por %p154, %p155
      %p157 = scmp.ne.s32.totalorder %s149, %s151
      %p158 = scmp.eq.s32.totalorder %s28, 1
      %p159 = por %p157, %p158
      %p160 = scmp.ne.s32.totalorder %s151, %s152
      %p161 = scmp.eq.s32.totalorder %s28, 0
      %p162 = por %p160, %p161
      %p163 = scmp.ne.s32.totalorder %s151, %s152
      %p164 = scmp.eq.s32.totalorder %s29, 1
      %p165 = por %p163, %p164
      %p167 = scmp.ne.s32.totalorder %s152, %s166
      %p168 = scmp.eq.s32.totalorder %s29, 0
      %p169 = por %p167, %p168
      %s171 = sadd.s32 %s170, 1
      %p174 = scmp.eq.s32.totalorder %s23, 1
      %p175 = scmp.ne.s32.totalorder %s170, %s172
      %p176 = scmp.eq.s32.totalorder %s23, 0
      %p177 = por %p175, %p176
      %p178 = scmp.ne.s32.totalorder %s170, %s172
      %p179 = scmp.eq.s32.totalorder %s28, 1
      %p180 = por %p178, %p179
      %p181 = scmp.ne.s32.totalorder %s172, %s173
      %p182 = scmp.eq.s32.totalorder %s28, 0
      %p183 = por %p181, %p182
      %p184 = scmp.ne.s32.totalorder %s172, %s173
      %p185 = scmp.eq.s32.totalorder %s29, 1
      %p186 = por %p184, %p185
      %p188 = scmp.ne.s32.totalorder %s173, %s187
      %p189 = scmp.eq.s32.totalorder %s29, 0
      %p190 = por %p188, %p189
      %s191 = ssub.s32 %s31, %s38
      %p192 = scmp.eq.s32.totalorder %s191, 0
      %s194 = sadd.s32 %s193, 1
      %s195 = scalar_select %p192, %s193, %s194
      %p198 = pneg %p192
      %p199 = scmp.eq.s32.totalorder %s23, 1
      %p200 = por %p198, %p199
      %p201 = scmp.ne.s32.totalorder %s193, %s196
      %p202 = scmp.eq.s32.totalorder %s23, 0
      %p203 = por %p201, %p202
      %p204 = scmp.ne.s32.totalorder %s193, %s196
      %p205 = scmp.eq.s32.totalorder %s28, 1
      %p206 = por %p204, %p205
      %p207 = scmp.ne.s32.totalorder %s196, %s197
      %p208 = scmp.eq.s32.totalorder %s28, 0
      %p209 = por %p207, %p208
      %p210 = scmp.ne.s32.totalorder %s196, %s197
      %p211 = scmp.eq.s32.totalorder %s29, 1
      %p212 = por %p210, %p211
      %p214 = scmp.ne.s32.totalorder %s197, %s213
      %p215 = scmp.eq.s32.totalorder %s29, 0
      %p216 = por %p214, %p215
      %s218 = sadd.s32 %s217, 1
      %p221 = scmp.eq.s32.totalorder %s23, 1
      %p222 = scmp.ne.s32.totalorder %s217, %s219
      %p223 = scmp.eq.s32.totalorder %s23, 0
      %p224 = por %p222, %p223
      %p225 = scmp.ne.s32.totalorder %s217, %s219
      %p226 = scmp.eq.s32.totalorder %s28, 1
      %p227 = por %p225, %p226
      %p228 = scmp.ne.s32.totalorder %s219, %s220
      %p229 = scmp.eq.s32.totalorder %s28, 0
      %p230 = por %p228, %p229
      %p231 = scmp.ne.s32.totalorder %s219, %s220
      %p232 = scmp.eq.s32.totalorder %s29, 1
      %p233 = por %p231, %p232
      %p235 = scmp.ne.s32.totalorder %s220, %s234
      %p236 = scmp.eq.s32.totalorder %s29, 0
      %p237 = por %p235, %p236
      %s238 = ssub.s32 %s30, %s42
      %s239 = ssub.s32 %s31, %s38
      %s240 = sor.u32 %s238, %s239
      %p241 = scmp.eq.s32.totalorder %s240, 0
      %s243 = sadd.s32 %s242, 1
      %s244 = scalar_select %p241, %s242, %s243
      %p247 = pneg %p241
      %p248 = scmp.eq.s32.totalorder %s23, 1
      %p249 = por %p247, %p248
      %p250 = scmp.ne.s32.totalorder %s242, %s245
      %p251 = scmp.eq.s32.totalorder %s23, 0
      %p252 = por %p250, %p251
      %p253 = scmp.ne.s32.totalorder %s242, %s245
      %p254 = scmp.eq.s32.totalorder %s28, 1
      %p255 = por %p253, %p254
      %p256 = scmp.ne.s32.totalorder %s245, %s246
      %p257 = scmp.eq.s32.totalorder %s28, 0
      %p258 = por %p256, %p257
      %p259 = scmp.ne.s32.totalorder %s245, %s246
      %p260 = scmp.eq.s32.totalorder %s29, 1
      %p261 = por %p259, %p260
      %p263 = scmp.ne.s32.totalorder %s246, %s262
      %p264 = scmp.eq.s32.totalorder %s29, 0
      %p265 = por %p263, %p264
      %p266 = scmp.le.s32.totalorder 1, %s23
      %p267 = scmp.lt.s32.totalorder %s23, 3
      %p268 = pnand %p266, %p267
      %p269 = pneg %p268
      // Predicated region
      $region9: #{fast_guided_filter_refiner.1} parent=5 // pred_check
        _
      $region10: #{fast_guided_filter_refiner.1} parent=5 // pred_check_branch
        %271 = sbr.rel (%p268) target = $region12
      $region11: #{fast_guided_filter_refiner.1} parent=5 // pred_region
        %s272 = ssub.s32 %s23, 1
        // Predicated region
        $region13: #{fast_guided_filter_refiner.1} parent=11 // pred_check
          %p273 = pneg %p162
        $region14: #{fast_guided_filter_refiner.1} parent=11 // pred_check_branch
          %275 = sbr.rel (%p273) target = $region16
        $region15: #{fast_guided_filter_refiner.1} parent=11 // pred_region
          _
        $region16: #{fast_guided_filter_refiner.1} parent=11 // pred_fallthru
          _
        // Predicated region
        $region17: #{fast_guided_filter_refiner.1} parent=11 // pred_check
          %p276 = pneg %p183
        $region18: #{fast_guided_filter_refiner.1} parent=11 // pred_check_branch
          %278 = sbr.rel (%p276) target = $region20
        $region19: #{fast_guided_filter_refiner.1} parent=11 // pred_region
          _
        $region20: #{fast_guided_filter_refiner.1} parent=11 // pred_fallthru
          _
        // Predicated region
        $region21: #{fast_guided_filter_refiner.1} parent=11 // pred_check
          %p279 = pneg %p209
        $region22: #{fast_guided_filter_refiner.1} parent=11 // pred_check_branch
          %281 = sbr.rel (%p279) target = $region24
        $region23: #{fast_guided_filter_refiner.1} parent=11 // pred_region
          %s282 = smul.u32 4, %s33
          %s284 = ssub.s32 256, 256
          %285 = vsyncadd [#allocation10], %s284
          %s286 = smul.addr %s282, 64
          %s287 = scalar_lea.hbm %s6, %s286
          %s288 = sshll.u32 [#allocation11], 4
          %s289 = int_to_ptr.vmem [resolvable:$true] %s288
          %294 = dma.hbm_to_vmem [thread:$0]  %s287, 256, %s289, [#allocation10], 64, 64, 4
        $region24: #{fast_guided_filter_refiner.1} parent=11 // pred_fallthru
          _
        // Predicated region
        $region25: #{fast_guided_filter_refiner.1} parent=11 // pred_check
          %p295 = pneg %p230
        $region26: #{fast_guided_filter_refiner.1} parent=11 // pred_check_branch
          %297 = sbr.rel (%p295) target = $region28
        $region27: #{fast_guided_filter_refiner.1} parent=11 // pred_region
          _
        $region28: #{fast_guided_filter_refiner.1} parent=11 // pred_fallthru
          _
      $region12: #{fast_guided_filter_refiner.1} parent=5 // pred_fallthru
        _
      %p298 = scmp.lt.s32.totalorder %s23, 2
      // Predicated region
      $region29: #{fast_guided_filter_refiner.1} parent=5 // pred_check
        %p299 = pneg %p298
      $region30: #{fast_guided_filter_refiner.1} parent=5 // pred_check_branch
        %301 = sbr.rel (%p299) target = $region32
      $region31: #{fast_guided_filter_refiner.1} parent=5 // pred_region
        // Predicated region
        $region33: #{fast_guided_filter_refiner.1} parent=31 // pred_check
          %p302 = pneg %p55
        $region34: #{fast_guided_filter_refiner.1} parent=31 // pred_check_branch
          %304 = sbr.rel (%p302) target = $region36
        $region35: #{fast_guided_filter_refiner.1} parent=31 // pred_region
          %s305 = sand.u32 %s45, 1
          %s306 = scalar_lea.sflag [#allocation5], %s305
          %s307 = sand.u32 %s45, 1
          %s308 = smul.addr %s307, 48
          %s309 = scalar_lea.vmem [#allocation4], %s308
          %s311 = ssub.s32 768, 768
          %312 = vsyncadd %s306, %s311
          %s313 = smul.addr %s30, 6
          %s314 = smul.addr %s313, 128
          %s315 = scalar_lea.hbm %s0, %s314
          %s316 = sshll.u32 %s309, 4
          %s317 = int_to_ptr.vmem [resolvable:$true] %s316
          %322 = dma.hbm_to_vmem [thread:$0]  %s315, 768, %s317, %s306, 128, 128, 8
        $region36: #{fast_guided_filter_refiner.1} parent=31 // pred_fallthru
          _
        // Predicated region
        $region37: #{fast_guided_filter_refiner.1} parent=31 // pred_check
          %p323 = pneg %p81
        $region38: #{fast_guided_filter_refiner.1} parent=31 // pred_check_branch
          %325 = sbr.rel (%p323) target = $region40
        $region39: #{fast_guided_filter_refiner.1} parent=31 // pred_region
          %s326 = sand.u32 %s23, 1
          %s327 = scalar_lea.sflag [#allocation7], %s326
          %s328 = sand.u32 %s71, 1
          %s329 = smul.addr %s328, 48
          %s330 = scalar_lea.vmem [#allocation6], %s329
          %s332 = ssub.s32 768, 768
          %333 = vsyncadd %s327, %s332
          %s334 = smul.addr %s30, 6
          %s335 = smul.addr %s334, 128
          %s336 = scalar_lea.hbm %s1, %s335
          %s337 = sshll.u32 %s330, 4
          %s338 = int_to_ptr.vmem [resolvable:$true] %s337
          %343 = dma.hbm_to_vmem [thread:$0]  %s336, 768, %s338, %s327, 128, 128, 8
        $region40: #{fast_guided_filter_refiner.1} parent=31 // pred_fallthru
          _
        // Predicated region
        $region41: #{fast_guided_filter_refiner.1} parent=31 // pred_check
          %p344 = pneg %p107
        $region42: #{fast_guided_filter_refiner.1} parent=31 // pred_check_branch
          %346 = sbr.rel (%p344) target = $region44
        $region43: #{fast_guided_filter_refiner.1} parent=31 // pred_region
          %s347 = sand.u32 %s23, 1
          %s348 = scalar_lea.sflag [#allocation7], %s347
          %s349 = sand.u32 %s97, 1
          %s350 = smul.addr %s349, 16
          %s351 = scalar_lea.vmem [#allocation8], %s350
          %s353 = ssub.s32 256, 256
          %354 = vsyncadd %s348, %s353
          %s355 = smul.addr %s30, 2
          %s356 = smul.addr %s355, 128
          %s357 = scalar_lea.hbm %s2, %s356
          %s358 = sshll.u32 %s351, 4
          %s359 = int_to_ptr.vmem [resolvable:$true] %s358
          %364 = dma.hbm_to_vmem [thread:$0]  %s357, 256, %s359, %s348, 128, 128, 8
        $region44: #{fast_guided_filter_refiner.1} parent=31 // pred_fallthru
          _
        // Predicated region
        $region45: #{fast_guided_filter_refiner.1} parent=31 // pred_check
          %p365 = pneg %p135
        $region46: #{fast_guided_filter_refiner.1} parent=31 // pred_check_branch
          %367 = sbr.rel (%p365) target = $region48
        $region47: #{fast_guided_filter_refiner.1} parent=31 // pred_region
          %s368 = sand.u32 %s23, 1
          %s369 = scalar_lea.sflag [#allocation10], %s368
          %s370 = sand.u32 %s125, 1
          %s371 = smul.addr %s370, 96
          %s372 = scalar_lea.vmem [#allocation9], %s371
          %s373 = smul.u32 4, %s31
          %s375 = ssub.s32 1536, 1536
          %376 = vsyncadd %s369, %s375
          %s377 = smul.addr %s30, 12
          %s378 = sadd.s32 %s373, %s377
          %s379 = smul.addr %s378, 128
          %s380 = scalar_lea.hbm %s3, %s379
          %s381 = sshll.u32 %s372, 4
          %s382 = int_to_ptr.vmem [resolvable:$true] %s381
          %387 = dma.hbm_to_vmem [thread:$0]  %s380, 1536, %s382, %s369, 128, 128, 8
        $region48: #{fast_guided_filter_refiner.1} parent=31 // pred_fallthru
          _
      $region32: #{fast_guided_filter_refiner.1} parent=5 // pred_fallthru
        _
      %p388 = scmp.le.s32.totalorder 1, %s23
      %p389 = scmp.lt.s32.totalorder %s23, 3
      %p390 = pnand %p388, %p389
      %p391 = pneg %p390
      // Predicated region
      $region49: #{fast_guided_filter_refiner.1} parent=5 // pred_check
        _
      $region50: #{fast_guided_filter_refiner.1} parent=5 // pred_check_branch
        %393 = sbr.rel (%p390) target = $region52
      $region51: #{fast_guided_filter_refiner.1} parent=5 // pred_region
        %s394 = ssub.s32 %s23, 1
        %s395 = sand.u32 %s48, 1
        %s396 = scalar_lea.sflag [#allocation5], %s395
        %s397 = sand.u32 %s48, 1
        %s398 = smul.addr %s397, 48
        %s399 = scalar_lea.vmem [#allocation4], %s398
        // Predicated region
        $region53: #{fast_guided_filter_refiner.1} parent=51 // pred_check
          %p400 = pneg %p61
        $region54: #{fast_guided_filter_refiner.1} parent=51 // pred_check_branch
          %402 = sbr.rel (%p400) target = $region56
        $region55: #{fast_guided_filter_refiner.1} parent=51 // pred_region
          %403 = dma.done %s396, 768
        $region56: #{fast_guided_filter_refiner.1} parent=51 // pred_fallthru
          _
        %s404 = sand.u32 %s28, 1
        %s405 = scalar_lea.sflag [#allocation7], %s404
        %s406 = sand.u32 %s74, 1
        %s407 = smul.addr %s406, 48
        %s408 = scalar_lea.vmem [#allocation6], %s407
        // Predicated region
        $region57: #{fast_guided_filter_refiner.1} parent=51 // pred_check
          %p409 = pneg %p87
        $region58: #{fast_guided_filter_refiner.1} parent=51 // pred_check_branch
          %411 = sbr.rel (%p409) target = $region60
        $region59: #{fast_guided_filter_refiner.1} parent=51 // pred_region
          %412 = dma.done %s405, 768
        $region60: #{fast_guided_filter_refiner.1} parent=51 // pred_fallthru
          _
        %s413 = sand.u32 %s28, 1
        %s414 = scalar_lea.sflag [#allocation7], %s413
        %s415 = sand.u32 %s100, 1
        %s416 = smul.addr %s415, 16
        %s417 = scalar_lea.vmem [#allocation8], %s416
        // Predicated region
        $region61: #{fast_guided_filter_refiner.1} parent=51 // pred_check
          %p418 = pneg %p113
        $region62: #{fast_guided_filter_refiner.1} parent=51 // pred_check_branch
          %420 = sbr.rel (%p418) target = $region64
        $region63: #{fast_guided_filter_refiner.1} parent=51 // pred_region
          %421 = dma.done %s414, 256
        $region64: #{fast_guided_filter_refiner.1} parent=51 // pred_fallthru
          _
        %s422 = sand.u32 %s28, 1
        %s423 = scalar_lea.sflag [#allocation10], %s422
        %s424 = sand.u32 %s128, 1
        %s425 = smul.addr %s424, 96
        %s426 = scalar_lea.vmem [#allocation9], %s425
        // Predicated region
        $region65: #{fast_guided_filter_refiner.1} parent=51 // pred_check
          %p427 = pneg %p141
        $region66: #{fast_guided_filter_refiner.1} parent=51 // pred_check_branch
          %429 = sbr.rel (%p427) target = $region68
        $region67: #{fast_guided_filter_refiner.1} parent=51 // pred_region
          %430 = dma.done %s423, 1536
        $region68: #{fast_guided_filter_refiner.1} parent=51 // pred_fallthru
          _
        // Predicated region
        $region69: #{fast_guided_filter_refiner.1} parent=51 // pred_check
          %p431 = pneg %p209
        $region70: #{fast_guided_filter_refiner.1} parent=51 // pred_check_branch
          %433 = sbr.rel (%p431) target = $region72
        $region71: #{fast_guided_filter_refiner.1} parent=51 // pred_region
          %434 = dma.done [#allocation10], 256
        $region72: #{fast_guided_filter_refiner.1} parent=51 // pred_fallthru
          _
        %s435 = sand.u32 %s48, 1
        %s436 = scalar_lea.sflag [#allocation5], %s435
        %s437 = sand.u32 %s48, 1
        %s438 = smul.addr %s437, 48
        %s439 = scalar_lea.vmem [#allocation4], %s438
        %p440 = pneg %p61
        %p441 = pneg %p58
        %s442 = sand.u32 %s28, 1
        %s443 = scalar_lea.sflag [#allocation7], %s442
        %s444 = sand.u32 %s74, 1
        %s445 = smul.addr %s444, 48
        %s446 = scalar_lea.vmem [#allocation6], %s445
        %p447 = pneg %p87
        %p448 = pneg %p84
        %s449 = sand.u32 %s28, 1
        %s450 = scalar_lea.sflag [#allocation7], %s449
        %s451 = sand.u32 %s100, 1
        %s452 = smul.addr %s451, 16
        %s453 = scalar_lea.vmem [#allocation8], %s452
        %p454 = pneg %p113
        %p455 = pneg %p110
        %s456 = sand.u32 %s28, 1
        %s457 = scalar_lea.sflag [#allocation10], %s456
        %s458 = sand.u32 %s128, 1
        %s459 = smul.addr %s458, 96
        %s460 = scalar_lea.vmem [#allocation9], %s459
        %p461 = pneg %p141
        %p462 = pneg %p138
        %p463 = pneg %p162
        %p464 = pneg %p159
        %p465 = pneg %p183
        %p466 = pneg %p180
        %p467 = pneg %p209
        %p468 = pneg %p206
        %p469 = pneg %p230
        %p470 = pneg %p227
        %p471 = pneg %p258
        %p472 = pneg %p255
        %s473 = smul.u32 4, %s33
        %p474 = scmp.lt.s32.totalorder %s32, 1
        %s475 = scalar_select %p474, %s32, 1
        %p476 = scmp.lt.s32.totalorder %s473, 3
        %s477 = scalar_select %p476, %s473, 3
        %s478 = smul.addr %s475, 16
        %s479 = sadd.s32 %s477, %s478
        %s480 = smul.addr %s479, 8
        %s481 = scalar_lea.vmem %s8, %s480
        %s482 = smul.u32 4, %s33
        %s483 = smul.u32 4, %s33
        %s484 = smul.u32 4, %s33
        %p485 = scmp.lt.s32.totalorder %s32, 1
        %s486 = scalar_select %p485, %s32, 1
        %p487 = scmp.lt.s32.totalorder %s484, 3
        %s488 = scalar_select %p487, %s484, 3
        %s489 = smul.addr %s486, 16
        %s490 = sadd.s32 %s488, %s489
        %s491 = smul.addr %s490, 8
        %s492 = scalar_lea.vmem %s8, %s491
        %s493 = smul.u32 4, %s33
        %p495 = scmp.eq.s32.totalorder %s33, 0
        // Predicated region
        $region73: #{fast_guided_filter_refiner.1} parent=51 // pred_check
          %p496 = pneg %p495
        $region74: #{fast_guided_filter_refiner.1} parent=51 // pred_check_branch
          %498 = sbr.rel (%p496) target = $region76
        $region75: #{fast_guided_filter_refiner.1} parent=51 // pred_region
          %v499 = vld [vmem:[%s4] sm:$0xff]
          %v500 = vld [vmem:[%s4 + $0x8] sm:$0xff]
          %v501 = vld [vmem:[%s5] sm:$0xff]
          %v502 = vld [vmem:[%s5 + $0x8] sm:$0xff]
          %v503 = vld [vmem:[%s399] sm:$0xff]
          %v504 = vld [vmem:[%s399 + $0x8] sm:$0xff]
          %s505 = scalar_lea.vmem %s399, 16 [#allocation4]
          %v506 = vld [vmem:[%s505] sm:$0xff]
          %v507 = vld [vmem:[%s505 + $0x8] sm:$0xff]
          %s508 = scalar_lea.vmem %s399, 32 [#allocation4]
          %v509 = vld [vmem:[%s508] sm:$0xff]
          %v510 = vld [vmem:[%s508 + $0x8] sm:$0xff]
          %v511 = vadd.f32 %v503, %v506
          %v512 = vadd.f32 %v504, %v507
          %v513 = vadd.f32 %v511, %v509
          %v514 = vadd.f32 %v512, %v510
          %v515 = vmul.f32 %v513, 0.33333334
          %v516 = vmul.f32 %v514, 0.33333334
          %v517 = vld [vmem:[%s408] sm:$0xff]
          %v518 = vld [vmem:[%s408 + $0x8] sm:$0xff]
          %s519 = scalar_lea.vmem %s408, 16 [#allocation6]
          %v520 = vld [vmem:[%s519] sm:$0xff]
          %v521 = vld [vmem:[%s519 + $0x8] sm:$0xff]
          %s522 = scalar_lea.vmem %s408, 32 [#allocation6]
          %v523 = vld [vmem:[%s522] sm:$0xff]
          %v524 = vld [vmem:[%s522 + $0x8] sm:$0xff]
          %v525 = vld [vmem:[%s417] sm:$0xff]
          %v526 = vld [vmem:[%s417 + $0x8] sm:$0xff]
          %vm527 = vcmask 130048
          %v529 = vsel %vm527, %v499, 0
          %v532 = vsel %vm527, %v500, 0
          %534 = vmatprep.subr.mxu0 0.0
          %535 = vmatpush1.msra.mxu0 %v503
          %536 = vmatprep.subr.mxu0 0.0
          %537 = vmatpush1.msra.mxu0 %v504
          %538 = vmatprep.subr.mxu0 0.0
          %539 = vmatpush1.msra.mxu0 0.0
          %540 = vmatprep.subr.mxu0 0.0
          %541 = vmatpush1.msra.mxu0 0.0
          %542 = vmatprep.subr.mxu0 0.0
          %543 = vmatpush1.msra.mxu0 0.0
          %544 = vmatprep.subr.mxu0 0.0
          %545 = vmatpush1.msra.mxu0 0.0
          %546 = vmatprep.subr.mxu0 0.0
          %547 = vmatpush1.msra.mxu0 0.0
          %548 = vmatprep.subr.mxu0 0.0
          %549 = vmatpush1.msra.mxu0 0.0
          %550 = vmatprep.subr.mxu0 0.0
          %551 = vmatpush1.msra.mxu0 0.0
          %552 = vmatprep.subr.mxu0 0.0
          %553 = vmatpush1.msra.mxu0 0.0
          %554 = vmatprep.subr.mxu0 0.0
          %555 = vmatpush1.msra.mxu0 0.0
          %556 = vmatprep.subr.mxu0 0.0
          %557 = vmatpush1.msra.mxu0 0.0
          %558 = vmatprep.subr.mxu0 0.0
          %559 = vmatpush1.msra.mxu0 0.0
          %560 = vmatprep.subr.mxu0 0.0
          %561 = vmatpush1.msra.mxu0 0.0
          %562 = vmatprep.subr.mxu0 0.0
          %563 = vmatpush1.msra.mxu0 0.0
          %564 = vmatprep.subr.mxu0 0.0
          %565 = vmatpush1.msra.mxu0 0.0
          %566 = vmatprep.subr.mxu0 0.0
          %567 = vmatpush1.msra.mxu0 0.0
          %568 = vmatprep.subr.mxu0 0.0
          %569 = vmatpush1.msra.mxu0 0.0
          %570 = vmatprep.subr.mxu0 0.0
          %571 = vmatpush1.msra.mxu0 0.0
          %572 = vmatprep.subr.mxu0 0.0
          %573 = vmatpush1.msra.mxu0 0.0
          %574 = vmatprep.subr.mxu0 0.0
          %575 = vmatpush1.msra.mxu0 0.0
          %576 = vmatprep.subr.mxu0 0.0
          %577 = vmatpush1.msra.mxu0 0.0
          %578 = vmatprep.subr.mxu0 0.0
          %579 = vmatpush1.msra.mxu0 0.0
          %580 = vmatprep.subr.mxu0 0.0
          %581 = vmatpush1.msra.mxu0 0.0
          %582 = vmatprep.subr.mxu0 0.0
          %583 = vmatpush1.msra.mxu0 0.0
          %584 = vmatprep.subr.mxu0 0.0
          %585 = vmatpush1.msra.mxu0 0.0
          %586 = vmatprep.subr.mxu0 0.0
          %587 = vmatpush1.msra.mxu0 0.0
          %588 = vmatprep.subr.mxu0 0.0
          %589 = vmatpush1.msra.mxu0 0.0
          %590 = vmatprep.subr.mxu0 0.0
          %591 = vmatpush1.msra.mxu0 0.0
          %592 = vmatprep.subr.mxu0 0.0
          %593 = vmatpush1.msra.mxu0 0.0
          %594 = vmatprep.subr.mxu0 0.0
          %595 = vmatpush1.msra.mxu0 0.0
          %596 = vmatprep.subr.mxu0 0.0
          %597 = vmatpush1.msra.mxu0 0.0
          %598 = vmatprep.mubr.f32.mxu0 0.0
          %599 = vmatmul.mubr.f32.gmra.mrb[0].mxu0 %v529
          %v600 = vpop.f32.mrb[0].mxu0
          %v601 = vadd.f32 0.0, %v600
          %v602 = vpop.f32.mrb[0].mxu0
          %603 = vmatprep.mubr.f32.mxu0 0.0
          %604 = vmatmul.mubr.f32.gmra.mrb[0].mxu0 %v532
          %v605 = vpop.f32.mrb[0].mxu0
          %v606 = vadd.f32 0.0, %v605
          %v607 = vpop.f32.mrb[0].mxu0
          %608 = vdwg.mxu0
          %v610 = vsel %vm527, %v601, 0
          %v613 = vsel %vm527, %v606, 0
          %615 = vmatprep.subr.mxu0 0.0
          %616 = vmatpush1.msra.mxu0 %v501
          %617 = vmatprep.subr.mxu0 0.0
          %618 = vmatpush1.msra.mxu0 %v502
          %619 = vmatprep.subr.mxu0 0.0
          %620 = vmatpush1.msra.mxu0 0.0
          %621 = vmatprep.subr.mxu0 0.0
          %622 = vmatpush1.msra.mxu0 0.0
          %623 = vmatprep.subr.mxu0 0.0
          %624 = vmatpush1.msra.mxu0 0.0
          %625 = vmatprep.subr.mxu0 0.0
          %626 = vmatpush1.msra.mxu0 0.0
          %627 = vmatprep.subr.mxu0 0.0
          %628 = vmatpush1.msra.mxu0 0.0
          %629 = vmatprep.subr.mxu0 0.0
          %630 = vmatpush1.msra.mxu0 0.0
          %631 = vmatprep.subr.mxu0 0.0
          %632 = vmatpush1.msra.mxu0 0.0
          %633 = vmatprep.subr.mxu0 0.0
          %634 = vmatpush1.msra.mxu0 0.0
          %635 = vmatprep.subr.mxu0 0.0
          %636 = vmatpush1.msra.mxu0 0.0
          %637 = vmatprep.subr.mxu0 0.0
          %638 = vmatpush1.msra.mxu0 0.0
          %639 = vmatprep.subr.mxu0 0.0
          %640 = vmatpush1.msra.mxu0 0.0
          %641 = vmatprep.subr.mxu0 0.0
          %642 = vmatpush1.msra.mxu0 0.0
          %643 = vmatprep.subr.mxu0 0.0
          %644 = vmatpush1.msra.mxu0 0.0
          %645 = vmatprep.subr.mxu0 0.0
          %646 = vmatpush1.msra.mxu0 0.0
          %647 = vmatprep.subr.mxu0 0.0
          %648 = vmatpush1.msra.mxu0 0.0
          %649 = vmatprep.subr.mxu0 0.0
          %650 = vmatpush1.msra.mxu0 0.0
          %651 = vmatprep.subr.mxu0 0.0
          %652 = vmatpush1.msra.mxu0 0.0
          %653 = vmatprep.subr.mxu0 0.0
          %654 = vmatpush1.msra.mxu0 0.0
          %655 = vmatprep.subr.mxu0 0.0
          %656 = vmatpush1.msra.mxu0 0.0
          %657 = vmatprep.subr.mxu0 0.0
          %658 = vmatpush1.msra.mxu0 0.0
          %659 = vmatprep.subr.mxu0 0.0
          %660 = vmatpush1.msra.mxu0 0.0
          %661 = vmatprep.subr.mxu0 0.0
          %662 = vmatpush1.msra.mxu0 0.0
          %663 = vmatprep.subr.mxu0 0.0
          %664 = vmatpush1.msra.mxu0 0.0
          %665 = vmatprep.subr.mxu0 0.0
          %666 = vmatpush1.msra.mxu0 0.0
          %667 = vmatprep.subr.mxu0 0.0
          %668 = vmatpush1.msra.mxu0 0.0
          %669 = vmatprep.subr.mxu0 0.0
          %670 = vmatpush1.msra.mxu0 0.0
          %671 = vmatprep.subr.mxu0 0.0
          %672 = vmatpush1.msra.mxu0 0.0
          %673 = vmatprep.subr.mxu0 0.0
          %674 = vmatpush1.msra.mxu0 0.0
          %675 = vmatprep.subr.mxu0 0.0
          %676 = vmatpush1.msra.mxu0 0.0
          %677 = vmatprep.subr.mxu0 0.0
          %678 = vmatpush1.msra.mxu0 0.0
          %679 = vmatprep.mubr.f32.mxu0 0.0
          %680 = vmatmul.mubr.f32.gmra.mrb[0].mxu0 %v610
          %v681 = vpop.f32.mrb[0].mxu0
          %v682 = vadd.f32 0.0, %v681
          %v683 = vpop.f32.mrb[0].mxu0
          %684 = vmatprep.mubr.f32.mxu0 0.0
          %685 = vmatmul.mubr.f32.gmra.mrb[0].mxu0 %v613
          %v686 = vpop.f32.mrb[0].mxu0
          %v687 = vadd.f32 0.0, %v686
          %v688 = vpop.f32.mrb[0].mxu0
          %689 = vdwg.mxu0
          %690 = vmatprep.subr.mxu0 0.0
          %691 = vmatpush1.msra.mxu0 %v517
          %692 = vmatprep.subr.mxu0 0.0
          %693 = vmatpush1.msra.mxu0 %v518
          %694 = vmatprep.subr.mxu0 0.0
          %695 = vmatpush1.msra.mxu0 0.0
          %696 = vmatprep.subr.mxu0 0.0
          %697 = vmatpush1.msra.mxu0 0.0
          %698 = vmatprep.subr.mxu0 0.0
          %699 = vmatpush1.msra.mxu0 0.0
          %700 = vmatprep.subr.mxu0 0.0
          %701 = vmatpush1.msra.mxu0 0.0
          %702 = vmatprep.subr.mxu0 0.0
          %703 = vmatpush1.msra.mxu0 0.0
          %704 = vmatprep.subr.mxu0 0.0
          %705 = vmatpush1.msra.mxu0 0.0
          %706 = vmatprep.subr.mxu0 0.0
          %707 = vmatpush1.msra.mxu0 0.0
          %708 = vmatprep.subr.mxu0 0.0
          %709 = vmatpush1.msra.mxu0 0.0
          %710 = vmatprep.subr.mxu0 0.0
          %711 = vmatpush1.msra.mxu0 0.0
          %712 = vmatprep.subr.mxu0 0.0
          %713 = vmatpush1.msra.mxu0 0.0
          %714 = vmatprep.subr.mxu0 0.0
          %715 = vmatpush1.msra.mxu0 0.0
          %716 = vmatprep.subr.mxu0 0.0
          %717 = vmatpush1.msra.mxu0 0.0
          %718 = vmatprep.subr.mxu0 0.0
          %719 = vmatpush1.msra.mxu0 0.0
          %720 = vmatprep.subr.mxu0 0.0
          %721 = vmatpush1.msra.mxu0 0.0
          %722 = vmatprep.subr.mxu0 0.0
          %723 = vmatpush1.msra.mxu0 0.0
          %724 = vmatprep.subr.mxu0 0.0
          %725 = vmatpush1.msra.mxu0 0.0
          %726 = vmatprep.subr.mxu0 0.0
          %727 = vmatpush1.msra.mxu0 0.0
          %728 = vmatprep.subr.mxu0 0.0
          %729 = vmatpush1.msra.mxu0 0.0
          %730 = vmatprep.subr.mxu0 0.0
          %731 = vmatpush1.msra.mxu0 0.0
          %732 = vmatprep.subr.mxu0 0.0
          %733 = vmatpush1.msra.mxu0 0.0
          %734 = vmatprep.subr.mxu0 0.0
          %735 = vmatpush1.msra.mxu0 0.0
          %736 = vmatprep.subr.mxu0 0.0
          %737 = vmatpush1.msra.mxu0 0.0
          %738 = vmatprep.subr.mxu0 0.0
          %739 = vmatpush1.msra.mxu0 0.0
          %740 = vmatprep.subr.mxu0 0.0
          %741 = vmatpush1.msra.mxu0 0.0
          %742 = vmatprep.subr.mxu0 0.0
          %743 = vmatpush1.msra.mxu0 0.0
          %744 = vmatprep.subr.mxu0 0.0
          %745 = vmatpush1.msra.mxu0 0.0
          %746 = vmatprep.subr.mxu0 0.0
          %747 = vmatpush1.msra.mxu0 0.0
          %748 = vmatprep.subr.mxu0 0.0
          %749 = vmatpush1.msra.mxu0 0.0
          %750 = vmatprep.subr.mxu0 0.0
          %751 = vmatpush1.msra.mxu0 0.0
          %752 = vmatprep.subr.mxu0 0.0
          %753 = vmatpush1.msra.mxu0 0.0
          %754 = vmatprep.mubr.f32.mxu0 0.0
          %755 = vmatmul.mubr.f32.gmra.mrb[0].mxu0 %v529
          %v756 = vpop.f32.mrb[0].mxu0
          %v757 = vadd.f32 0.0, %v756
          %v758 = vpop.f32.mrb[0].mxu0
          %759 = vmatprep.mubr.f32.mxu0 0.0
          %760 = vmatmul.mubr.f32.gmra.mrb[0].mxu0 %v532
          %v761 = vpop.f32.mrb[0].mxu0
          %v762 = vadd.f32 0.0, %v761
          %v763 = vpop.f32.mrb[0].mxu0
          %764 = vdwg.mxu0
          %v766 = vsel %vm527, %v757, 0
          %v769 = vsel %vm527, %v762, 0
          %771 = vmatprep.subr.mxu0 0.0
          %772 = vmatpush1.msra.mxu0 %v501
          %773 = vmatprep.subr.mxu0 0.0
          %774 = vmatpush1.msra.mxu0 %v502
          %775 = vmatprep.subr.mxu0 0.0
          %776 = vmatpush1.msra.mxu0 0.0
          %777 = vmatprep.subr.mxu0 0.0
          %778 = vmatpush1.msra.mxu0 0.0
          %779 = vmatprep.subr.mxu0 0.0
          %780 = vmatpush1.msra.mxu0 0.0
          %781 = vmatprep.subr.mxu0 0.0
          %782 = vmatpush1.msra.mxu0 0.0
          %783 = vmatprep.subr.mxu0 0.0
          %784 = vmatpush1.msra.mxu0 0.0
          %785 = vmatprep.subr.mxu0 0.0
          %786 = vmatpush1.msra.mxu0 0.0
          %787 = vmatprep.subr.mxu0 0.0
          %788 = vmatpush1.msra.mxu0 0.0
          %789 = vmatprep.subr.mxu0 0.0
          %790 = vmatpush1.msra.mxu0 0.0
          %791 = vmatprep.subr.mxu0 0.0
          %792 = vmatpush1.msra.mxu0 0.0
          %793 = vmatprep.subr.mxu0 0.0
          %794 = vmatpush1.msra.mxu0 0.0
          %795 = vmatprep.subr.mxu0 0.0
          %796 = vmatpush1.msra.mxu0 0.0
          %797 = vmatprep.subr.mxu0 0.0
          %798 = vmatpush1.msra.mxu0 0.0
          %799 = vmatprep.subr.mxu0 0.0
          %800 = vmatpush1.msra.mxu0 0.0
          %801 = vmatprep.subr.mxu0 0.0
          %802 = vmatpush1.msra.mxu0 0.0
          %803 = vmatprep.subr.mxu0 0.0
          %804 = vmatpush1.msra.mxu0 0.0
          %805 = vmatprep.subr.mxu0 0.0
          %806 = vmatpush1.msra.mxu0 0.0
          %807 = vmatprep.subr.mxu0 0.0
          %808 = vmatpush1.msra.mxu0 0.0
          %809 = vmatprep.subr.mxu0 0.0
          %810 = vmatpush1.msra.mxu0 0.0
          %811 = vmatprep.subr.mxu0 0.0
          %812 = vmatpush1.msra.mxu0 0.0
          %813 = vmatprep.subr.mxu0 0.0
          %814 = vmatpush1.msra.mxu0 0.0
          %815 = vmatprep.subr.mxu0 0.0
          %816 = vmatpush1.msra.mxu0 0.0
          %817 = vmatprep.subr.mxu0 0.0
          %818 = vmatpush1.msra.mxu0 0.0
          %819 = vmatprep.subr.mxu0 0.0
          %820 = vmatpush1.msra.mxu0 0.0
          %821 = vmatprep.subr.mxu0 0.0
          %822 = vmatpush1.msra.mxu0 0.0
          %823 = vmatprep.subr.mxu0 0.0
          %824 = vmatpush1.msra.mxu0 0.0
          %825 = vmatprep.subr.mxu0 0.0
          %826 = vmatpush1.msra.mxu0 0.0
          %827 = vmatprep.subr.mxu0 0.0
          %828 = vmatpush1.msra.mxu0 0.0
          %829 = vmatprep.subr.mxu0 0.0
          %830 = vmatpush1.msra.mxu0 0.0
          %831 = vmatprep.subr.mxu0 0.0
          %832 = vmatpush1.msra.mxu0 0.0
          %833 = vmatprep.subr.mxu0 0.0
          %834 = vmatpush1.msra.mxu0 0.0
          %835 = vmatprep.mubr.f32.mxu0 0.0
          %836 = vmatmul.mubr.f32.gmra.mrb[0].mxu0 %v766
          %v837 = vpop.f32.mrb[0].mxu0
          %v838 = vadd.f32 0.0, %v837
          %v839 = vpop.f32.mrb[0].mxu0
          %840 = vmatprep.mubr.f32.mxu0 0.0
          %841 = vmatmul.mubr.f32.gmra.mrb[0].mxu0 %v769
          %v842 = vpop.f32.mrb[0].mxu0
          %v843 = vadd.f32 0.0, %v842
          %v844 = vpop.f32.mrb[0].mxu0
          %845 = vdwg.mxu0
          %v846 = vmul.f32 %v503, %v517
          %v847 = vmul.f32 %v504, %v518
          %848 = vmatprep.subr.mxu0 0.0
          %849 = vmatpush1.msra.mxu0 %v846
          %850 = vmatprep.subr.mxu0 0.0
          %851 = vmatpush1.msra.mxu0 %v847
          %852 = vmatprep.subr.mxu0 0.0
          %853 = vmatpush1.msra.mxu0 0.0
          %854 = vmatprep.subr.mxu0 0.0
          %855 = vmatpush1.msra.mxu0 0.0
          %856 = vmatprep.subr.mxu0 0.0
          %857 = vmatpush1.msra.mxu0 0.0
          %858 = vmatprep.subr.mxu0 0.0
          %859 = vmatpush1.msra.mxu0 0.0
          %860 = vmatprep.subr.mxu0 0.0
          %861 = vmatpush1.msra.mxu0 0.0
          %862 = vmatprep.subr.mxu0 0.0
          %863 = vmatpush1.msra.mxu0 0.0
          %864 = vmatprep.subr.mxu0 0.0
          %865 = vmatpush1.msra.mxu0 0.0
          %866 = vmatprep.subr.mxu0 0.0
          %867 = vmatpush1.msra.mxu0 0.0
          %868 = vmatprep.subr.mxu0 0.0
          %869 = vmatpush1.msra.mxu0 0.0
          %870 = vmatprep.subr.mxu0 0.0
          %871 = vmatpush1.msra.mxu0 0.0
          %872 = vmatprep.subr.mxu0 0.0
          %873 = vmatpush1.msra.mxu0 0.0
          %874 = vmatprep.subr.mxu0 0.0
          %875 = vmatpush1.msra.mxu0 0.0
          %876 = vmatprep.subr.mxu0 0.0
          %877 = vmatpush1.msra.mxu0 0.0
          %878 = vmatprep.subr.mxu0 0.0
          %879 = vmatpush1.msra.mxu0 0.0
          %880 = vmatprep.subr.mxu0 0.0
          %881 = vmatpush1.msra.mxu0 0.0
          %882 = vmatprep.subr.mxu0 0.0
          %883 = vmatpush1.msra.mxu0 0.0
          %884 = vmatprep.subr.mxu0 0.0
          %885 = vmatpush1.msra.mxu0 0.0
          %886 = vmatprep.subr.mxu0 0.0
          %887 = vmatpush1.msra.mxu0 0.0
          %888 = vmatprep.subr.mxu0 0.0
          %889 = vmatpush1.msra.mxu0 0.0
          %890 = vmatprep.subr.mxu0 0.0
          %891 = vmatpush1.msra.mxu0 0.0
          %892 = vmatprep.subr.mxu0 0.0
          %893 = vmatpush1.msra.mxu0 0.0
          %894 = vmatprep.subr.mxu0 0.0
          %895 = vmatpush1.msra.mxu0 0.0
          %896 = vmatprep.subr.mxu0 0.0
          %897 = vmatpush1.msra.mxu0 0.0
          %898 = vmatprep.subr.mxu0 0.0
          %899 = vmatpush1.msra.mxu0 0.0
          %900 = vmatprep.subr.mxu0 0.0
          %901 = vmatpush1.msra.mxu0 0.0
          %902 = vmatprep.subr.mxu0 0.0
          %903 = vmatpush1.msra.mxu0 0.0
          %904 = vmatprep.subr.mxu0 0.0
          %905 = vmatpush1.msra.mxu0 0.0
          %906 = vmatprep.subr.mxu0 0.0
          %907 = vmatpush1.msra.mxu0 0.0
          %908 = vmatprep.subr.mxu0 0.0
          %909 = vmatpush1.msra.mxu0 0.0
          %910 = vmatprep.subr.mxu0 0.0
          %911 = vmatpush1.msra.mxu0 0.0
          %912 = vmatprep.mubr.f32.mxu0 0.0
          %913 = vmatmul.mubr.f32.gmra.mrb[0].mxu0 %v529
          %v914 = vpop.f32.mrb[0].mxu0
          %v915 = vadd.f32 0.0, %v914
          %v916 = vpop.f32.mrb[0].mxu0
          %917 = vmatprep.mubr.f32.mxu0 0.0
          %918 = vmatmul.mubr.f32.gmra.mrb[0].mxu0 %v532
          %v919 = vpop.f32.mrb[0].mxu0
          %v920 = vadd.f32 0.0, %v919
          %v921 = vpop.f32.mrb[0].mxu0
          %922 = vdwg.mxu0
          %v924 = vsel %vm527, %v915, 0
          %v927 = vsel %vm527, %v920, 0
          %929 = vmatprep.subr.mxu0 0.0
          %930 = vmatpush1.msra.mxu0 %v501
          %931 = vmatprep.subr.mxu0 0.0
          %932 = vmatpush1.msra.mxu0 %v502
          %933 = vmatprep.subr.mxu0 0.0
          %934 = vmatpush1.msra.mxu0 0.0
          %935 = vmatprep.subr.mxu0 0.0
          %936 = vmatpush1.msra.mxu0 0.0
          %937 = vmatprep.subr.mxu0 0.0
          %938 = vmatpush1.msra.mxu0 0.0
          %939 = vmatprep.subr.mxu0 0.0
          %940 = vmatpush1.msra.mxu0 0.0
          %941 = vmatprep.subr.mxu0 0.0
          %942 = vmatpush1.msra.mxu0 0.0
          %943 = vmatprep.subr.mxu0 0.0
          %944 = vmatpush1.msra.mxu0 0.0
          %945 = vmatprep.subr.mxu0 0.0
          %946 = vmatpush1.msra.mxu0 0.0
          %947 = vmatprep.subr.mxu0 0.0
          %948 = vmatpush1.msra.mxu0 0.0
          %949 = vmatprep.subr.mxu0 0.0
          %950 = vmatpush1.msra.mxu0 0.0
          %951 = vmatprep.subr.mxu0 0.0
          %952 = vmatpush1.msra.mxu0 0.0
          %953 = vmatprep.subr.mxu0 0.0
          %954 = vmatpush1.msra.mxu0 0.0
          %955 = vmatprep.subr.mxu0 0.0
          %956 = vmatpush1.msra.mxu0 0.0
          %957 = vmatprep.subr.mxu0 0.0
          %958 = vmatpush1.msra.mxu0 0.0
          %959 = vmatprep.subr.mxu0 0.0
          %960 = vmatpush1.msra.mxu0 0.0
          %961 = vmatprep.subr.mxu0 0.0
          %962 = vmatpush1.msra.mxu0 0.0
          %963 = vmatprep.subr.mxu0 0.0
          %964 = vmatpush1.msra.mxu0 0.0
          %965 = vmatprep.subr.mxu0 0.0
          %966 = vmatpush1.msra.mxu0 0.0
          %967 = vmatprep.subr.mxu0 0.0
          %968 = vmatpush1.msra.mxu0 0.0
          %969 = vmatprep.subr.mxu0 0.0
          %970 = vmatpush1.msra.mxu0 0.0
          %971 = vmatprep.subr.mxu0 0.0
          %972 = vmatpush1.msra.mxu0 0.0
          %973 = vmatprep.subr.mxu0 0.0
          %974 = vmatpush1.msra.mxu0 0.0
          %975 = vmatprep.subr.mxu0 0.0
          %976 = vmatpush1.msra.mxu0 0.0
          %977 = vmatprep.subr.mxu0 0.0
          %978 = vmatpush1.msra.mxu0 0.0
          %979 = vmatprep.subr.mxu0 0.0
          %980 = vmatpush1.msra.mxu0 0.0
          %981 = vmatprep.subr.mxu0 0.0
          %982 = vmatpush1.msra.mxu0 0.0
          %983 = vmatprep.subr.mxu0 0.0
          %984 = vmatpush1.msra.mxu0 0.0
          %985 = vmatprep.subr.mxu0 0.0
          %986 = vmatpush1.msra.mxu0 0.0
          %987 = vmatprep.subr.mxu0 0.0
          %988 = vmatpush1.msra.mxu0 0.0
          %989 = vmatprep.subr.mxu0 0.0
          %990 = vmatpush1.msra.mxu0 0.0
          %991 = vmatprep.subr.mxu0 0.0
          %992 = vmatpush1.msra.mxu0 0.0
          %993 = vmatprep.mubr.f32.mxu0 0.0
          %994 = vmatmul.mubr.f32.gmra.mrb[0].mxu0 %v924
          %v995 = vpop.f32.mrb[0].mxu0
          %v996 = vadd.f32 0.0, %v995
          %v997 = vpop.f32.mrb[0].mxu0
          %998 = vmatprep.mubr.f32.mxu0 0.0
          %999 = vmatmul.mubr.f32.gmra.mrb[0].mxu0 %v927
          %v1000 = vpop.f32.mrb[0].mxu0
          %v1001 = vadd.f32 0.0, %v1000
          %v1002 = vpop.f32.mrb[0].mxu0
          %1003 = vdwg.mxu0
          %v1004 = vmul.f32 %v682, %v838
          %v1005 = vmul.f32 %v687, %v843
          %v1006 = vsub.f32 %v996, %v1004
          %v1007 = vsub.f32 %v1001, %v1005
          %v1008 = vmul.f32 %v503, %v503
          %v1009 = vmul.f32 %v504, %v504
          %1010 = vmatprep.subr.mxu0 0.0
          %1011 = vmatpush1.msra.mxu0 %v1008
          %1012 = vmatprep.subr.mxu0 0.0
          %1013 = vmatpush1.msra.mxu0 %v1009
          %1014 = vmatprep.subr.mxu0 0.0
          %1015 = vmatpush1.msra.mxu0 0.0
          %1016 = vmatprep.subr.mxu0 0.0
          %1017 = vmatpush1.msra.mxu0 0.0
          %1018 = vmatprep.subr.mxu0 0.0
          %1019 = vmatpush1.msra.mxu0 0.0
          %1020 = vmatprep.subr.mxu0 0.0
          %1021 = vmatpush1.msra.mxu0 0.0
          %1022 = vmatprep.subr.mxu0 0.0
          %1023 = vmatpush1.msra.mxu0 0.0
          %1024 = vmatprep.subr.mxu0 0.0
          %1025 = vmatpush1.msra.mxu0 0.0
          %1026 = vmatprep.subr.mxu0 0.0
          %1027 = vmatpush1.msra.mxu0 0.0
          %1028 = vmatprep.subr.mxu0 0.0
          %1029 = vmatpush1.msra.mxu0 0.0
          %1030 = vmatprep.subr.mxu0 0.0
          %1031 = vmatpush1.msra.mxu0 0.0
          %1032 = vmatprep.subr.mxu0 0.0
          %1033 = vmatpush1.msra.mxu0 0.0
          %1034 = vmatprep.subr.mxu0 0.0
          %1035 = vmatpush1.msra.mxu0 0.0
          %1036 = vmatprep.subr.mxu0 0.0
          %1037 = vmatpush1.msra.mxu0 0.0
          %1038 = vmatprep.subr.mxu0 0.0
          %1039 = vmatpush1.msra.mxu0 0.0
          %1040 = vmatprep.subr.mxu0 0.0
          %1041 = vmatpush1.msra.mxu0 0.0
          %1042 = vmatprep.subr.mxu0 0.0
          %1043 = vmatpush1.msra.mxu0 0.0
          %1044 = vmatprep.subr.mxu0 0.0
          %1045 = vmatpush1.msra.mxu0 0.0
          %1046 = vmatprep.subr.mxu0 0.0
          %1047 = vmatpush1.msra.mxu0 0.0
          %1048 = vmatprep.subr.mxu0 0.0
          %1049 = vmatpush1.msra.mxu0 0.0
          %1050 = vmatprep.subr.mxu0 0.0
          %1051 = vmatpush1.msra.mxu0 0.0
          %1052 = vmatprep.subr.mxu0 0.0
          %1053 = vmatpush1.msra.mxu0 0.0
          %1054 = vmatprep.subr.mxu0 0.0
          %1055 = vmatpush1.msra.mxu0 0.0
          %1056 = vmatprep.subr.mxu0 0.0
          %1057 = vmatpush1.msra.mxu0 0.0
          %1058 = vmatprep.subr.mxu0 0.0
          %1059 = vmatpush1.msra.mxu0 0.0
          %1060 = vmatprep.subr.mxu0 0.0
          %1061 = vmatpush1.msra.mxu0 0.0
          %1062 = vmatprep.subr.mxu0 0.0
          %1063 = vmatpush1.msra.mxu0 0.0
          %1064 = vmatprep.subr.mxu0 0.0
          %1065 = vmatpush1.msra.mxu0 0.0
          %1066 = vmatprep.subr.mxu0 0.0
          %1067 = vmatpush1.msra.mxu0 0.0
          %1068 = vmatprep.subr.mxu0 0.0
          %1069 = vmatpush1.msra.mxu0 0.0
          %1070 = vmatprep.subr.mxu0 0.0
          %1071 = vmatpush1.msra.mxu0 0.0
          %1072 = vmatprep.subr.mxu0 0.0
          %1073 = vmatpush1.msra.mxu0 0.0
          %1074 = vmatprep.mubr.f32.mxu0 0.0
          %1075 = vmatmul.mubr.f32.gmra.mrb[0].mxu0 %v529
          %v1076 = vpop.f32.mrb[0].mxu0
          %v1077 = vadd.f32 0.0, %v1076
          %v1078 = vpop.f32.mrb[0].mxu0
          %1079 = vmatprep.mubr.f32.mxu0 0.0
          %1080 = vmatmul.mubr.f32.gmra.mrb[0].mxu0 %v532
          %v1081 = vpop.f32.mrb[0].mxu0
          %v1082 = vadd.f32 0.0, %v1081
          %v1083 = vpop.f32.mrb[0].mxu0
          %1084 = vdwg.mxu0
          %v1086 = vsel %vm527, %v1077, 0
          %v1089 = vsel %vm527, %v1082, 0
          %1091 = vmatprep.subr.mxu0 0.0
          %1092 = vmatpush1.msra.mxu0 %v501
          %1093 = vmatprep.subr.mxu0 0.0
          %1094 = vmatpush1.msra.mxu0 %v502
          %1095 = vmatprep.subr.mxu0 0.0
          %1096 = vmatpush1.msra.mxu0 0.0
          %1097 = vmatprep.subr.mxu0 0.0
          %1098 = vmatpush1.msra.mxu0 0.0
          %1099 = vmatprep.subr.mxu0 0.0
          %1100 = vmatpush1.msra.mxu0 0.0
          %1101 = vmatprep.subr.mxu0 0.0
          %1102 = vmatpush1.msra.mxu0 0.0
          %1103 = vmatprep.subr.mxu0 0.0
          %1104 = vmatpush1.msra.mxu0 0.0
          %1105 = vmatprep.subr.mxu0 0.0
          %1106 = vmatpush1.msra.mxu0 0.0
          %1107 = vmatprep.subr.mxu0 0.0
          %1108 = vmatpush1.msra.mxu0 0.0
          %1109 = vmatprep.subr.mxu0 0.0
          %1110 = vmatpush1.msra.mxu0 0.0
          %1111 = vmatprep.subr.mxu0 0.0
          %1112 = vmatpush1.msra.mxu0 0.0
          %1113 = vmatprep.subr.mxu0 0.0
          %1114 = vmatpush1.msra.mxu0 0.0
          %1115 = vmatprep.subr.mxu0 0.0
          %1116 = vmatpush1.msra.mxu0 0.0
          %1117 = vmatprep.subr.mxu0 0.0
          %1118 = vmatpush1.msra.mxu0 0.0
          %1119 = vmatprep.subr.mxu0 0.0
          %1120 = vmatpush1.msra.mxu0 0.0
          %1121 = vmatprep.subr.mxu0 0.0
          %1122 = vmatpush1.msra.mxu0 0.0
          %1123 = vmatprep.subr.mxu0 0.0
          %1124 = vmatpush1.msra.mxu0 0.0
          %1125 = vmatprep.subr.mxu0 0.0
          %1126 = vmatpush1.msra.mxu0 0.0
          %1127 = vmatprep.subr.mxu0 0.0
          %1128 = vmatpush1.msra.mxu0 0.0
          %1129 = vmatprep.subr.mxu0 0.0
          %1130 = vmatpush1.msra.mxu0 0.0
          %1131 = vmatprep.subr.mxu0 0.0
          %1132 = vmatpush1.msra.mxu0 0.0
          %1133 = vmatprep.subr.mxu0 0.0
          %1134 = vmatpush1.msra.mxu0 0.0
          %1135 = vmatprep.subr.mxu0 0.0
          %1136 = vmatpush1.msra.mxu0 0.0
          %1137 = vmatprep.subr.mxu0 0.0
          %1138 = vmatpush1.msra.mxu0 0.0
          %1139 = vmatprep.subr.mxu0 0.0
          %1140 = vmatpush1.msra.mxu0 0.0
          %1141 = vmatprep.subr.mxu0 0.0
          %1142 = vmatpush1.msra.mxu0 0.0
          %1143 = vmatprep.subr.mxu0 0.0
          %1144 = vmatpush1.msra.mxu0 0.0
          %1145 = vmatprep.subr.mxu0 0.0
          %1146 = vmatpush1.msra.mxu0 0.0
          %1147 = vmatprep.subr.mxu0 0.0
          %1148 = vmatpush1.msra.mxu0 0.0
          %1149 = vmatprep.subr.mxu0 0.0
          %1150 = vmatpush1.msra.mxu0 0.0
          %1151 = vmatprep.subr.mxu0 0.0
          %1152 = vmatpush1.msra.mxu0 0.0
          %1153 = vmatprep.subr.mxu0 0.0
          %1154 = vmatpush1.msra.mxu0 0.0
          %1155 = vmatprep.mubr.f32.mxu0 0.0
          %1156 = vmatmul.mubr.f32.gmra.mrb[0].mxu0 %v1086
          %v1157 = vpop.f32.mrb[0].mxu0
          %v1158 = vadd.f32 0.0, %v1157
          %v1159 = vpop.f32.mrb[0].mxu0
          %1160 = vmatprep.mubr.f32.mxu0 0.0
          %1161 = vmatmul.mubr.f32.gmra.mrb[0].mxu0 %v1089
          %v1162 = vpop.f32.mrb[0].mxu0
          %v1163 = vadd.f32 0.0, %v1162
          %v1164 = vpop.f32.mrb[0].mxu0
          %1165 = vdwg.mxu0
          %v1166 = vmul.f32 %v682, %v682
          %v1167 = vmul.f32 %v687, %v687
          %v1168 = vsub.f32 %v1158, %v1166
          %v1169 = vsub.f32 %v1163, %v1167
          %v1170 = vadd.f32 %v1168, 1e-05
          %v1171 = vadd.f32 %v1169, 1e-05
          %v1172 = vrcp.pop %v1170
          %v1173 = vrcp.pop %v1171
          %v1174 = vmul.f32 %v1006, %v1172
          %v1175 = vmul.f32 %v1007, %v1173
          %1176 = vst.msk [vmem:[#allocation2] sm:$0xff] %vm527, %v1174
          %1177 = vst.msk [vmem:[#allocation2 + $0x8] sm:$0xff] %vm527, %v1175
          %v1178 = vmul.f32 %v1174, %v682
          %v1179 = vmul.f32 %v1175, %v687
          %v1180 = vsub.f32 %v838, %v1178
          %v1181 = vsub.f32 %v843, %v1179
          %1182 = vst.msk [vmem:[#allocation3] sm:$0xff] %vm527, %v1180
          %1183 = vst.msk [vmem:[#allocation3 + $0x8] sm:$0xff] %vm527, %v1181
          %1184 = vmatprep.subr.mxu0 0.0
          %1185 = vmatpush1.msra.mxu0 %v506
          %1186 = vmatprep.subr.mxu0 0.0
          %1187 = vmatpush1.msra.mxu0 %v507
          %1188 = vmatprep.subr.mxu0 0.0
          %1189 = vmatpush1.msra.mxu0 0.0
          %1190 = vmatprep.subr.mxu0 0.0
          %1191 = vmatpush1.msra.mxu0 0.0
          %1192 = vmatprep.subr.mxu0 0.0
          %1193 = vmatpush1.msra.mxu0 0.0
          %1194 = vmatprep.subr.mxu0 0.0
          %1195 = vmatpush1.msra.mxu0 0.0
          %1196 = vmatprep.subr.mxu0 0.0
          %1197 = vmatpush1.msra.mxu0 0.0
          %1198 = vmatprep.subr.mxu0 0.0
          %1199 = vmatpush1.msra.mxu0 0.0
          %1200 = vmatprep.subr.mxu0 0.0
          %1201 = vmatpush1.msra.mxu0 0.0
          %1202 = vmatprep.subr.mxu0 0.0
          %1203 = vmatpush1.msra.mxu0 0.0
          %1204 = vmatprep.subr.mxu0 0.0
          %1205 = vmatpush1.msra.mxu0 0.0
          %1206 = vmatprep.subr.mxu0 0.0
          %1207 = vmatpush1.msra.mxu0 0.0
          %1208 = vmatprep.subr.mxu0 0.0
          %1209 = vmatpush1.msra.mxu0 0.0
          %1210 = vmatprep.subr.mxu0 0.0
          %1211 = vmatpush1.msra.mxu0 0.0
          %1212 = vmatprep.subr.mxu0 0.0
          %1213 = vmatpush1.msra.mxu0 0.0
          %1214 = vmatprep.subr.mxu0 0.0
          %1215 = vmatpush1.msra.mxu0 0.0
          %1216 = vmatprep.subr.mxu0 0.0
          %1217 = vmatpush1.msra.mxu0 0.0
          %1218 = vmatprep.subr.mxu0 0.0
          %1219 = vmatpush1.msra.mxu0 0.0
          %1220 = vmatprep.subr.mxu0 0.0
          %1221 = vmatpush1.msra.mxu0 0.0
          %1222 = vmatprep.subr.mxu0 0.0
          %1223 = vmatpush1.msra.mxu0 0.0
          %1224 = vmatprep.subr.mxu0 0.0
          %1225 = vmatpush1.msra.mxu0 0.0
          %1226 = vmatprep.subr.mxu0 0.0
          %1227 = vmatpush1.msra.mxu0 0.0
          %1228 = vmatprep.subr.mxu0 0.0
          %1229 = vmatpush1.msra.mxu0 0.0
          %1230 = vmatprep.subr.mxu0 0.0
          %1231 = vmatpush1.msra.mxu0 0.0
          %1232 = vmatprep.subr.mxu0 0.0
          %1233 = vmatpush1.msra.mxu0 0.0
          %1234 = vmatprep.subr.mxu0 0.0
          %1235 = vmatpush1.msra.mxu0 0.0
          %1236 = vmatprep.subr.mxu0 0.0
          %1237 = vmatpush1.msra.mxu0 0.0
          %1238 = vmatprep.subr.mxu0 0.0
          %1239 = vmatpush1.msra.mxu0 0.0
          %1240 = vmatprep.subr.mxu0 0.0
          %1241 = vmatpush1.msra.mxu0 0.0
          %1242 = vmatprep.subr.mxu0 0.0
          %1243 = vmatpush1.msra.mxu0 0.0
          %1244 = vmatprep.subr.mxu0 0.0
          %1245 = vmatpush1.msra.mxu0 0.0
          %1246 = vmatprep.subr.mxu0 0.0
          %1247 = vmatpush1.msra.mxu0 0.0
          %1248 = vmatprep.mubr.f32.mxu0 0.0
          %1249 = vmatmul.mubr.f32.gmra.mrb[0].mxu0 %v529
          %v1250 = vpop.f32.mrb[0].mxu0
          %v1251 = vadd.f32 0.0, %v1250
          %v1252 = vpop.f32.mrb[0].mxu0
          %1253 = vmatprep.mubr.f32.mxu0 0.0
          %1254 = vmatmul.mubr.f32.gmra.mrb[0].mxu0 %v532
          %v1255 = vpop.f32.mrb[0].mxu0
          %v1256 = vadd.f32 0.0, %v1255
          %v1257 = vpop.f32.mrb[0].mxu0
          %1258 = vdwg.mxu0
          %v1260 = vsel %vm527, %v1251, 0
          %v1263 = vsel %vm527, %v1256, 0
          %1265 = vmatprep.subr.mxu0 0.0
          %1266 = vmatpush1.msra.mxu0 %v501
          %1267 = vmatprep.subr.mxu0 0.0
          %1268 = vmatpush1.msra.mxu0 %v502
          %1269 = vmatprep.subr.mxu0 0.0
          %1270 = vmatpush1.msra.mxu0 0.0
          %1271 = vmatprep.subr.mxu0 0.0
          %1272 = vmatpush1.msra.mxu0 0.0
          %1273 = vmatprep.subr.mxu0 0.0
          %1274 = vmatpush1.msra.mxu0 0.0
          %1275 = vmatprep.subr.mxu0 0.0
          %1276 = vmatpush1.msra.mxu0 0.0
          %1277 = vmatprep.subr.mxu0 0.0
          %1278 = vmatpush1.msra.mxu0 0.0
          %1279 = vmatprep.subr.mxu0 0.0
          %1280 = vmatpush1.msra.mxu0 0.0
          %1281 = vmatprep.subr.mxu0 0.0
          %1282 = vmatpush1.msra.mxu0 0.0
          %1283 = vmatprep.subr.mxu0 0.0
          %1284 = vmatpush1.msra.mxu0 0.0
          %1285 = vmatprep.subr.mxu0 0.0
          %1286 = vmatpush1.msra.mxu0 0.0
          %1287 = vmatprep.subr.mxu0 0.0
          %1288 = vmatpush1.msra.mxu0 0.0
          %1289 = vmatprep.subr.mxu0 0.0
          %1290 = vmatpush1.msra.mxu0 0.0
          %1291 = vmatprep.subr.mxu0 0.0
          %1292 = vmatpush1.msra.mxu0 0.0
          %1293 = vmatprep.subr.mxu0 0.0
          %1294 = vmatpush1.msra.mxu0 0.0
          %1295 = vmatprep.subr.mxu0 0.0
          %1296 = vmatpush1.msra.mxu0 0.0
          %1297 = vmatprep.subr.mxu0 0.0
          %1298 = vmatpush1.msra.mxu0 0.0
          %1299 = vmatprep.subr.mxu0 0.0
          %1300 = vmatpush1.msra.mxu0 0.0
          %1301 = vmatprep.subr.mxu0 0.0
          %1302 = vmatpush1.msra.mxu0 0.0
          %1303 = vmatprep.subr.mxu0 0.0
          %1304 = vmatpush1.msra.mxu0 0.0
          %1305 = vmatprep.subr.mxu0 0.0
          %1306 = vmatpush1.msra.mxu0 0.0
          %1307 = vmatprep.subr.mxu0 0.0
          %1308 = vmatpush1.msra.mxu0 0.0
          %1309 = vmatprep.subr.mxu0 0.0
          %1310 = vmatpush1.msra.mxu0 0.0
          %1311 = vmatprep.subr.mxu0 0.0
          %1312 = vmatpush1.msra.mxu0 0.0
          %1313 = vmatprep.subr.mxu0 0.0
          %1314 = vmatpush1.msra.mxu0 0.0
          %1315 = vmatprep.subr.mxu0 0.0
          %1316 = vmatpush1.msra.mxu0 0.0
          %1317 = vmatprep.subr.mxu0 0.0
          %1318 = vmatpush1.msra.mxu0 0.0
          %1319 = vmatprep.subr.mxu0 0.0
          %1320 = vmatpush1.msra.mxu0 0.0
          %1321 = vmatprep.subr.mxu0 0.0
          %1322 = vmatpush1.msra.mxu0 0.0
          %1323 = vmatprep.subr.mxu0 0.0
          %1324 = vmatpush1.msra.mxu0 0.0
          %1325 = vmatprep.subr.mxu0 0.0
          %1326 = vmatpush1.msra.mxu0 0.0
          %1327 = vmatprep.subr.mxu0 0.0
          %1328 = vmatpush1.msra.mxu0 0.0
          %1329 = vmatprep.mubr.f32.mxu0 0.0
          %1330 = vmatmul.mubr.f32.gmra.mrb[0].mxu0 %v1260
          %v1331 = vpop.f32.mrb[0].mxu0
          %v1332 = vadd.f32 0.0, %v1331
          %v1333 = vpop.f32.mrb[0].mxu0
          %1334 = vmatprep.mubr.f32.mxu0 0.0
          %1335 = vmatmul.mubr.f32.gmra.mrb[0].mxu0 %v1263
          %v1336 = vpop.f32.mrb[0].mxu0
          %v1337 = vadd.f32 0.0, %v1336
          %v1338 = vpop.f32.mrb[0].mxu0
          %1339 = vdwg.mxu0
          %1340 = vmatprep.subr.mxu0 0.0
          %1341 = vmatpush1.msra.mxu0 %v520
          %1342 = vmatprep.subr.mxu0 0.0
          %1343 = vmatpush1.msra.mxu0 %v521
          %1344 = vmatprep.subr.mxu0 0.0
          %1345 = vmatpush1.msra.mxu0 0.0
          %1346 = vmatprep.subr.mxu0 0.0
          %1347 = vmatpush1.msra.mxu0 0.0
          %1348 = vmatprep.subr.mxu0 0.0
          %1349 = vmatpush1.msra.mxu0 0.0
          %1350 = vmatprep.subr.mxu0 0.0
          %1351 = vmatpush1.msra.mxu0 0.0
          %1352 = vmatprep.subr.mxu0 0.0
          %1353 = vmatpush1.msra.mxu0 0.0
          %1354 = vmatprep.subr.mxu0 0.0
          %1355 = vmatpush1.msra.mxu0 0.0
          %1356 = vmatprep.subr.mxu0 0.0
          %1357 = vmatpush1.msra.mxu0 0.0
          %1358 = vmatprep.subr.mxu0 0.0
          %1359 = vmatpush1.msra.mxu0 0.0
          %1360 = vmatprep.subr.mxu0 0.0
          %1361 = vmatpush1.msra.mxu0 0.0
          %1362 = vmatprep.subr.mxu0 0.0
          %1363 = vmatpush1.msra.mxu0 0.0
          %1364 = vmatprep.subr.mxu0 0.0
          %1365 = vmatpush1.msra.mxu0 0.0
          %1366 = vmatprep.subr.mxu0 0.0
          %1367 = vmatpush1.msra.mxu0 0.0
          %1368 = vmatprep.subr.mxu0 0.0
          %1369 = vmatpush1.msra.mxu0 0.0
          %1370 = vmatprep.subr.mxu0 0.0
          %1371 = vmatpush1.msra.mxu0 0.0
          %1372 = vmatprep.subr.mxu0 0.0
          %1373 = vmatpush1.msra.mxu0 0.0
          %1374 = vmatprep.subr.mxu0 0.0
          %1375 = vmatpush1.msra.mxu0 0.0
          %1376 = vmatprep.subr.mxu0 0.0
          %1377 = vmatpush1.msra.mxu0 0.0
          %1378 = vmatprep.subr.mxu0 0.0
          %1379 = vmatpush1.msra.mxu0 0.0
          %1380 = vmatprep.subr.mxu0 0.0
          %1381 = vmatpush1.msra.mxu0 0.0
          %1382 = vmatprep.subr.mxu0 0.0
          %1383 = vmatpush1.msra.mxu0 0.0
          %1384 = vmatprep.subr.mxu0 0.0
          %1385 = vmatpush1.msra.mxu0 0.0
          %1386 = vmatprep.subr.mxu0 0.0
          %1387 = vmatpush1.msra.mxu0 0.0
          %1388 = vmatprep.subr.mxu0 0.0
          %1389 = vmatpush1.msra.mxu0 0.0
          %1390 = vmatprep.subr.mxu0 0.0
          %1391 = vmatpush1.msra.mxu0 0.0
          %1392 = vmatprep.subr.mxu0 0.0
          %1393 = vmatpush1.msra.mxu0 0.0
          %1394 = vmatprep.subr.mxu0 0.0
          %1395 = vmatpush1.msra.mxu0 0.0
          %1396 = vmatprep.subr.mxu0 0.0
          %1397 = vmatpush1.msra.mxu0 0.0
          %1398 = vmatprep.subr.mxu0 0.0
          %1399 = vmatpush1.msra.mxu0 0.0
          %1400 = vmatprep.subr.mxu0 0.0
          %1401 = vmatpush1.msra.mxu0 0.0
          %1402 = vmatprep.subr.mxu0 0.0
          %1403 = vmatpush1.msra.mxu0 0.0
          %1404 = vmatprep.mubr.f32.mxu0 0.0
          %1405 = vmatmul.mubr.f32.gmra.mrb[0].mxu0 %v529
          %v1406 = vpop.f32.mrb[0].mxu0
          %v1407 = vadd.f32 0.0, %v1406
          %v1408 = vpop.f32.mrb[0].mxu0
          %1409 = vmatprep.mubr.f32.mxu0 0.0
          %1410 = vmatmul.mubr.f32.gmra.mrb[0].mxu0 %v532
          %v1411 = vpop.f32.mrb[0].mxu0
          %v1412 = vadd.f32 0.0, %v1411
          %v1413 = vpop.f32.mrb[0].mxu0
          %1414 = vdwg.mxu0
          %v1416 = vsel %vm527, %v1407, 0
          %v1419 = vsel %vm527, %v1412, 0
          %1421 = vmatprep.subr.mxu0 0.0
          %1422 = vmatpush1.msra.mxu0 %v501
          %1423 = vmatprep.subr.mxu0 0.0
          %1424 = vmatpush1.msra.mxu0 %v502
          %1425 = vmatprep.subr.mxu0 0.0
          %1426 = vmatpush1.msra.mxu0 0.0
          %1427 = vmatprep.subr.mxu0 0.0
          %1428 = vmatpush1.msra.mxu0 0.0
          %1429 = vmatprep.subr.mxu0 0.0
          %1430 = vmatpush1.msra.mxu0 0.0
          %1431 = vmatprep.subr.mxu0 0.0
          %1432 = vmatpush1.msra.mxu0 0.0
          %1433 = vmatprep.subr.mxu0 0.0
          %1434 = vmatpush1.msra.mxu0 0.0
          %1435 = vmatprep.subr.mxu0 0.0
          %1436 = vmatpush1.msra.mxu0 0.0
          %1437 = vmatprep.subr.mxu0 0.0
          %1438 = vmatpush1.msra.mxu0 0.0
          %1439 = vmatprep.subr.mxu0 0.0
          %1440 = vmatpush1.msra.mxu0 0.0
          %1441 = vmatprep.subr.mxu0 0.0
          %1442 = vmatpush1.msra.mxu0 0.0
          %1443 = vmatprep.subr.mxu0 0.0
          %1444 = vmatpush1.msra.mxu0 0.0
          %1445 = vmatprep.subr.mxu0 0.0
          %1446 = vmatpush1.msra.mxu0 0.0
          %1447 = vmatprep.subr.mxu0 0.0
          %1448 = vmatpush1.msra.mxu0 0.0
          %1449 = vmatprep.subr.mxu0 0.0
          %1450 = vmatpush1.msra.mxu0 0.0
          %1451 = vmatprep.subr.mxu0 0.0
          %1452 = vmatpush1.msra.mxu0 0.0
          %1453 = vmatprep.subr.mxu0 0.0
          %1454 = vmatpush1.msra.mxu0 0.0
          %1455 = vmatprep.subr.mxu0 0.0
          %1456 = vmatpush1.msra.mxu0 0.0
          %1457 = vmatprep.subr.mxu0 0.0
          %1458 = vmatpush1.msra.mxu0 0.0
          %1459 = vmatprep.subr.mxu0 0.0
          %1460 = vmatpush1.msra.mxu0 0.0
          %1461 = vmatprep.subr.mxu0 0.0
          %1462 = vmatpush1.msra.mxu0 0.0
          %1463 = vmatprep.subr.mxu0 0.0
          %1464 = vmatpush1.msra.mxu0 0.0
          %1465 = vmatprep.subr.mxu0 0.0
          %1466 = vmatpush1.msra.mxu0 0.0
          %1467 = vmatprep.subr.mxu0 0.0
          %1468 = vmatpush1.msra.mxu0 0.0
          %1469 = vmatprep.subr.mxu0 0.0
          %1470 = vmatpush1.msra.mxu0 0.0
          %1471 = vmatprep.subr.mxu0 0.0
          %1472 = vmatpush1.msra.mxu0 0.0
          %1473 = vmatprep.subr.mxu0 0.0
          %1474 = vmatpush1.msra.mxu0 0.0
          %1475 = vmatprep.subr.mxu0 0.0
          %1476 = vmatpush1.msra.mxu0 0.0
          %1477 = vmatprep.subr.mxu0 0.0
          %1478 = vmatpush1.msra.mxu0 0.0
          %1479 = vmatprep.subr.mxu0 0.0
          %1480 = vmatpush1.msra.mxu0 0.0
          %1481 = vmatprep.subr.mxu0 0.0
          %1482 = vmatpush1.msra.mxu0 0.0
          %1483 = vmatprep.subr.mxu0 0.0
          %1484 = vmatpush1.msra.mxu0 0.0
          %1485 = vmatprep.mubr.f32.mxu0 0.0
          %1486 = vmatmul.mubr.f32.gmra.mrb[0].mxu0 %v1416
          %v1487 = vpop.f32.mrb[0].mxu0
          %v1488 = vadd.f32 0.0, %v1487
          %v1489 = vpop.f32.mrb[0].mxu0
          %1490 = vmatprep.mubr.f32.mxu0 0.0
          %1491 = vmatmul.mubr.f32.gmra.mrb[0].mxu0 %v1419
          %v1492 = vpop.f32.mrb[0].mxu0
          %v1493 = vadd.f32 0.0, %v1492
          %v1494 = vpop.f32.mrb[0].mxu0
          %1495 = vdwg.mxu0
          %v1496 = vmul.f32 %v506, %v520
          %v1497 = vmul.f32 %v507, %v521
          %1498 = vmatprep.subr.mxu0 0.0
          %1499 = vmatpush1.msra.mxu0 %v1496
          %1500 = vmatprep.subr.mxu0 0.0
          %1501 = vmatpush1.msra.mxu0 %v1497
          %1502 = vmatprep.subr.mxu0 0.0
          %1503 = vmatpush1.msra.mxu0 0.0
          %1504 = vmatprep.subr.mxu0 0.0
          %1505 = vmatpush1.msra.mxu0 0.0
          %1506 = vmatprep.subr.mxu0 0.0
          %1507 = vmatpush1.msra.mxu0 0.0
          %1508 = vmatprep.subr.mxu0 0.0
          %1509 = vmatpush1.msra.mxu0 0.0
          %1510 = vmatprep.subr.mxu0 0.0
          %1511 = vmatpush1.msra.mxu0 0.0
          %1512 = vmatprep.subr.mxu0 0.0
          %1513 = vmatpush1.msra.mxu0 0.0
          %1514 = vmatprep.subr.mxu0 0.0
          %1515 = vmatpush1.msra.mxu0 0.0
          %1516 = vmatprep.subr.mxu0 0.0
          %1517 = vmatpush1.msra.mxu0 0.0
          %1518 = vmatprep.subr.mxu0 0.0
          %1519 = vmatpush1.msra.mxu0 0.0
          %1520 = vmatprep.subr.mxu0 0.0
          %1521 = vmatpush1.msra.mxu0 0.0
          %1522 = vmatprep.subr.mxu0 0.0
          %1523 = vmatpush1.msra.mxu0 0.0
          %1524 = vmatprep.subr.mxu0 0.0
          %1525 = vmatpush1.msra.mxu0 0.0
          %1526 = vmatprep.subr.mxu0 0.0
          %1527 = vmatpush1.msra.mxu0 0.0
          %1528 = vmatprep.subr.mxu0 0.0
          %1529 = vmatpush1.msra.mxu0 0.0
          %1530 = vmatprep.subr.mxu0 0.0
          %1531 = vmatpush1.msra.mxu0 0.0
          %1532 = vmatprep.subr.mxu0 0.0
          %1533 = vmatpush1.msra.mxu0 0.0
          %1534 = vmatprep.subr.mxu0 0.0
          %1535 = vmatpush1.msra.mxu0 0.0
          %1536 = vmatprep.subr.mxu0 0.0
          %1537 = vmatpush1.msra.mxu0 0.0
          %1538 = vmatprep.subr.mxu0 0.0
          %1539 = vmatpush1.msra.mxu0 0.0
          %1540 = vmatprep.subr.mxu0 0.0
          %1541 = vmatpush1.msra.mxu0 0.0
          %1542 = vmatprep.subr.mxu0 0.0
          %1543 = vmatpush1.msra.mxu0 0.0
          %1544 = vmatprep.subr.mxu0 0.0
          %1545 = vmatpush1.msra.mxu0 0.0
          %1546 = vmatprep.subr.mxu0 0.0
          %1547 = vmatpush1.msra.mxu0 0.0
          %1548 = vmatprep.subr.mxu0 0.0
          %1549 = vmatpush1.msra.mxu0 0.0
          %1550 = vmatprep.subr.mxu0 0.0
          %1551 = vmatpush1.msra.mxu0 0.0
          %1552 = vmatprep.subr.mxu0 0.0
          %1553 = vmatpush1.msra.mxu0 0.0
          %1554 = vmatprep.subr.mxu0 0.0
          %1555 = vmatpush1.msra.mxu0 0.0
          %1556 = vmatprep.subr.mxu0 0.0
          %1557 = vmatpush1.msra.mxu0 0.0
          %1558 = vmatprep.subr.mxu0 0.0
          %1559 = vmatpush1.msra.mxu0 0.0
          %1560 = vmatprep.subr.mxu0 0.0
          %1561 = vmatpush1.msra.mxu0 0.0
          %1562 = vmatprep.mubr.f32.mxu0 0.0
          %1563 = vmatmul.mubr.f32.gmra.mrb[0].mxu0 %v529
          %v1564 = vpop.f32.mrb[0].mxu0
          %v1565 = vadd.f32 0.0, %v1564
          %v1566 = vpop.f32.mrb[0].mxu0
          %1567 = vmatprep.mubr.f32.mxu0 0.0
          %1568 = vmatmul.mubr.f32.gmra.mrb[0].mxu0 %v532
          %v1569 = vpop.f32.mrb[0].mxu0
          %v1570 = vadd.f32 0.0, %v1569
          %v1571 = vpop.f32.mrb[0].mxu0
          %1572 = vdwg.mxu0
          %v1574 = vsel %vm527, %v1565, 0
          %v1577 = vsel %vm527, %v1570, 0
          %1579 = vmatprep.subr.mxu0 0.0
          %1580 = vmatpush1.msra.mxu0 %v501
          %1581 = vmatprep.subr.mxu0 0.0
          %1582 = vmatpush1.msra.mxu0 %v502
          %1583 = vmatprep.subr.mxu0 0.0
          %1584 = vmatpush1.msra.mxu0 0.0
          %1585 = vmatprep.subr.mxu0 0.0
          %1586 = vmatpush1.msra.mxu0 0.0
          %1587 = vmatprep.subr.mxu0 0.0
          %1588 = vmatpush1.msra.mxu0 0.0
          %1589 = vmatprep.subr.mxu0 0.0
          %1590 = vmatpush1.msra.mxu0 0.0
          %1591 = vmatprep.subr.mxu0 0.0
          %1592 = vmatpush1.msra.mxu0 0.0
          %1593 = vmatprep.subr.mxu0 0.0
          %1594 = vmatpush1.msra.mxu0 0.0
          %1595 = vmatprep.subr.mxu0 0.0
          %1596 = vmatpush1.msra.mxu0 0.0
          %1597 = vmatprep.subr.mxu0 0.0
          %1598 = vmatpush1.msra.mxu0 0.0
          %1599 = vmatprep.subr.mxu0 0.0
          %1600 = vmatpush1.msra.mxu0 0.0
          %1601 = vmatprep.subr.mxu0 0.0
          %1602 = vmatpush1.msra.mxu0 0.0
          %1603 = vmatprep.subr.mxu0 0.0
          %1604 = vmatpush1.msra.mxu0 0.0
          %1605 = vmatprep.subr.mxu0 0.0
          %1606 = vmatpush1.msra.mxu0 0.0
          %1607 = vmatprep.subr.mxu0 0.0
          %1608 = vmatpush1.msra.mxu0 0.0
          %1609 = vmatprep.subr.mxu0 0.0
          %1610 = vmatpush1.msra.mxu0 0.0
          %1611 = vmatprep.subr.mxu0 0.0
          %1612 = vmatpush1.msra.mxu0 0.0
          %1613 = vmatprep.subr.mxu0 0.0
          %1614 = vmatpush1.msra.mxu0 0.0
          %1615 = vmatprep.subr.mxu0 0.0
          %1616 = vmatpush1.msra.mxu0 0.0
          %1617 = vmatprep.subr.mxu0 0.0
          %1618 = vmatpush1.msra.mxu0 0.0
          %1619 = vmatprep.subr.mxu0 0.0
          %1620 = vmatpush1.msra.mxu0 0.0
          %1621 = vmatprep.subr.mxu0 0.0
          %1622 = vmatpush1.msra.mxu0 0.0
          %1623 = vmatprep.subr.mxu0 0.0
          %1624 = vmatpush1.msra.mxu0 0.0
          %1625 = vmatprep.subr.mxu0 0.0
          %1626 = vmatpush1.msra.mxu0 0.0
          %1627 = vmatprep.subr.mxu0 0.0
          %1628 = vmatpush1.msra.mxu0 0.0
          %1629 = vmatprep.subr.mxu0 0.0
          %1630 = vmatpush1.msra.mxu0 0.0
          %1631 = vmatprep.subr.mxu0 0.0
          %1632 = vmatpush1.msra.mxu0 0.0
          %1633 = vmatprep.subr.mxu0 0.0
          %1634 = vmatpush1.msra.mxu0 0.0
          %1635 = vmatprep.subr.mxu0 0.0
          %1636 = vmatpush1.msra.mxu0 0.0
          %1637 = vmatprep.subr.mxu0 0.0
          %1638 = vmatpush1.msra.mxu0 0.0
          %1639 = vmatprep.subr.mxu0 0.0
          %1640 = vmatpush1.msra.mxu0 0.0
          %1641 = vmatprep.subr.mxu0 0.0
          %1642 = vmatpush1.msra.mxu0 0.0
          %1643 = vmatprep.mubr.f32.mxu0 0.0
          %1644 = vmatmul.mubr.f32.gmra.mrb[0].mxu0 %v1574
          %v1645 = vpop.f32.mrb[0].mxu0
          %v1646 = vadd.f32 0.0, %v1645
          %v1647 = vpop.f32.mrb[0].mxu0
          %1648 = vmatprep.mubr.f32.mxu0 0.0
          %1649 = vmatmul.mubr.f32.gmra.mrb[0].mxu0 %v1577
          %v1650 = vpop.f32.mrb[0].mxu0
          %v1651 = vadd.f32 0.0, %v1650
          %v1652 = vpop.f32.mrb[0].mxu0
          %1653 = vdwg.mxu0
          %v1654 = vmul.f32 %v1332, %v1488
          %v1655 = vmul.f32 %v1337, %v1493
          %v1656 = vsub.f32 %v1646, %v1654
          %v1657 = vsub.f32 %v1651, %v1655
          %v1658 = vmul.f32 %v506, %v506
          %v1659 = vmul.f32 %v507, %v507
          %1660 = vmatprep.subr.mxu0 0.0
          %1661 = vmatpush1.msra.mxu0 %v1658
          %1662 = vmatprep.subr.mxu0 0.0
          %1663 = vmatpush1.msra.mxu0 %v1659
          %1664 = vmatprep.subr.mxu0 0.0
          %1665 = vmatpush1.msra.mxu0 0.0
          %1666 = vmatprep.subr.mxu0 0.0
          %1667 = vmatpush1.msra.mxu0 0.0
          %1668 = vmatprep.subr.mxu0 0.0
          %1669 = vmatpush1.msra.mxu0 0.0
          %1670 = vmatprep.subr.mxu0 0.0
          %1671 = vmatpush1.msra.mxu0 0.0
          %1672 = vmatprep.subr.mxu0 0.0
          %1673 = vmatpush1.msra.mxu0 0.0
          %1674 = vmatprep.subr.mxu0 0.0
          %1675 = vmatpush1.msra.mxu0 0.0
          %1676 = vmatprep.subr.mxu0 0.0
          %1677 = vmatpush1.msra.mxu0 0.0
          %1678 = vmatprep.subr.mxu0 0.0
          %1679 = vmatpush1.msra.mxu0 0.0
          %1680 = vmatprep.subr.mxu0 0.0
          %1681 = vmatpush1.msra.mxu0 0.0
          %1682 = vmatprep.subr.mxu0 0.0
          %1683 = vmatpush1.msra.mxu0 0.0
          %1684 = vmatprep.subr.mxu0 0.0
          %1685 = vmatpush1.msra.mxu0 0.0
          %1686 = vmatprep.subr.mxu0 0.0
          %1687 = vmatpush1.msra.mxu0 0.0
          %1688 = vmatprep.subr.mxu0 0.0
          %1689 = vmatpush1.msra.mxu0 0.0
          %1690 = vmatprep.subr.mxu0 0.0
          %1691 = vmatpush1.msra.mxu0 0.0
          %1692 = vmatprep.subr.mxu0 0.0
          %1693 = vmatpush1.msra.mxu0 0.0
          %1694 = vmatprep.subr.mxu0 0.0
          %1695 = vmatpush1.msra.mxu0 0.0
          %1696 = vmatprep.subr.mxu0 0.0
          %1697 = vmatpush1.msra.mxu0 0.0
          %1698 = vmatprep.subr.mxu0 0.0
          %1699 = vmatpush1.msra.mxu0 0.0
          %1700 = vmatprep.subr.mxu0 0.0
          %1701 = vmatpush1.msra.mxu0 0.0
          %1702 = vmatprep.subr.mxu0 0.0
          %1703 = vmatpush1.msra.mxu0 0.0
          %1704 = vmatprep.subr.mxu0 0.0
          %1705 = vmatpush1.msra.mxu0 0.0
          %1706 = vmatprep.subr.mxu0 0.0
          %1707 = vmatpush1.msra.mxu0 0.0
          %1708 = vmatprep.subr.mxu0 0.0
          %1709 = vmatpush1.msra.mxu0 0.0
          %1710 = vmatprep.subr.mxu0 0.0
          %1711 = vmatpush1.msra.mxu0 0.0
          %1712 = vmatprep.subr.mxu0 0.0
          %1713 = vmatpush1.msra.mxu0 0.0
          %1714 = vmatprep.subr.mxu0 0.0
          %1715 = vmatpush1.msra.mxu0 0.0
          %1716 = vmatprep.subr.mxu0 0.0
          %1717 = vmatpush1.msra.mxu0 0.0
          %1718 = vmatprep.subr.mxu0 0.0
          %1719 = vmatpush1.msra.mxu0 0.0
          %1720 = vmatprep.subr.mxu0 0.0
          %1721 = vmatpush1.msra.mxu0 0.0
          %1722 = vmatprep.subr.mxu0 0.0
          %1723 = vmatpush1.msra.mxu0 0.0
          %1724 = vmatprep.mubr.f32.mxu0 0.0
          %1725 = vmatmul.mubr.f32.gmra.mrb[0].mxu0 %v529
          %v1726 = vpop.f32.mrb[0].mxu0
          %v1727 = vadd.f32 0.0, %v1726
          %v1728 = vpop.f32.mrb[0].mxu0
          %1729 = vmatprep.mubr.f32.mxu0 0.0
          %1730 = vmatmul.mubr.f32.gmra.mrb[0].mxu0 %v532
          %v1731 = vpop.f32.mrb[0].mxu0
          %v1732 = vadd.f32 0.0, %v1731
          %v1733 = vpop.f32.mrb[0].mxu0
          %1734 = vdwg.mxu0
          %v1736 = vsel %vm527, %v1727, 0
          %v1739 = vsel %vm527, %v1732, 0
          %1741 = vmatprep.subr.mxu0 0.0
          %1742 = vmatpush1.msra.mxu0 %v501
          %1743 = vmatprep.subr.mxu0 0.0
          %1744 = vmatpush1.msra.mxu0 %v502
          %1745 = vmatprep.subr.mxu0 0.0
          %1746 = vmatpush1.msra.mxu0 0.0
          %1747 = vmatprep.subr.mxu0 0.0
          %1748 = vmatpush1.msra.mxu0 0.0
          %1749 = vmatprep.subr.mxu0 0.0
          %1750 = vmatpush1.msra.mxu0 0.0
          %1751 = vmatprep.subr.mxu0 0.0
          %1752 = vmatpush1.msra.mxu0 0.0
          %1753 = vmatprep.subr.mxu0 0.0
          %1754 = vmatpush1.msra.mxu0 0.0
          %1755 = vmatprep.subr.mxu0 0.0
          %1756 = vmatpush1.msra.mxu0 0.0
          %1757 = vmatprep.subr.mxu0 0.0
          %1758 = vmatpush1.msra.mxu0 0.0
          %1759 = vmatprep.subr.mxu0 0.0
          %1760 = vmatpush1.msra.mxu0 0.0
          %1761 = vmatprep.subr.mxu0 0.0
          %1762 = vmatpush1.msra.mxu0 0.0
          %1763 = vmatprep.subr.mxu0 0.0
          %1764 = vmatpush1.msra.mxu0 0.0
          %1765 = vmatprep.subr.mxu0 0.0
          %1766 = vmatpush1.msra.mxu0 0.0
          %1767 = vmatprep.subr.mxu0 0.0
          %1768 = vmatpush1.msra.mxu0 0.0
          %1769 = vmatprep.subr.mxu0 0.0
          %1770 = vmatpush1.msra.mxu0 0.0
          %1771 = vmatprep.subr.mxu0 0.0
          %1772 = vmatpush1.msra.mxu0 0.0
          %1773 = vmatprep.subr.mxu0 0.0
          %1774 = vmatpush1.msra.mxu0 0.0
          %1775 = vmatprep.subr.mxu0 0.0
          %1776 = vmatpush1.msra.mxu0 0.0
          %1777 = vmatprep.subr.mxu0 0.0
          %1778 = vmatpush1.msra.mxu0 0.0
          %1779 = vmatprep.subr.mxu0 0.0
          %1780 = vmatpush1.msra.mxu0 0.0
          %1781 = vmatprep.subr.mxu0 0.0
          %1782 = vmatpush1.msra.mxu0 0.0
          %1783 = vmatprep.subr.mxu0 0.0
          %1784 = vmatpush1.msra.mxu0 0.0
          %1785 = vmatprep.subr.mxu0 0.0
          %1786 = vmatpush1.msra.mxu0 0.0
          %1787 = vmatprep.subr.mxu0 0.0
          %1788 = vmatpush1.msra.mxu0 0.0
          %1789 = vmatprep.subr.mxu0 0.0
          %1790 = vmatpush1.msra.mxu0 0.0
          %1791 = vmatprep.subr.mxu0 0.0
          %1792 = vmatpush1.msra.mxu0 0.0
          %1793 = vmatprep.subr.mxu0 0.0
          %1794 = vmatpush1.msra.mxu0 0.0
          %1795 = vmatprep.subr.mxu0 0.0
          %1796 = vmatpush1.msra.mxu0 0.0
          %1797 = vmatprep.subr.mxu0 0.0
          %1798 = vmatpush1.msra.mxu0 0.0
          %1799 = vmatprep.subr.mxu0 0.0
          %1800 = vmatpush1.msra.mxu0 0.0
          %1801 = vmatprep.subr.mxu0 0.0
          %1802 = vmatpush1.msra.mxu0 0.0
          %1803 = vmatprep.subr.mxu0 0.0
          %1804 = vmatpush1.msra.mxu0 0.0
          %1805 = vmatprep.mubr.f32.mxu0 0.0
          %1806 = vmatmul.mubr.f32.gmra.mrb[0].mxu0 %v1736
          %v1807 = vpop.f32.mrb[0].mxu0
          %v1808 = vadd.f32 0.0, %v1807
          %v1809 = vpop.f32.mrb[0].mxu0
          %1810 = vmatprep.mubr.f32.mxu0 0.0
          %1811 = vmatmul.mubr.f32.gmra.mrb[0].mxu0 %v1739
          %v1812 = vpop.f32.mrb[0].mxu0
          %v1813 = vadd.f32 0.0, %v1812
          %v1814 = vpop.f32.mrb[0].mxu0
          %1815 = vdwg.mxu0
          %v1816 = vmul.f32 %v1332, %v1332
          %v1817 = vmul.f32 %v1337, %v1337
          %v1818 = vsub.f32 %v1808, %v1816
          %v1819 = vsub.f32 %v1813, %v1817
          %v1820 = vadd.f32 %v1818, 1e-05
          %v1821 = vadd.f32 %v1819, 1e-05
          %v1822 = vrcp.pop %v1820
          %v1823 = vrcp.pop %v1821
          %v1824 = vmul.f32 %v1656, %v1822
          %v1825 = vmul.f32 %v1657, %v1823
          %s1826 = scalar_lea.vmem [#allocation2], 16
          %1827 = vst.msk [vmem:[%s1826] sm:$0xff] %vm527, %v1824
          %1828 = vst.msk [vmem:[%s1826 + $0x8] sm:$0xff] %vm527, %v1825
          %v1829 = vmul.f32 %v1824, %v1332
          %v1830 = vmul.f32 %v1825, %v1337
          %v1831 = vsub.f32 %v1488, %v1829
          %v1832 = vsub.f32 %v1493, %v1830
          %s1833 = scalar_lea.vmem [#allocation3], 16
          %1834 = vst.msk [vmem:[%s1833] sm:$0xff] %vm527, %v1831
          %1835 = vst.msk [vmem:[%s1833 + $0x8] sm:$0xff] %vm527, %v1832
          %1836 = vmatprep.subr.mxu0 0.0
          %1837 = vmatpush1.msra.mxu0 %v509
          %1838 = vmatprep.subr.mxu0 0.0
          %1839 = vmatpush1.msra.mxu0 %v510
          %1840 = vmatprep.subr.mxu0 0.0
          %1841 = vmatpush1.msra.mxu0 0.0
          %1842 = vmatprep.subr.mxu0 0.0
          %1843 = vmatpush1.msra.mxu0 0.0
          %1844 = vmatprep.subr.mxu0 0.0
          %1845 = vmatpush1.msra.mxu0 0.0
          %1846 = vmatprep.subr.mxu0 0.0
          %1847 = vmatpush1.msra.mxu0 0.0
          %1848 = vmatprep.subr.mxu0 0.0
          %1849 = vmatpush1.msra.mxu0 0.0
          %1850 = vmatprep.subr.mxu0 0.0
          %1851 = vmatpush1.msra.mxu0 0.0
          %1852 = vmatprep.subr.mxu0 0.0
          %1853 = vmatpush1.msra.mxu0 0.0
          %1854 = vmatprep.subr.mxu0 0.0
          %1855 = vmatpush1.msra.mxu0 0.0
          %1856 = vmatprep.subr.mxu0 0.0
          %1857 = vmatpush1.msra.mxu0 0.0
          %1858 = vmatprep.subr.mxu0 0.0
          %1859 = vmatpush1.msra.mxu0 0.0
          %1860 = vmatprep.subr.mxu0 0.0
          %1861 = vmatpush1.msra.mxu0 0.0
          %1862 = vmatprep.subr.mxu0 0.0
          %1863 = vmatpush1.msra.mxu0 0.0
          %1864 = vmatprep.subr.mxu0 0.0
          %1865 = vmatpush1.msra.mxu0 0.0
          %1866 = vmatprep.subr.mxu0 0.0
          %1867 = vmatpush1.msra.mxu0 0.0
          %1868 = vmatprep.subr.mxu0 0.0
          %1869 = vmatpush1.msra.mxu0 0.0
          %1870 = vmatprep.subr.mxu0 0.0
          %1871 = vmatpush1.msra.mxu0 0.0
          %1872 = vmatprep.subr.mxu0 0.0
          %1873 = vmatpush1.msra.mxu0 0.0
          %1874 = vmatprep.subr.mxu0 0.0
          %1875 = vmatpush1.msra.mxu0 0.0
          %1876 = vmatprep.subr.mxu0 0.0
          %1877 = vmatpush1.msra.mxu0 0.0
          %1878 = vmatprep.subr.mxu0 0.0
          %1879 = vmatpush1.msra.mxu0 0.0
          %1880 = vmatprep.subr.mxu0 0.0
          %1881 = vmatpush1.msra.mxu0 0.0
          %1882 = vmatprep.subr.mxu0 0.0
          %1883 = vmatpush1.msra.mxu0 0.0
          %1884 = vmatprep.subr.mxu0 0.0
          %1885 = vmatpush1.msra.mxu0 0.0
          %1886 = vmatprep.subr.mxu0 0.0
          %1887 = vmatpush1.msra.mxu0 0.0
          %1888 = vmatprep.subr.mxu0 0.0
          %1889 = vmatpush1.msra.mxu0 0.0
          %1890 = vmatprep.subr.mxu0 0.0
          %1891 = vmatpush1.msra.mxu0 0.0
          %1892 = vmatprep.subr.mxu0 0.0
          %1893 = vmatpush1.msra.mxu0 0.0
          %1894 = vmatprep.subr.mxu0 0.0
          %1895 = vmatpush1.msra.mxu0 0.0
          %1896 = vmatprep.subr.mxu0 0.0
          %1897 = vmatpush1.msra.mxu0 0.0
          %1898 = vmatprep.subr.mxu0 0.0
          %1899 = vmatpush1.msra.mxu0 0.0
          %1900 = vmatprep.mubr.f32.mxu0 0.0
          %1901 = vmatmul.mubr.f32.gmra.mrb[0].mxu0 %v529
          %v1902 = vpop.f32.mrb[0].mxu0
          %v1903 = vadd.f32 0.0, %v1902
          %v1904 = vpop.f32.mrb[0].mxu0
          %1905 = vmatprep.mubr.f32.mxu0 0.0
          %1906 = vmatmul.mubr.f32.gmra.mrb[0].mxu0 %v532
          %v1907 = vpop.f32.mrb[0].mxu0
          %v1908 = vadd.f32 0.0, %v1907
          %v1909 = vpop.f32.mrb[0].mxu0
          %1910 = vdwg.mxu0
          %v1912 = vsel %vm527, %v1903, 0
          %v1915 = vsel %vm527, %v1908, 0
          %1917 = vmatprep.subr.mxu0 0.0
          %1918 = vmatpush1.msra.mxu0 %v501
          %1919 = vmatprep.subr.mxu0 0.0
          %1920 = vmatpush1.msra.mxu0 %v502
          %1921 = vmatprep.subr.mxu0 0.0
          %1922 = vmatpush1.msra.mxu0 0.0
          %1923 = vmatprep.subr.mxu0 0.0
          %1924 = vmatpush1.msra.mxu0 0.0
          %1925 = vmatprep.subr.mxu0 0.0
          %1926 = vmatpush1.msra.mxu0 0.0
          %1927 = vmatprep.subr.mxu0 0.0
          %1928 = vmatpush1.msra.mxu0 0.0
          %1929 = vmatprep.subr.mxu0 0.0
          %1930 = vmatpush1.msra.mxu0 0.0
          %1931 = vmatprep.subr.mxu0 0.0
          %1932 = vmatpush1.msra.mxu0 0.0
          %1933 = vmatprep.subr.mxu0 0.0
          %1934 = vmatpush1.msra.mxu0 0.0
          %1935 = vmatprep.subr.mxu0 0.0
          %1936 = vmatpush1.msra.mxu0 0.0
          %1937 = vmatprep.subr.mxu0 0.0
          %1938 = vmatpush1.msra.mxu0 0.0
          %1939 = vmatprep.subr.mxu0 0.0
          %1940 = vmatpush1.msra.mxu0 0.0
          %1941 = vmatprep.subr.mxu0 0.0
          %1942 = vmatpush1.msra.mxu0 0.0
          %1943 = vmatprep.subr.mxu0 0.0
          %1944 = vmatpush1.msra.mxu0 0.0
          %1945 = vmatprep.subr.mxu0 0.0
          %1946 = vmatpush1.msra.mxu0 0.0
          %1947 = vmatprep.subr.mxu0 0.0
          %1948 = vmatpush1.msra.mxu0 0.0
          %1949 = vmatprep.subr.mxu0 0.0
          %1950 = vmatpush1.msra.mxu0 0.0
          %1951 = vmatprep.subr.mxu0 0.0
          %1952 = vmatpush1.msra.mxu0 0.0
          %1953 = vmatprep.subr.mxu0 0.0
          %1954 = vmatpush1.msra.mxu0 0.0
          %1955 = vmatprep.subr.mxu0 0.0
          %1956 = vmatpush1.msra.mxu0 0.0
          %1957 = vmatprep.subr.mxu0 0.0
          %1958 = vmatpush1.msra.mxu0 0.0
          %1959 = vmatprep.subr.mxu0 0.0
          %1960 = vmatpush1.msra.mxu0 0.0
          %1961 = vmatprep.subr.mxu0 0.0
          %1962 = vmatpush1.msra.mxu0 0.0
          %1963 = vmatprep.subr.mxu0 0.0
          %1964 = vmatpush1.msra.mxu0 0.0
          %1965 = vmatprep.subr.mxu0 0.0
          %1966 = vmatpush1.msra.mxu0 0.0
          %1967 = vmatprep.subr.mxu0 0.0
          %1968 = vmatpush1.msra.mxu0 0.0
          %1969 = vmatprep.subr.mxu0 0.0
          %1970 = vmatpush1.msra.mxu0 0.0
          %1971 = vmatprep.subr.mxu0 0.0
          %1972 = vmatpush1.msra.mxu0 0.0
          %1973 = vmatprep.subr.mxu0 0.0
          %1974 = vmatpush1.msra.mxu0 0.0
          %1975 = vmatprep.subr.mxu0 0.0
          %1976 = vmatpush1.msra.mxu0 0.0
          %1977 = vmatprep.subr.mxu0 0.0
          %1978 = vmatpush1.msra.mxu0 0.0
          %1979 = vmatprep.subr.mxu0 0.0
          %1980 = vmatpush1.msra.mxu0 0.0
          %1981 = vmatprep.mubr.f32.mxu0 0.0
          %1982 = vmatmul.mubr.f32.gmra.mrb[0].mxu0 %v1912
          %v1983 = vpop.f32.mrb[0].mxu0
          %v1984 = vadd.f32 0.0, %v1983
          %v1985 = vpop.f32.mrb[0].mxu0
          %1986 = vmatprep.mubr.f32.mxu0 0.0
          %1987 = vmatmul.mubr.f32.gmra.mrb[0].mxu0 %v1915
          %v1988 = vpop.f32.mrb[0].mxu0
          %v1989 = vadd.f32 0.0, %v1988
          %v1990 = vpop.f32.mrb[0].mxu0
          %1991 = vdwg.mxu0
          %1992 = vmatprep.subr.mxu0 0.0
          %1993 = vmatpush1.msra.mxu0 %v523
          %1994 = vmatprep.subr.mxu0 0.0
          %1995 = vmatpush1.msra.mxu0 %v524
          %1996 = vmatprep.subr.mxu0 0.0
          %1997 = vmatpush1.msra.mxu0 0.0
          %1998 = vmatprep.subr.mxu0 0.0
          %1999 = vmatpush1.msra.mxu0 0.0
          %2000 = vmatprep.subr.mxu0 0.0
          %2001 = vmatpush1.msra.mxu0 0.0
          %2002 = vmatprep.subr.mxu0 0.0
          %2003 = vmatpush1.msra.mxu0 0.0
          %2004 = vmatprep.subr.mxu0 0.0
          %2005 = vmatpush1.msra.mxu0 0.0
          %2006 = vmatprep.subr.mxu0 0.0
          %2007 = vmatpush1.msra.mxu0 0.0
          %2008 = vmatprep.subr.mxu0 0.0
          %2009 = vmatpush1.msra.mxu0 0.0
          %2010 = vmatprep.subr.mxu0 0.0
          %2011 = vmatpush1.msra.mxu0 0.0
          %2012 = vmatprep.subr.mxu0 0.0
          %2013 = vmatpush1.msra.mxu0 0.0
          %2014 = vmatprep.subr.mxu0 0.0
          %2015 = vmatpush1.msra.mxu0 0.0
          %2016 = vmatprep.subr.mxu0 0.0
          %2017 = vmatpush1.msra.mxu0 0.0
          %2018 = vmatprep.subr.mxu0 0.0
          %2019 = vmatpush1.msra.mxu0 0.0
          %2020 = vmatprep.subr.mxu0 0.0
          %2021 = vmatpush1.msra.mxu0 0.0
          %2022 = vmatprep.subr.mxu0 0.0
          %2023 = vmatpush1.msra.mxu0 0.0
          %2024 = vmatprep.subr.mxu0 0.0
          %2025 = vmatpush1.msra.mxu0 0.0
          %2026 = vmatprep.subr.mxu0 0.0
          %2027 = vmatpush1.msra.mxu0 0.0
          %2028 = vmatprep.subr.mxu0 0.0
          %2029 = vmatpush1.msra.mxu0 0.0
          %2030 = vmatprep.subr.mxu0 0.0
          %2031 = vmatpush1.msra.mxu0 0.0
          %2032 = vmatprep.subr.mxu0 0.0
          %2033 = vmatpush1.msra.mxu0 0.0
          %2034 = vmatprep.subr.mxu0 0.0
          %2035 = vmatpush1.msra.mxu0 0.0
          %2036 = vmatprep.subr.mxu0 0.0
          %2037 = vmatpush1.msra.mxu0 0.0
          %2038 = vmatprep.subr.mxu0 0.0
          %2039 = vmatpush1.msra.mxu0 0.0
          %2040 = vmatprep.subr.mxu0 0.0
          %2041 = vmatpush1.msra.mxu0 0.0
          %2042 = vmatprep.subr.mxu0 0.0
          %2043 = vmatpush1.msra.mxu0 0.0
          %2044 = vmatprep.subr.mxu0 0.0
          %2045 = vmatpush1.msra.mxu0 0.0
          %2046 = vmatprep.subr.mxu0 0.0
          %2047 = vmatpush1.msra.mxu0 0.0
          %2048 = vmatprep.subr.mxu0 0.0
          %2049 = vmatpush1.msra.mxu0 0.0
          %2050 = vmatprep.subr.mxu0 0.0
          %2051 = vmatpush1.msra.mxu0 0.0
          %2052 = vmatprep.subr.mxu0 0.0
          %2053 = vmatpush1.msra.mxu0 0.0
          %2054 = vmatprep.subr.mxu0 0.0
          %2055 = vmatpush1.msra.mxu0 0.0
          %2056 = vmatprep.mubr.f32.mxu0 0.0
          %2057 = vmatmul.mubr.f32.gmra.mrb[0].mxu0 %v529
          %v2058 = vpop.f32.mrb[0].mxu0
          %v2059 = vadd.f32 0.0, %v2058
          %v2060 = vpop.f32.mrb[0].mxu0
          %2061 = vmatprep.mubr.f32.mxu0 0.0
          %2062 = vmatmul.mubr.f32.gmra.mrb[0].mxu0 %v532
          %v2063 = vpop.f32.mrb[0].mxu0
          %v2064 = vadd.f32 0.0, %v2063
          %v2065 = vpop.f32.mrb[0].mxu0
          %2066 = vdwg.mxu0
          %v2068 = vsel %vm527, %v2059, 0
          %v2071 = vsel %vm527, %v2064, 0
          %2073 = vmatprep.subr.mxu0 0.0
          %2074 = vmatpush1.msra.mxu0 %v501
          %2075 = vmatprep.subr.mxu0 0.0
          %2076 = vmatpush1.msra.mxu0 %v502
          %2077 = vmatprep.subr.mxu0 0.0
          %2078 = vmatpush1.msra.mxu0 0.0
          %2079 = vmatprep.subr.mxu0 0.0
          %2080 = vmatpush1.msra.mxu0 0.0
          %2081 = vmatprep.subr.mxu0 0.0
          %2082 = vmatpush1.msra.mxu0 0.0
          %2083 = vmatprep.subr.mxu0 0.0
          %2084 = vmatpush1.msra.mxu0 0.0
          %2085 = vmatprep.subr.mxu0 0.0
          %2086 = vmatpush1.msra.mxu0 0.0
          %2087 = vmatprep.subr.mxu0 0.0
          %2088 = vmatpush1.msra.mxu0 0.0
          %2089 = vmatprep.subr.mxu0 0.0
          %2090 = vmatpush1.msra.mxu0 0.0
          %2091 = vmatprep.subr.mxu0 0.0
          %2092 = vmatpush1.msra.mxu0 0.0
          %2093 = vmatprep.subr.mxu0 0.0
          %2094 = vmatpush1.msra.mxu0 0.0
          %2095 = vmatprep.subr.mxu0 0.0
          %2096 = vmatpush1.msra.mxu0 0.0
          %2097 = vmatprep.subr.mxu0 0.0
          %2098 = vmatpush1.msra.mxu0 0.0
          %2099 = vmatprep.subr.mxu0 0.0
          %2100 = vmatpush1.msra.mxu0 0.0
          %2101 = vmatprep.subr.mxu0 0.0
          %2102 = vmatpush1.msra.mxu0 0.0
          %2103 = vmatprep.subr.mxu0 0.0
          %2104 = vmatpush1.msra.mxu0 0.0
          %2105 = vmatprep.subr.mxu0 0.0
          %2106 = vmatpush1.msra.mxu0 0.0
          %2107 = vmatprep.subr.mxu0 0.0
          %2108 = vmatpush1.msra.mxu0 0.0
          %2109 = vmatprep.subr.mxu0 0.0
          %2110 = vmatpush1.msra.mxu0 0.0
          %2111 = vmatprep.subr.mxu0 0.0
          %2112 = vmatpush1.msra.mxu0 0.0
          %2113 = vmatprep.subr.mxu0 0.0
          %2114 = vmatpush1.msra.mxu0 0.0
          %2115 = vmatprep.subr.mxu0 0.0
          %2116 = vmatpush1.msra.mxu0 0.0
          %2117 = vmatprep.subr.mxu0 0.0
          %2118 = vmatpush1.msra.mxu0 0.0
          %2119 = vmatprep.subr.mxu0 0.0
          %2120 = vmatpush1.msra.mxu0 0.0
          %2121 = vmatprep.subr.mxu0 0.0
          %2122 = vmatpush1.msra.mxu0 0.0
          %2123 = vmatprep.subr.mxu0 0.0
          %2124 = vmatpush1.msra.mxu0 0.0
          %2125 = vmatprep.subr.mxu0 0.0
          %2126 = vmatpush1.msra.mxu0 0.0
          %2127 = vmatprep.subr.mxu0 0.0
          %2128 = vmatpush1.msra.mxu0 0.0
          %2129 = vmatprep.subr.mxu0 0.0
          %2130 = vmatpush1.msra.mxu0 0.0
          %2131 = vmatprep.subr.mxu0 0.0
          %2132 = vmatpush1.msra.mxu0 0.0
          %2133 = vmatprep.subr.mxu0 0.0
          %2134 = vmatpush1.msra.mxu0 0.0
          %2135 = vmatprep.subr.mxu0 0.0
          %2136 = vmatpush1.msra.mxu0 0.0
          %2137 = vmatprep.mubr.f32.mxu0 0.0
          %2138 = vmatmul.mubr.f32.gmra.mrb[0].mxu0 %v2068
          %v2139 = vpop.f32.mrb[0].mxu0
          %v2140 = vadd.f32 0.0, %v2139
          %v2141 = vpop.f32.mrb[0].mxu0
          %2142 = vmatprep.mubr.f32.mxu0 0.0
          %2143 = vmatmul.mubr.f32.gmra.mrb[0].mxu0 %v2071
          %v2144 = vpop.f32.mrb[0].mxu0
          %v2145 = vadd.f32 0.0, %v2144
          %v2146 = vpop.f32.mrb[0].mxu0
          %2147 = vdwg.mxu0
          %v2148 = vmul.f32 %v509, %v523
          %v2149 = vmul.f32 %v510, %v524
          %2150 = vmatprep.subr.mxu0 0.0
          %2151 = vmatpush1.msra.mxu0 %v2148
          %2152 = vmatprep.subr.mxu0 0.0
          %2153 = vmatpush1.msra.mxu0 %v2149
          %2154 = vmatprep.subr.mxu0 0.0
          %2155 = vmatpush1.msra.mxu0 0.0
          %2156 = vmatprep.subr.mxu0 0.0
          %2157 = vmatpush1.msra.mxu0 0.0
          %2158 = vmatprep.subr.mxu0 0.0
          %2159 = vmatpush1.msra.mxu0 0.0
          %2160 = vmatprep.subr.mxu0 0.0
          %2161 = vmatpush1.msra.mxu0 0.0
          %2162 = vmatprep.subr.mxu0 0.0
          %2163 = vmatpush1.msra.mxu0 0.0
          %2164 = vmatprep.subr.mxu0 0.0
          %2165 = vmatpush1.msra.mxu0 0.0
          %2166 = vmatprep.subr.mxu0 0.0
          %2167 = vmatpush1.msra.mxu0 0.0
          %2168 = vmatprep.subr.mxu0 0.0
          %2169 = vmatpush1.msra.mxu0 0.0
          %2170 = vmatprep.subr.mxu0 0.0
          %2171 = vmatpush1.msra.mxu0 0.0
          %2172 = vmatprep.subr.mxu0 0.0
          %2173 = vmatpush1.msra.mxu0 0.0
          %2174 = vmatprep.subr.mxu0 0.0
          %2175 = vmatpush1.msra.mxu0 0.0
          %2176 = vmatprep.subr.mxu0 0.0
          %2177 = vmatpush1.msra.mxu0 0.0
          %2178 = vmatprep.subr.mxu0 0.0
          %2179 = vmatpush1.msra.mxu0 0.0
          %2180 = vmatprep.subr.mxu0 0.0
          %2181 = vmatpush1.msra.mxu0 0.0
          %2182 = vmatprep.subr.mxu0 0.0
          %2183 = vmatpush1.msra.mxu0 0.0
          %2184 = vmatprep.subr.mxu0 0.0
          %2185 = vmatpush1.msra.mxu0 0.0
          %2186 = vmatprep.subr.mxu0 0.0
          %2187 = vmatpush1.msra.mxu0 0.0
          %2188 = vmatprep.subr.mxu0 0.0
          %2189 = vmatpush1.msra.mxu0 0.0
          %2190 = vmatprep.subr.mxu0 0.0
          %2191 = vmatpush1.msra.mxu0 0.0
          %2192 = vmatprep.subr.mxu0 0.0
          %2193 = vmatpush1.msra.mxu0 0.0
          %2194 = vmatprep.subr.mxu0 0.0
          %2195 = vmatpush1.msra.mxu0 0.0
          %2196 = vmatprep.subr.mxu0 0.0
          %2197 = vmatpush1.msra.mxu0 0.0
          %2198 = vmatprep.subr.mxu0 0.0
          %2199 = vmatpush1.msra.mxu0 0.0
          %2200 = vmatprep.subr.mxu0 0.0
          %2201 = vmatpush1.msra.mxu0 0.0
          %2202 = vmatprep.subr.mxu0 0.0
          %2203 = vmatpush1.msra.mxu0 0.0
          %2204 = vmatprep.subr.mxu0 0.0
          %2205 = vmatpush1.msra.mxu0 0.0
          %2206 = vmatprep.subr.mxu0 0.0
          %2207 = vmatpush1.msra.mxu0 0.0
          %2208 = vmatprep.subr.mxu0 0.0
          %2209 = vmatpush1.msra.mxu0 0.0
          %2210 = vmatprep.subr.mxu0 0.0
          %2211 = vmatpush1.msra.mxu0 0.0
          %2212 = vmatprep.subr.mxu0 0.0
          %2213 = vmatpush1.msra.mxu0 0.0
          %2214 = vmatprep.mubr.f32.mxu0 0.0
          %2215 = vmatmul.mubr.f32.gmra.mrb[0].mxu0 %v529
          %v2216 = vpop.f32.mrb[0].mxu0
          %v2217 = vadd.f32 0.0, %v2216
          %v2218 = vpop.f32.mrb[0].mxu0
          %2219 = vmatprep.mubr.f32.mxu0 0.0
          %2220 = vmatmul.mubr.f32.gmra.mrb[0].mxu0 %v532
          %v2221 = vpop.f32.mrb[0].mxu0
          %v2222 = vadd.f32 0.0, %v2221
          %v2223 = vpop.f32.mrb[0].mxu0
          %2224 = vdwg.mxu0
          %v2226 = vsel %vm527, %v2217, 0
          %v2229 = vsel %vm527, %v2222, 0
          %2231 = vmatprep.subr.mxu0 0.0
          %2232 = vmatpush1.msra.mxu0 %v501
          %2233 = vmatprep.subr.mxu0 0.0
          %2234 = vmatpush1.msra.mxu0 %v502
          %2235 = vmatprep.subr.mxu0 0.0
          %2236 = vmatpush1.msra.mxu0 0.0
          %2237 = vmatprep.subr.mxu0 0.0
          %2238 = vmatpush1.msra.mxu0 0.0
          %2239 = vmatprep.subr.mxu0 0.0
          %2240 = vmatpush1.msra.mxu0 0.0
          %2241 = vmatprep.subr.mxu0 0.0
          %2242 = vmatpush1.msra.mxu0 0.0
          %2243 = vmatprep.subr.mxu0 0.0
          %2244 = vmatpush1.msra.mxu0 0.0
          %2245 = vmatprep.subr.mxu0 0.0
          %2246 = vmatpush1.msra.mxu0 0.0
          %2247 = vmatprep.subr.mxu0 0.0
          %2248 = vmatpush1.msra.mxu0 0.0
          %2249 = vmatprep.subr.mxu0 0.0
          %2250 = vmatpush1.msra.mxu0 0.0
          %2251 = vmatprep.subr.mxu0 0.0
          %2252 = vmatpush1.msra.mxu0 0.0
          %2253 = vmatprep.subr.mxu0 0.0
          %2254 = vmatpush1.msra.mxu0 0.0
          %2255 = vmatprep.subr.mxu0 0.0
          %2256 = vmatpush1.msra.mxu0 0.0
          %2257 = vmatprep.subr.mxu0 0.0
          %2258 = vmatpush1.msra.mxu0 0.0
          %2259 = vmatprep.subr.mxu0 0.0
          %2260 = vmatpush1.msra.mxu0 0.0
          %2261 = vmatprep.subr.mxu0 0.0
          %2262 = vmatpush1.msra.mxu0 0.0
          %2263 = vmatprep.subr.mxu0 0.0
          %2264 = vmatpush1.msra.mxu0 0.0
          %2265 = vmatprep.subr.mxu0 0.0
          %2266 = vmatpush1.msra.mxu0 0.0
          %2267 = vmatprep.subr.mxu0 0.0
          %2268 = vmatpush1.msra.mxu0 0.0
          %2269 = vmatprep.subr.mxu0 0.0
          %2270 = vmatpush1.msra.mxu0 0.0
          %2271 = vmatprep.subr.mxu0 0.0
          %2272 = vmatpush1.msra.mxu0 0.0
          %2273 = vmatprep.subr.mxu0 0.0
          %2274 = vmatpush1.msra.mxu0 0.0
          %2275 = vmatprep.subr.mxu0 0.0
          %2276 = vmatpush1.msra.mxu0 0.0
          %2277 = vmatprep.subr.mxu0 0.0
          %2278 = vmatpush1.msra.mxu0 0.0
          %2279 = vmatprep.subr.mxu0 0.0
          %2280 = vmatpush1.msra.mxu0 0.0
          %2281 = vmatprep.subr.mxu0 0.0
          %2282 = vmatpush1.msra.mxu0 0.0
          %2283 = vmatprep.subr.mxu0 0.0
          %2284 = vmatpush1.msra.mxu0 0.0
          %2285 = vmatprep.subr.mxu0 0.0
          %2286 = vmatpush1.msra.mxu0 0.0
          %2287 = vmatprep.subr.mxu0 0.0
          %2288 = vmatpush1.msra.mxu0 0.0
          %2289 = vmatprep.subr.mxu0 0.0
          %2290 = vmatpush1.msra.mxu0 0.0
          %2291 = vmatprep.subr.mxu0 0.0
          %2292 = vmatpush1.msra.mxu0 0.0
          %2293 = vmatprep.subr.mxu0 0.0
          %2294 = vmatpush1.msra.mxu0 0.0
          %2295 = vmatprep.mubr.f32.mxu0 0.0
          %2296 = vmatmul.mubr.f32.gmra.mrb[0].mxu0 %v2226
          %v2297 = vpop.f32.mrb[0].mxu0
          %v2298 = vadd.f32 0.0, %v2297
          %v2299 = vpop.f32.mrb[0].mxu0
          %2300 = vmatprep.mubr.f32.mxu0 0.0
          %2301 = vmatmul.mubr.f32.gmra.mrb[0].mxu0 %v2229
          %v2302 = vpop.f32.mrb[0].mxu0
          %v2303 = vadd.f32 0.0, %v2302
          %v2304 = vpop.f32.mrb[0].mxu0
          %2305 = vdwg.mxu0
          %v2306 = vmul.f32 %v1984, %v2140
          %v2307 = vmul.f32 %v1989, %v2145
          %v2308 = vsub.f32 %v2298, %v2306
          %v2309 = vsub.f32 %v2303, %v2307
          %v2310 = vmul.f32 %v509, %v509
          %v2311 = vmul.f32 %v510, %v510
          %2312 = vmatprep.subr.mxu0 0.0
          %2313 = vmatpush1.msra.mxu0 %v2310
          %2314 = vmatprep.subr.mxu0 0.0
          %2315 = vmatpush1.msra.mxu0 %v2311
          %2316 = vmatprep.subr.mxu0 0.0
          %2317 = vmatpush1.msra.mxu0 0.0
          %2318 = vmatprep.subr.mxu0 0.0
          %2319 = vmatpush1.msra.mxu0 0.0
          %2320 = vmatprep.subr.mxu0 0.0
          %2321 = vmatpush1.msra.mxu0 0.0
          %2322 = vmatprep.subr.mxu0 0.0
          %2323 = vmatpush1.msra.mxu0 0.0
          %2324 = vmatprep.subr.mxu0 0.0
          %2325 = vmatpush1.msra.mxu0 0.0
          %2326 = vmatprep.subr.mxu0 0.0
          %2327 = vmatpush1.msra.mxu0 0.0
          %2328 = vmatprep.subr.mxu0 0.0
          %2329 = vmatpush1.msra.mxu0 0.0
          %2330 = vmatprep.subr.mxu0 0.0
          %2331 = vmatpush1.msra.mxu0 0.0
          %2332 = vmatprep.subr.mxu0 0.0
          %2333 = vmatpush1.msra.mxu0 0.0
          %2334 = vmatprep.subr.mxu0 0.0
          %2335 = vmatpush1.msra.mxu0 0.0
          %2336 = vmatprep.subr.mxu0 0.0
          %2337 = vmatpush1.msra.mxu0 0.0
          %2338 = vmatprep.subr.mxu0 0.0
          %2339 = vmatpush1.msra.mxu0 0.0
          %2340 = vmatprep.subr.mxu0 0.0
          %2341 = vmatpush1.msra.mxu0 0.0
          %2342 = vmatprep.subr.mxu0 0.0
          %2343 = vmatpush1.msra.mxu0 0.0
          %2344 = vmatprep.subr.mxu0 0.0
          %2345 = vmatpush1.msra.mxu0 0.0
          %2346 = vmatprep.subr.mxu0 0.0
          %2347 = vmatpush1.msra.mxu0 0.0
          %2348 = vmatprep.subr.mxu0 0.0
          %2349 = vmatpush1.msra.mxu0 0.0
          %2350 = vmatprep.subr.mxu0 0.0
          %2351 = vmatpush1.msra.mxu0 0.0
          %2352 = vmatprep.subr.mxu0 0.0
          %2353 = vmatpush1.msra.mxu0 0.0
          %2354 = vmatprep.subr.mxu0 0.0
          %2355 = vmatpush1.msra.mxu0 0.0
          %2356 = vmatprep.subr.mxu0 0.0
          %2357 = vmatpush1.msra.mxu0 0.0
          %2358 = vmatprep.subr.mxu0 0.0
          %2359 = vmatpush1.msra.mxu0 0.0
          %2360 = vmatprep.subr.mxu0 0.0
          %2361 = vmatpush1.msra.mxu0 0.0
          %2362 = vmatprep.subr.mxu0 0.0
          %2363 = vmatpush1.msra.mxu0 0.0
          %2364 = vmatprep.subr.mxu0 0.0
          %2365 = vmatpush1.msra.mxu0 0.0
          %2366 = vmatprep.subr.mxu0 0.0
          %2367 = vmatpush1.msra.mxu0 0.0
          %2368 = vmatprep.subr.mxu0 0.0
          %2369 = vmatpush1.msra.mxu0 0.0
          %2370 = vmatprep.subr.mxu0 0.0
          %2371 = vmatpush1.msra.mxu0 0.0
          %2372 = vmatprep.subr.mxu0 0.0
          %2373 = vmatpush1.msra.mxu0 0.0
          %2374 = vmatprep.subr.mxu0 0.0
          %2375 = vmatpush1.msra.mxu0 0.0
          %2376 = vmatprep.mubr.f32.mxu0 0.0
          %2377 = vmatmul.mubr.f32.gmra.mrb[0].mxu0 %v529
          %v2378 = vpop.f32.mrb[0].mxu0
          %v2379 = vadd.f32 0.0, %v2378
          %v2380 = vpop.f32.mrb[0].mxu0
          %2381 = vmatprep.mubr.f32.mxu0 0.0
          %2382 = vmatmul.mubr.f32.gmra.mrb[0].mxu0 %v532
          %v2383 = vpop.f32.mrb[0].mxu0
          %v2384 = vadd.f32 0.0, %v2383
          %v2385 = vpop.f32.mrb[0].mxu0
          %2386 = vdwg.mxu0
          %v2388 = vsel %vm527, %v2379, 0
          %v2391 = vsel %vm527, %v2384, 0
          %2393 = vmatprep.subr.mxu0 0.0
          %2394 = vmatpush1.msra.mxu0 %v501
          %2395 = vmatprep.subr.mxu0 0.0
          %2396 = vmatpush1.msra.mxu0 %v502
          %2397 = vmatprep.subr.mxu0 0.0
          %2398 = vmatpush1.msra.mxu0 0.0
          %2399 = vmatprep.subr.mxu0 0.0
          %2400 = vmatpush1.msra.mxu0 0.0
          %2401 = vmatprep.subr.mxu0 0.0
          %2402 = vmatpush1.msra.mxu0 0.0
          %2403 = vmatprep.subr.mxu0 0.0
          %2404 = vmatpush1.msra.mxu0 0.0
          %2405 = vmatprep.subr.mxu0 0.0
          %2406 = vmatpush1.msra.mxu0 0.0
          %2407 = vmatprep.subr.mxu0 0.0
          %2408 = vmatpush1.msra.mxu0 0.0
          %2409 = vmatprep.subr.mxu0 0.0
          %2410 = vmatpush1.msra.mxu0 0.0
          %2411 = vmatprep.subr.mxu0 0.0
          %2412 = vmatpush1.msra.mxu0 0.0
          %2413 = vmatprep.subr.mxu0 0.0
          %2414 = vmatpush1.msra.mxu0 0.0
          %2415 = vmatprep.subr.mxu0 0.0
          %2416 = vmatpush1.msra.mxu0 0.0
          %2417 = vmatprep.subr.mxu0 0.0
          %2418 = vmatpush1.msra.mxu0 0.0
          %2419 = vmatprep.subr.mxu0 0.0
          %2420 = vmatpush1.msra.mxu0 0.0
          %2421 = vmatprep.subr.mxu0 0.0
          %2422 = vmatpush1.msra.mxu0 0.0
          %2423 = vmatprep.subr.mxu0 0.0
          %2424 = vmatpush1.msra.mxu0 0.0
          %2425 = vmatprep.subr.mxu0 0.0
          %2426 = vmatpush1.msra.mxu0 0.0
          %2427 = vmatprep.subr.mxu0 0.0
          %2428 = vmatpush1.msra.mxu0 0.0
          %2429 = vmatprep.subr.mxu0 0.0
          %2430 = vmatpush1.msra.mxu0 0.0
          %2431 = vmatprep.subr.mxu0 0.0
          %2432 = vmatpush1.msra.mxu0 0.0
          %2433 = vmatprep.subr.mxu0 0.0
          %2434 = vmatpush1.msra.mxu0 0.0
          %2435 = vmatprep.subr.mxu0 0.0
          %2436 = vmatpush1.msra.mxu0 0.0
          %2437 = vmatprep.subr.mxu0 0.0
          %2438 = vmatpush1.msra.mxu0 0.0
          %2439 = vmatprep.subr.mxu0 0.0
          %2440 = vmatpush1.msra.mxu0 0.0
          %2441 = vmatprep.subr.mxu0 0.0
          %2442 = vmatpush1.msra.mxu0 0.0
          %2443 = vmatprep.subr.mxu0 0.0
          %2444 = vmatpush1.msra.mxu0 0.0
          %2445 = vmatprep.subr.mxu0 0.0
          %2446 = vmatpush1.msra.mxu0 0.0
          %2447 = vmatprep.subr.mxu0 0.0
          %2448 = vmatpush1.msra.mxu0 0.0
          %2449 = vmatprep.subr.mxu0 0.0
          %2450 = vmatpush1.msra.mxu0 0.0
          %2451 = vmatprep.subr.mxu0 0.0
          %2452 = vmatpush1.msra.mxu0 0.0
          %2453 = vmatprep.subr.mxu0 0.0
          %2454 = vmatpush1.msra.mxu0 0.0
          %2455 = vmatprep.subr.mxu0 0.0
          %2456 = vmatpush1.msra.mxu0 0.0
          %2457 = vmatprep.mubr.f32.mxu0 0.0
          %2458 = vmatmul.mubr.f32.gmra.mrb[0].mxu0 %v2388
          %v2459 = vpop.f32.mrb[0].mxu0
          %v2460 = vadd.f32 0.0, %v2459
          %v2461 = vpop.f32.mrb[0].mxu0
          %2462 = vmatprep.mubr.f32.mxu0 0.0
          %2463 = vmatmul.mubr.f32.gmra.mrb[0].mxu0 %v2391
          %v2464 = vpop.f32.mrb[0].mxu0
          %v2465 = vadd.f32 0.0, %v2464
          %v2466 = vpop.f32.mrb[0].mxu0
          %2467 = vdwg.mxu0
          %v2468 = vmul.f32 %v1984, %v1984
          %v2469 = vmul.f32 %v1989, %v1989
          %v2470 = vsub.f32 %v2460, %v2468
          %v2471 = vsub.f32 %v2465, %v2469
          %v2472 = vadd.f32 %v2470, 1e-05
          %v2473 = vadd.f32 %v2471, 1e-05
          %v2474 = vrcp.pop %v2472
          %v2475 = vrcp.pop %v2473
          %v2476 = vmul.f32 %v2308, %v2474
          %v2477 = vmul.f32 %v2309, %v2475
          %s2478 = scalar_lea.vmem [#allocation2], 32
          %2479 = vst.msk [vmem:[%s2478] sm:$0xff] %vm527, %v2476
          %2480 = vst.msk [vmem:[%s2478 + $0x8] sm:$0xff] %vm527, %v2477
          %v2481 = vmul.f32 %v2476, %v1984
          %v2482 = vmul.f32 %v2477, %v1989
          %v2483 = vsub.f32 %v2140, %v2481
          %v2484 = vsub.f32 %v2145, %v2482
          %s2485 = scalar_lea.vmem [#allocation3], 32
          %2486 = vst.msk [vmem:[%s2485] sm:$0xff] %vm527, %v2483
          %2487 = vst.msk [vmem:[%s2485 + $0x8] sm:$0xff] %vm527, %v2484
          %2488 = vmatprep.subr.mxu0 0.0
          %2489 = vmatpush1.msra.mxu0 %v515
          %2490 = vmatprep.subr.mxu0 0.0
          %2491 = vmatpush1.msra.mxu0 %v516
          %2492 = vmatprep.subr.mxu0 0.0
          %2493 = vmatpush1.msra.mxu0 0.0
          %2494 = vmatprep.subr.mxu0 0.0
          %2495 = vmatpush1.msra.mxu0 0.0
          %2496 = vmatprep.subr.mxu0 0.0
          %2497 = vmatpush1.msra.mxu0 0.0
          %2498 = vmatprep.subr.mxu0 0.0
          %2499 = vmatpush1.msra.mxu0 0.0
          %2500 = vmatprep.subr.mxu0 0.0
          %2501 = vmatpush1.msra.mxu0 0.0
          %2502 = vmatprep.subr.mxu0 0.0
          %2503 = vmatpush1.msra.mxu0 0.0
          %2504 = vmatprep.subr.mxu0 0.0
          %2505 = vmatpush1.msra.mxu0 0.0
          %2506 = vmatprep.subr.mxu0 0.0
          %2507 = vmatpush1.msra.mxu0 0.0
          %2508 = vmatprep.subr.mxu0 0.0
          %2509 = vmatpush1.msra.mxu0 0.0
          %2510 = vmatprep.subr.mxu0 0.0
          %2511 = vmatpush1.msra.mxu0 0.0
          %2512 = vmatprep.subr.mxu0 0.0
          %2513 = vmatpush1.msra.mxu0 0.0
          %2514 = vmatprep.subr.mxu0 0.0
          %2515 = vmatpush1.msra.mxu0 0.0
          %2516 = vmatprep.subr.mxu0 0.0
          %2517 = vmatpush1.msra.mxu0 0.0
          %2518 = vmatprep.subr.mxu0 0.0
          %2519 = vmatpush1.msra.mxu0 0.0
          %2520 = vmatprep.subr.mxu0 0.0
          %2521 = vmatpush1.msra.mxu0 0.0
          %2522 = vmatprep.subr.mxu0 0.0
          %2523 = vmatpush1.msra.mxu0 0.0
          %2524 = vmatprep.subr.mxu0 0.0
          %2525 = vmatpush1.msra.mxu0 0.0
          %2526 = vmatprep.subr.mxu0 0.0
          %2527 = vmatpush1.msra.mxu0 0.0
          %2528 = vmatprep.subr.mxu0 0.0
          %2529 = vmatpush1.msra.mxu0 0.0
          %2530 = vmatprep.subr.mxu0 0.0
          %2531 = vmatpush1.msra.mxu0 0.0
          %2532 = vmatprep.subr.mxu0 0.0
          %2533 = vmatpush1.msra.mxu0 0.0
          %2534 = vmatprep.subr.mxu0 0.0
          %2535 = vmatpush1.msra.mxu0 0.0
          %2536 = vmatprep.subr.mxu0 0.0
          %2537 = vmatpush1.msra.mxu0 0.0
          %2538 = vmatprep.subr.mxu0 0.0
          %2539 = vmatpush1.msra.mxu0 0.0
          %2540 = vmatprep.subr.mxu0 0.0
          %2541 = vmatpush1.msra.mxu0 0.0
          %2542 = vmatprep.subr.mxu0 0.0
          %2543 = vmatpush1.msra.mxu0 0.0
          %2544 = vmatprep.subr.mxu0 0.0
          %2545 = vmatpush1.msra.mxu0 0.0
          %2546 = vmatprep.subr.mxu0 0.0
          %2547 = vmatpush1.msra.mxu0 0.0
          %2548 = vmatprep.subr.mxu0 0.0
          %2549 = vmatpush1.msra.mxu0 0.0
          %2550 = vmatprep.subr.mxu0 0.0
          %2551 = vmatpush1.msra.mxu0 0.0
          %2552 = vmatprep.mubr.f32.mxu0 0.0
          %2553 = vmatmul.mubr.f32.gmra.mrb[0].mxu0 %v529
          %v2554 = vpop.f32.mrb[0].mxu0
          %v2555 = vadd.f32 0.0, %v2554
          %v2556 = vpop.f32.mrb[0].mxu0
          %2557 = vmatprep.mubr.f32.mxu0 0.0
          %2558 = vmatmul.mubr.f32.gmra.mrb[0].mxu0 %v532
          %v2559 = vpop.f32.mrb[0].mxu0
          %v2560 = vadd.f32 0.0, %v2559
          %v2561 = vpop.f32.mrb[0].mxu0
          %2562 = vdwg.mxu0
          %v2564 = vsel %vm527, %v2555, 0
          %v2567 = vsel %vm527, %v2560, 0
          %2569 = vmatprep.subr.mxu0 0.0
          %2570 = vmatpush1.msra.mxu0 %v501
          %2571 = vmatprep.subr.mxu0 0.0
          %2572 = vmatpush1.msra.mxu0 %v502
          %2573 = vmatprep.subr.mxu0 0.0
          %2574 = vmatpush1.msra.mxu0 0.0
          %2575 = vmatprep.subr.mxu0 0.0
          %2576 = vmatpush1.msra.mxu0 0.0
          %2577 = vmatprep.subr.mxu0 0.0
          %2578 = vmatpush1.msra.mxu0 0.0
          %2579 = vmatprep.subr.mxu0 0.0
          %2580 = vmatpush1.msra.mxu0 0.0
          %2581 = vmatprep.subr.mxu0 0.0
          %2582 = vmatpush1.msra.mxu0 0.0
          %2583 = vmatprep.subr.mxu0 0.0
          %2584 = vmatpush1.msra.mxu0 0.0
          %2585 = vmatprep.subr.mxu0 0.0
          %2586 = vmatpush1.msra.mxu0 0.0
          %2587 = vmatprep.subr.mxu0 0.0
          %2588 = vmatpush1.msra.mxu0 0.0
          %2589 = vmatprep.subr.mxu0 0.0
          %2590 = vmatpush1.msra.mxu0 0.0
          %2591 = vmatprep.subr.mxu0 0.0
          %2592 = vmatpush1.msra.mxu0 0.0
          %2593 = vmatprep.subr.mxu0 0.0
          %2594 = vmatpush1.msra.mxu0 0.0
          %2595 = vmatprep.subr.mxu0 0.0
          %2596 = vmatpush1.msra.mxu0 0.0
          %2597 = vmatprep.subr.mxu0 0.0
          %2598 = vmatpush1.msra.mxu0 0.0
          %2599 = vmatprep.subr.mxu0 0.0
          %2600 = vmatpush1.msra.mxu0 0.0
          %2601 = vmatprep.subr.mxu0 0.0
          %2602 = vmatpush1.msra.mxu0 0.0
          %2603 = vmatprep.subr.mxu0 0.0
          %2604 = vmatpush1.msra.mxu0 0.0
          %2605 = vmatprep.subr.mxu0 0.0
          %2606 = vmatpush1.msra.mxu0 0.0
          %2607 = vmatprep.subr.mxu0 0.0
          %2608 = vmatpush1.msra.mxu0 0.0
          %2609 = vmatprep.subr.mxu0 0.0
          %2610 = vmatpush1.msra.mxu0 0.0
          %2611 = vmatprep.subr.mxu0 0.0
          %2612 = vmatpush1.msra.mxu0 0.0
          %2613 = vmatprep.subr.mxu0 0.0
          %2614 = vmatpush1.msra.mxu0 0.0
          %2615 = vmatprep.subr.mxu0 0.0
          %2616 = vmatpush1.msra.mxu0 0.0
          %2617 = vmatprep.subr.mxu0 0.0
          %2618 = vmatpush1.msra.mxu0 0.0
          %2619 = vmatprep.subr.mxu0 0.0
          %2620 = vmatpush1.msra.mxu0 0.0
          %2621 = vmatprep.subr.mxu0 0.0
          %2622 = vmatpush1.msra.mxu0 0.0
          %2623 = vmatprep.subr.mxu0 0.0
          %2624 = vmatpush1.msra.mxu0 0.0
          %2625 = vmatprep.subr.mxu0 0.0
          %2626 = vmatpush1.msra.mxu0 0.0
          %2627 = vmatprep.subr.mxu0 0.0
          %2628 = vmatpush1.msra.mxu0 0.0
          %2629 = vmatprep.subr.mxu0 0.0
          %2630 = vmatpush1.msra.mxu0 0.0
          %2631 = vmatprep.subr.mxu0 0.0
          %2632 = vmatpush1.msra.mxu0 0.0
          %2633 = vmatprep.mubr.f32.mxu0 0.0
          %2634 = vmatmul.mubr.f32.gmra.mrb[0].mxu0 %v2564
          %v2635 = vpop.f32.mrb[0].mxu0
          %v2636 = vadd.f32 0.0, %v2635
          %v2637 = vpop.f32.mrb[0].mxu0
          %2638 = vmatprep.mubr.f32.mxu0 0.0
          %2639 = vmatmul.mubr.f32.gmra.mrb[0].mxu0 %v2567
          %v2640 = vpop.f32.mrb[0].mxu0
          %v2641 = vadd.f32 0.0, %v2640
          %v2642 = vpop.f32.mrb[0].mxu0
          %2643 = vdwg.mxu0
          %2644 = vmatprep.subr.mxu0 0.0
          %2645 = vmatpush1.msra.mxu0 %v525
          %2646 = vmatprep.subr.mxu0 0.0
          %2647 = vmatpush1.msra.mxu0 %v526
          %2648 = vmatprep.subr.mxu0 0.0
          %2649 = vmatpush1.msra.mxu0 0.0
          %2650 = vmatprep.subr.mxu0 0.0
          %2651 = vmatpush1.msra.mxu0 0.0
          %2652 = vmatprep.subr.mxu0 0.0
          %2653 = vmatpush1.msra.mxu0 0.0
          %2654 = vmatprep.subr.mxu0 0.0
          %2655 = vmatpush1.msra.mxu0 0.0
          %2656 = vmatprep.subr.mxu0 0.0
          %2657 = vmatpush1.msra.mxu0 0.0
          %2658 = vmatprep.subr.mxu0 0.0
          %2659 = vmatpush1.msra.mxu0 0.0
          %2660 = vmatprep.subr.mxu0 0.0
          %2661 = vmatpush1.msra.mxu0 0.0
          %2662 = vmatprep.subr.mxu0 0.0
          %2663 = vmatpush1.msra.mxu0 0.0
          %2664 = vmatprep.subr.mxu0 0.0
          %2665 = vmatpush1.msra.mxu0 0.0
          %2666 = vmatprep.subr.mxu0 0.0
          %2667 = vmatpush1.msra.mxu0 0.0
          %2668 = vmatprep.subr.mxu0 0.0
          %2669 = vmatpush1.msra.mxu0 0.0
          %2670 = vmatprep.subr.mxu0 0.0
          %2671 = vmatpush1.msra.mxu0 0.0
          %2672 = vmatprep.subr.mxu0 0.0
          %2673 = vmatpush1.msra.mxu0 0.0
          %2674 = vmatprep.subr.mxu0 0.0
          %2675 = vmatpush1.msra.mxu0 0.0
          %2676 = vmatprep.subr.mxu0 0.0
          %2677 = vmatpush1.msra.mxu0 0.0
          %2678 = vmatprep.subr.mxu0 0.0
          %2679 = vmatpush1.msra.mxu0 0.0
          %2680 = vmatprep.subr.mxu0 0.0
          %2681 = vmatpush1.msra.mxu0 0.0
          %2682 = vmatprep.subr.mxu0 0.0
          %2683 = vmatpush1.msra.mxu0 0.0
          %2684 = vmatprep.subr.mxu0 0.0
          %2685 = vmatpush1.msra.mxu0 0.0
          %2686 = vmatprep.subr.mxu0 0.0
          %2687 = vmatpush1.msra.mxu0 0.0
          %2688 = vmatprep.subr.mxu0 0.0
          %2689 = vmatpush1.msra.mxu0 0.0
          %2690 = vmatprep.subr.mxu0 0.0
          %2691 = vmatpush1.msra.mxu0 0.0
          %2692 = vmatprep.subr.mxu0 0.0
          %2693 = vmatpush1.msra.mxu0 0.0
          %2694 = vmatprep.subr.mxu0 0.0
          %2695 = vmatpush1.msra.mxu0 0.0
          %2696 = vmatprep.subr.mxu0 0.0
          %2697 = vmatpush1.msra.mxu0 0.0
          %2698 = vmatprep.subr.mxu0 0.0
          %2699 = vmatpush1.msra.mxu0 0.0
          %2700 = vmatprep.subr.mxu0 0.0
          %2701 = vmatpush1.msra.mxu0 0.0
          %2702 = vmatprep.subr.mxu0 0.0
          %2703 = vmatpush1.msra.mxu0 0.0
          %2704 = vmatprep.subr.mxu0 0.0
          %2705 = vmatpush1.msra.mxu0 0.0
          %2706 = vmatprep.subr.mxu0 0.0
          %2707 = vmatpush1.msra.mxu0 0.0
          %2708 = vmatprep.mubr.f32.mxu0 0.0
          %2709 = vmatmul.mubr.f32.gmra.mrb[0].mxu0 %v529
          %v2710 = vpop.f32.mrb[0].mxu0
          %v2711 = vadd.f32 0.0, %v2710
          %v2712 = vpop.f32.mrb[0].mxu0
          %2713 = vmatprep.mubr.f32.mxu0 0.0
          %2714 = vmatmul.mubr.f32.gmra.mrb[0].mxu0 %v532
          %v2715 = vpop.f32.mrb[0].mxu0
          %v2716 = vadd.f32 0.0, %v2715
          %v2717 = vpop.f32.mrb[0].mxu0
          %2718 = vdwg.mxu0
          %v2720 = vsel %vm527, %v2711, 0
          %v2723 = vsel %vm527, %v2716, 0
          %2725 = vmatprep.subr.mxu0 0.0
          %2726 = vmatpush1.msra.mxu0 %v501
          %2727 = vmatprep.subr.mxu0 0.0
          %2728 = vmatpush1.msra.mxu0 %v502
          %2729 = vmatprep.subr.mxu0 0.0
          %2730 = vmatpush1.msra.mxu0 0.0
          %2731 = vmatprep.subr.mxu0 0.0
          %2732 = vmatpush1.msra.mxu0 0.0
          %2733 = vmatprep.subr.mxu0 0.0
          %2734 = vmatpush1.msra.mxu0 0.0
          %2735 = vmatprep.subr.mxu0 0.0
          %2736 = vmatpush1.msra.mxu0 0.0
          %2737 = vmatprep.subr.mxu0 0.0
          %2738 = vmatpush1.msra.mxu0 0.0
          %2739 = vmatprep.subr.mxu0 0.0
          %2740 = vmatpush1.msra.mxu0 0.0
          %2741 = vmatprep.subr.mxu0 0.0
          %2742 = vmatpush1.msra.mxu0 0.0
          %2743 = vmatprep.subr.mxu0 0.0
          %2744 = vmatpush1.msra.mxu0 0.0
          %2745 = vmatprep.subr.mxu0 0.0
          %2746 = vmatpush1.msra.mxu0 0.0
          %2747 = vmatprep.subr.mxu0 0.0
          %2748 = vmatpush1.msra.mxu0 0.0
          %2749 = vmatprep.subr.mxu0 0.0
          %2750 = vmatpush1.msra.mxu0 0.0
          %2751 = vmatprep.subr.mxu0 0.0
          %2752 = vmatpush1.msra.mxu0 0.0
          %2753 = vmatprep.subr.mxu0 0.0
          %2754 = vmatpush1.msra.mxu0 0.0
          %2755 = vmatprep.subr.mxu0 0.0
          %2756 = vmatpush1.msra.mxu0 0.0
          %2757 = vmatprep.subr.mxu0 0.0
          %2758 = vmatpush1.msra.mxu0 0.0
          %2759 = vmatprep.subr.mxu0 0.0
          %2760 = vmatpush1.msra.mxu0 0.0
          %2761 = vmatprep.subr.mxu0 0.0
          %2762 = vmatpush1.msra.mxu0 0.0
          %2763 = vmatprep.subr.mxu0 0.0
          %2764 = vmatpush1.msra.mxu0 0.0
          %2765 = vmatprep.subr.mxu0 0.0
          %2766 = vmatpush1.msra.mxu0 0.0
          %2767 = vmatprep.subr.mxu0 0.0
          %2768 = vmatpush1.msra.mxu0 0.0
          %2769 = vmatprep.subr.mxu0 0.0
          %2770 = vmatpush1.msra.mxu0 0.0
          %2771 = vmatprep.subr.mxu0 0.0
          %2772 = vmatpush1.msra.mxu0 0.0
          %2773 = vmatprep.subr.mxu0 0.0
          %2774 = vmatpush1.msra.mxu0 0.0
          %2775 = vmatprep.subr.mxu0 0.0
          %2776 = vmatpush1.msra.mxu0 0.0
          %2777 = vmatprep.subr.mxu0 0.0
          %2778 = vmatpush1.msra.mxu0 0.0
          %2779 = vmatprep.subr.mxu0 0.0
          %2780 = vmatpush1.msra.mxu0 0.0
          %2781 = vmatprep.subr.mxu0 0.0
          %2782 = vmatpush1.msra.mxu0 0.0
          %2783 = vmatprep.subr.mxu0 0.0
          %2784 = vmatpush1.msra.mxu0 0.0
          %2785 = vmatprep.subr.mxu0 0.0
          %2786 = vmatpush1.msra.mxu0 0.0
          %2787 = vmatprep.subr.mxu0 0.0
          %2788 = vmatpush1.msra.mxu0 0.0
          %2789 = vmatprep.mubr.f32.mxu0 0.0
          %2790 = vmatmul.mubr.f32.gmra.mrb[0].mxu0 %v2720
          %v2791 = vpop.f32.mrb[0].mxu0
          %v2792 = vadd.f32 0.0, %v2791
          %v2793 = vpop.f32.mrb[0].mxu0
          %2794 = vmatprep.mubr.f32.mxu0 0.0
          %2795 = vmatmul.mubr.f32.gmra.mrb[0].mxu0 %v2723
          %v2796 = vpop.f32.mrb[0].mxu0
          %v2797 = vadd.f32 0.0, %v2796
          %v2798 = vpop.f32.mrb[0].mxu0
          %2799 = vdwg.mxu0
          %v2800 = vmul.f32 %v515, %v525
          %v2801 = vmul.f32 %v516, %v526
          %2802 = vmatprep.subr.mxu0 0.0
          %2803 = vmatpush1.msra.mxu0 %v2800
          %2804 = vmatprep.subr.mxu0 0.0
          %2805 = vmatpush1.msra.mxu0 %v2801
          %2806 = vmatprep.subr.mxu0 0.0
          %2807 = vmatpush1.msra.mxu0 0.0
          %2808 = vmatprep.subr.mxu0 0.0
          %2809 = vmatpush1.msra.mxu0 0.0
          %2810 = vmatprep.subr.mxu0 0.0
          %2811 = vmatpush1.msra.mxu0 0.0
          %2812 = vmatprep.subr.mxu0 0.0
          %2813 = vmatpush1.msra.mxu0 0.0
          %2814 = vmatprep.subr.mxu0 0.0
          %2815 = vmatpush1.msra.mxu0 0.0
          %2816 = vmatprep.subr.mxu0 0.0
          %2817 = vmatpush1.msra.mxu0 0.0
          %2818 = vmatprep.subr.mxu0 0.0
          %2819 = vmatpush1.msra.mxu0 0.0
          %2820 = vmatprep.subr.mxu0 0.0
          %2821 = vmatpush1.msra.mxu0 0.0
          %2822 = vmatprep.subr.mxu0 0.0
          %2823 = vmatpush1.msra.mxu0 0.0
          %2824 = vmatprep.subr.mxu0 0.0
          %2825 = vmatpush1.msra.mxu0 0.0
          %2826 = vmatprep.subr.mxu0 0.0
          %2827 = vmatpush1.msra.mxu0 0.0
          %2828 = vmatprep.subr.mxu0 0.0
          %2829 = vmatpush1.msra.mxu0 0.0
          %2830 = vmatprep.subr.mxu0 0.0
          %2831 = vmatpush1.msra.mxu0 0.0
          %2832 = vmatprep.subr.mxu0 0.0
          %2833 = vmatpush1.msra.mxu0 0.0
          %2834 = vmatprep.subr.mxu0 0.0
          %2835 = vmatpush1.msra.mxu0 0.0
          %2836 = vmatprep.subr.mxu0 0.0
          %2837 = vmatpush1.msra.mxu0 0.0
          %2838 = vmatprep.subr.mxu0 0.0
          %2839 = vmatpush1.msra.mxu0 0.0
          %2840 = vmatprep.subr.mxu0 0.0
          %2841 = vmatpush1.msra.mxu0 0.0
          %2842 = vmatprep.subr.mxu0 0.0
          %2843 = vmatpush1.msra.mxu0 0.0
          %2844 = vmatprep.subr.mxu0 0.0
          %2845 = vmatpush1.msra.mxu0 0.0
          %2846 = vmatprep.subr.mxu0 0.0
          %2847 = vmatpush1.msra.mxu0 0.0
          %2848 = vmatprep.subr.mxu0 0.0
          %2849 = vmatpush1.msra.mxu0 0.0
          %2850 = vmatprep.subr.mxu0 0.0
          %2851 = vmatpush1.msra.mxu0 0.0
          %2852 = vmatprep.subr.mxu0 0.0
          %2853 = vmatpush1.msra.mxu0 0.0
          %2854 = vmatprep.subr.mxu0 0.0
          %2855 = vmatpush1.msra.mxu0 0.0
          %2856 = vmatprep.subr.mxu0 0.0
          %2857 = vmatpush1.msra.mxu0 0.0
          %2858 = vmatprep.subr.mxu0 0.0
          %2859 = vmatpush1.msra.mxu0 0.0
          %2860 = vmatprep.subr.mxu0 0.0
          %2861 = vmatpush1.msra.mxu0 0.0
          %2862 = vmatprep.subr.mxu0 0.0
          %2863 = vmatpush1.msra.mxu0 0.0
          %2864 = vmatprep.subr.mxu0 0.0
          %2865 = vmatpush1.msra.mxu0 0.0
          %2866 = vmatprep.mubr.f32.mxu0 0.0
          %2867 = vmatmul.mubr.f32.gmra.mrb[0].mxu0 %v529
          %v2868 = vpop.f32.mrb[0].mxu0
          %v2869 = vadd.f32 0.0, %v2868
          %v2870 = vpop.f32.mrb[0].mxu0
          %2871 = vmatprep.mubr.f32.mxu0 0.0
          %2872 = vmatmul.mubr.f32.gmra.mrb[0].mxu0 %v532
          %v2873 = vpop.f32.mrb[0].mxu0
          %v2874 = vadd.f32 0.0, %v2873
          %v2875 = vpop.f32.mrb[0].mxu0
          %2876 = vdwg.mxu0
          %v2878 = vsel %vm527, %v2869, 0
          %v2881 = vsel %vm527, %v2874, 0
          %2883 = vmatprep.subr.mxu0 0.0
          %2884 = vmatpush1.msra.mxu0 %v501
          %2885 = vmatprep.subr.mxu0 0.0
          %2886 = vmatpush1.msra.mxu0 %v502
          %2887 = vmatprep.subr.mxu0 0.0
          %2888 = vmatpush1.msra.mxu0 0.0
          %2889 = vmatprep.subr.mxu0 0.0
          %2890 = vmatpush1.msra.mxu0 0.0
          %2891 = vmatprep.subr.mxu0 0.0
          %2892 = vmatpush1.msra.mxu0 0.0
          %2893 = vmatprep.subr.mxu0 0.0
          %2894 = vmatpush1.msra.mxu0 0.0
          %2895 = vmatprep.subr.mxu0 0.0
          %2896 = vmatpush1.msra.mxu0 0.0
          %2897 = vmatprep.subr.mxu0 0.0
          %2898 = vmatpush1.msra.mxu0 0.0
          %2899 = vmatprep.subr.mxu0 0.0
          %2900 = vmatpush1.msra.mxu0 0.0
          %2901 = vmatprep.subr.mxu0 0.0
          %2902 = vmatpush1.msra.mxu0 0.0
          %2903 = vmatprep.subr.mxu0 0.0
          %2904 = vmatpush1.msra.mxu0 0.0
          %2905 = vmatprep.subr.mxu0 0.0
          %2906 = vmatpush1.msra.mxu0 0.0
          %2907 = vmatprep.subr.mxu0 0.0
          %2908 = vmatpush1.msra.mxu0 0.0
          %2909 = vmatprep.subr.mxu0 0.0
          %2910 = vmatpush1.msra.mxu0 0.0
          %2911 = vmatprep.subr.mxu0 0.0
          %2912 = vmatpush1.msra.mxu0 0.0
          %2913 = vmatprep.subr.mxu0 0.0
          %2914 = vmatpush1.msra.mxu0 0.0
          %2915 = vmatprep.subr.mxu0 0.0
          %2916 = vmatpush1.msra.mxu0 0.0
          %2917 = vmatprep.subr.mxu0 0.0
          %2918 = vmatpush1.msra.mxu0 0.0
          %2919 = vmatprep.subr.mxu0 0.0
          %2920 = vmatpush1.msra.mxu0 0.0
          %2921 = vmatprep.subr.mxu0 0.0
          %2922 = vmatpush1.msra.mxu0 0.0
          %2923 = vmatprep.subr.mxu0 0.0
          %2924 = vmatpush1.msra.mxu0 0.0
          %2925 = vmatprep.subr.mxu0 0.0
          %2926 = vmatpush1.msra.mxu0 0.0
          %2927 = vmatprep.subr.mxu0 0.0
          %2928 = vmatpush1.msra.mxu0 0.0
          %2929 = vmatprep.subr.mxu0 0.0
          %2930 = vmatpush1.msra.mxu0 0.0
          %2931 = vmatprep.subr.mxu0 0.0
          %2932 = vmatpush1.msra.mxu0 0.0
          %2933 = vmatprep.subr.mxu0 0.0
          %2934 = vmatpush1.msra.mxu0 0.0
          %2935 = vmatprep.subr.mxu0 0.0
          %2936 = vmatpush1.msra.mxu0 0.0
          %2937 = vmatprep.subr.mxu0 0.0
          %2938 = vmatpush1.msra.mxu0 0.0
          %2939 = vmatprep.subr.mxu0 0.0
          %2940 = vmatpush1.msra.mxu0 0.0
          %2941 = vmatprep.subr.mxu0 0.0
          %2942 = vmatpush1.msra.mxu0 0.0
          %2943 = vmatprep.subr.mxu0 0.0
          %2944 = vmatpush1.msra.mxu0 0.0
          %2945 = vmatprep.subr.mxu0 0.0
          %2946 = vmatpush1.msra.mxu0 0.0
          %2947 = vmatprep.mubr.f32.mxu0 0.0
          %2948 = vmatmul.mubr.f32.gmra.mrb[0].mxu0 %v2878
          %v2949 = vpop.f32.mrb[0].mxu0
          %v2950 = vadd.f32 0.0, %v2949
          %v2951 = vpop.f32.mrb[0].mxu0
          %2952 = vmatprep.mubr.f32.mxu0 0.0
          %2953 = vmatmul.mubr.f32.gmra.mrb[0].mxu0 %v2881
          %v2954 = vpop.f32.mrb[0].mxu0
          %v2955 = vadd.f32 0.0, %v2954
          %v2956 = vpop.f32.mrb[0].mxu0
          %2957 = vdwg.mxu0
          %v2958 = vmul.f32 %v2636, %v2792
          %v2959 = vmul.f32 %v2641, %v2797
          %v2960 = vsub.f32 %v2950, %v2958
          %v2961 = vsub.f32 %v2955, %v2959
          %v2962 = vmul.f32 %v515, %v515
          %v2963 = vmul.f32 %v516, %v516
          %2964 = vmatprep.subr.mxu0 0.0
          %2965 = vmatpush1.msra.mxu0 %v2962
          %2966 = vmatprep.subr.mxu0 0.0
          %2967 = vmatpush1.msra.mxu0 %v2963
          %2968 = vmatprep.subr.mxu0 0.0
          %2969 = vmatpush1.msra.mxu0 0.0
          %2970 = vmatprep.subr.mxu0 0.0
          %2971 = vmatpush1.msra.mxu0 0.0
          %2972 = vmatprep.subr.mxu0 0.0
          %2973 = vmatpush1.msra.mxu0 0.0
          %2974 = vmatprep.subr.mxu0 0.0
          %2975 = vmatpush1.msra.mxu0 0.0
          %2976 = vmatprep.subr.mxu0 0.0
          %2977 = vmatpush1.msra.mxu0 0.0
          %2978 = vmatprep.subr.mxu0 0.0
          %2979 = vmatpush1.msra.mxu0 0.0
          %2980 = vmatprep.subr.mxu0 0.0
          %2981 = vmatpush1.msra.mxu0 0.0
          %2982 = vmatprep.subr.mxu0 0.0
          %2983 = vmatpush1.msra.mxu0 0.0
          %2984 = vmatprep.subr.mxu0 0.0
          %2985 = vmatpush1.msra.mxu0 0.0
          %2986 = vmatprep.subr.mxu0 0.0
          %2987 = vmatpush1.msra.mxu0 0.0
          %2988 = vmatprep.subr.mxu0 0.0
          %2989 = vmatpush1.msra.mxu0 0.0
          %2990 = vmatprep.subr.mxu0 0.0
          %2991 = vmatpush1.msra.mxu0 0.0
          %2992 = vmatprep.subr.mxu0 0.0
          %2993 = vmatpush1.msra.mxu0 0.0
          %2994 = vmatprep.subr.mxu0 0.0
          %2995 = vmatpush1.msra.mxu0 0.0
          %2996 = vmatprep.subr.mxu0 0.0
          %2997 = vmatpush1.msra.mxu0 0.0
          %2998 = vmatprep.subr.mxu0 0.0
          %2999 = vmatpush1.msra.mxu0 0.0
          %3000 = vmatprep.subr.mxu0 0.0
          %3001 = vmatpush1.msra.mxu0 0.0
          %3002 = vmatprep.subr.mxu0 0.0
          %3003 = vmatpush1.msra.mxu0 0.0
          %3004 = vmatprep.subr.mxu0 0.0
          %3005 = vmatpush1.msra.mxu0 0.0
          %3006 = vmatprep.subr.mxu0 0.0
          %3007 = vmatpush1.msra.mxu0 0.0
          %3008 = vmatprep.subr.mxu0 0.0
          %3009 = vmatpush1.msra.mxu0 0.0
          %3010 = vmatprep.subr.mxu0 0.0
          %3011 = vmatpush1.msra.mxu0 0.0
          %3012 = vmatprep.subr.mxu0 0.0
          %3013 = vmatpush1.msra.mxu0 0.0
          %3014 = vmatprep.subr.mxu0 0.0
          %3015 = vmatpush1.msra.mxu0 0.0
          %3016 = vmatprep.subr.mxu0 0.0
          %3017 = vmatpush1.msra.mxu0 0.0
          %3018 = vmatprep.subr.mxu0 0.0
          %3019 = vmatpush1.msra.mxu0 0.0
          %3020 = vmatprep.subr.mxu0 0.0
          %3021 = vmatpush1.msra.mxu0 0.0
          %3022 = vmatprep.subr.mxu0 0.0
          %3023 = vmatpush1.msra.mxu0 0.0
          %3024 = vmatprep.subr.mxu0 0.0
          %3025 = vmatpush1.msra.mxu0 0.0
          %3026 = vmatprep.subr.mxu0 0.0
          %3027 = vmatpush1.msra.mxu0 0.0
          %3028 = vmatprep.mubr.f32.mxu0 0.0
          %3029 = vmatmul.mubr.f32.gmra.mrb[0].mxu0 %v529
          %v3030 = vpop.f32.mrb[0].mxu0
          %v3031 = vadd.f32 0.0, %v3030
          %v3032 = vpop.f32.mrb[0].mxu0
          %3033 = vmatprep.mubr.f32.mxu0 0.0
          %3034 = vmatmul.mubr.f32.gmra.mrb[0].mxu0 %v532
          %v3035 = vpop.f32.mrb[0].mxu0
          %v3036 = vadd.f32 0.0, %v3035
          %v3037 = vpop.f32.mrb[0].mxu0
          %3038 = vdwg.mxu0
          %v3040 = vsel %vm527, %v3031, 0
          %v3043 = vsel %vm527, %v3036, 0
          %3045 = vmatprep.subr.mxu0 0.0
          %3046 = vmatpush1.msra.mxu0 %v501
          %3047 = vmatprep.subr.mxu0 0.0
          %3048 = vmatpush1.msra.mxu0 %v502
          %3049 = vmatprep.subr.mxu0 0.0
          %3050 = vmatpush1.msra.mxu0 0.0
          %3051 = vmatprep.subr.mxu0 0.0
          %3052 = vmatpush1.msra.mxu0 0.0
          %3053 = vmatprep.subr.mxu0 0.0
          %3054 = vmatpush1.msra.mxu0 0.0
          %3055 = vmatprep.subr.mxu0 0.0
          %3056 = vmatpush1.msra.mxu0 0.0
          %3057 = vmatprep.subr.mxu0 0.0
          %3058 = vmatpush1.msra.mxu0 0.0
          %3059 = vmatprep.subr.mxu0 0.0
          %3060 = vmatpush1.msra.mxu0 0.0
          %3061 = vmatprep.subr.mxu0 0.0
          %3062 = vmatpush1.msra.mxu0 0.0
          %3063 = vmatprep.subr.mxu0 0.0
          %3064 = vmatpush1.msra.mxu0 0.0
          %3065 = vmatprep.subr.mxu0 0.0
          %3066 = vmatpush1.msra.mxu0 0.0
          %3067 = vmatprep.subr.mxu0 0.0
          %3068 = vmatpush1.msra.mxu0 0.0
          %3069 = vmatprep.subr.mxu0 0.0
          %3070 = vmatpush1.msra.mxu0 0.0
          %3071 = vmatprep.subr.mxu0 0.0
          %3072 = vmatpush1.msra.mxu0 0.0
          %3073 = vmatprep.subr.mxu0 0.0
          %3074 = vmatpush1.msra.mxu0 0.0
          %3075 = vmatprep.subr.mxu0 0.0
          %3076 = vmatpush1.msra.mxu0 0.0
          %3077 = vmatprep.subr.mxu0 0.0
          %3078 = vmatpush1.msra.mxu0 0.0
          %3079 = vmatprep.subr.mxu0 0.0
          %3080 = vmatpush1.msra.mxu0 0.0
          %3081 = vmatprep.subr.mxu0 0.0
          %3082 = vmatpush1.msra.mxu0 0.0
          %3083 = vmatprep.subr.mxu0 0.0
          %3084 = vmatpush1.msra.mxu0 0.0
          %3085 = vmatprep.subr.mxu0 0.0
          %3086 = vmatpush1.msra.mxu0 0.0
          %3087 = vmatprep.subr.mxu0 0.0
          %3088 = vmatpush1.msra.mxu0 0.0
          %3089 = vmatprep.subr.mxu0 0.0
          %3090 = vmatpush1.msra.mxu0 0.0
          %3091 = vmatprep.subr.mxu0 0.0
          %3092 = vmatpush1.msra.mxu0 0.0
          %3093 = vmatprep.subr.mxu0 0.0
          %3094 = vmatpush1.msra.mxu0 0.0
          %3095 = vmatprep.subr.mxu0 0.0
          %3096 = vmatpush1.msra.mxu0 0.0
          %3097 = vmatprep.subr.mxu0 0.0
          %3098 = vmatpush1.msra.mxu0 0.0
          %3099 = vmatprep.subr.mxu0 0.0
          %3100 = vmatpush1.msra.mxu0 0.0
          %3101 = vmatprep.subr.mxu0 0.0
          %3102 = vmatpush1.msra.mxu0 0.0
          %3103 = vmatprep.subr.mxu0 0.0
          %3104 = vmatpush1.msra.mxu0 0.0
          %3105 = vmatprep.subr.mxu0 0.0
          %3106 = vmatpush1.msra.mxu0 0.0
          %3107 = vmatprep.subr.mxu0 0.0
          %3108 = vmatpush1.msra.mxu0 0.0
          %3109 = vmatprep.mubr.f32.mxu0 0.0
          %3110 = vmatmul.mubr.f32.gmra.mrb[0].mxu0 %v3040
          %v3111 = vpop.f32.mrb[0].mxu0
          %v3112 = vadd.f32 0.0, %v3111
          %v3113 = vpop.f32.mrb[0].mxu0
          %3114 = vmatprep.mubr.f32.mxu0 0.0
          %3115 = vmatmul.mubr.f32.gmra.mrb[0].mxu0 %v3043
          %v3116 = vpop.f32.mrb[0].mxu0
          %v3117 = vadd.f32 0.0, %v3116
          %v3118 = vpop.f32.mrb[0].mxu0
          %3119 = vdwg.mxu0
          %v3120 = vmul.f32 %v2636, %v2636
          %v3121 = vmul.f32 %v2641, %v2641
          %v3122 = vsub.f32 %v3112, %v3120
          %v3123 = vsub.f32 %v3117, %v3121
          %v3124 = vadd.f32 %v3122, 1e-05
          %v3125 = vadd.f32 %v3123, 1e-05
          %v3126 = vrcp.pop %v3124
          %v3127 = vrcp.pop %v3125
          %v3128 = vmul.f32 %v2960, %v3126
          %v3129 = vmul.f32 %v2961, %v3127
          %s3130 = scalar_lea.vmem [#allocation2], 48
          %3131 = vst.msk [vmem:[%s3130] sm:$0xff] %vm527, %v3128
          %3132 = vst.msk [vmem:[%s3130 + $0x8] sm:$0xff] %vm527, %v3129
          %v3133 = vmul.f32 %v3128, %v2636
          %v3134 = vmul.f32 %v3129, %v2641
          %v3135 = vsub.f32 %v2792, %v3133
          %v3136 = vsub.f32 %v2797, %v3134
          %s3137 = scalar_lea.vmem [#allocation3], 48
          %3138 = vst.msk [vmem:[%s3137] sm:$0xff] %vm527, %v3135
          %3139 = vst.msk [vmem:[%s3137 + $0x8] sm:$0xff] %vm527, %v3136
        $region76: #{fast_guided_filter_refiner.1} parent=51 // pred_fallthru
          _
        %v3140 = vld [vmem:[#allocation11] sm:$0xf]
        %v3141 = vld [vmem:[#allocation11 + $0x4] sm:$0xf]
        %v3142 = vld [vmem:[#allocation11 + $0x8] sm:$0xf]
        %v3143 = vld [vmem:[#allocation11 + $0xc] sm:$0xf]
        %v3144 = vld [vmem:[%s7] sm:$0xf]
        %v3145 = vld [vmem:[%s7 + $0x4] sm:$0xf]
        %v3146 = vld [vmem:[%s426] sm:$0xff]
        %v3147 = vld [vmem:[%s426 + $0x8] sm:$0xff]
        %v3148 = vld [vmem:[%s426 + $0x10] sm:$0xff]
        %v3149 = vld [vmem:[%s426 + $0x18] sm:$0xff]
        %s3150 = scalar_lea.vmem %s426, 32 [#allocation9]
        %v3151 = vld [vmem:[%s3150] sm:$0xff]
        %v3152 = vld [vmem:[%s3150 + $0x8] sm:$0xff]
        %v3153 = vld [vmem:[%s3150 + $0x10] sm:$0xff]
        %v3154 = vld [vmem:[%s3150 + $0x18] sm:$0xff]
        %s3155 = scalar_lea.vmem %s426, 64 [#allocation9]
        %v3156 = vld [vmem:[%s3155] sm:$0xff]
        %v3157 = vld [vmem:[%s3155 + $0x8] sm:$0xff]
        %v3158 = vld [vmem:[%s3155 + $0x10] sm:$0xff]
        %v3159 = vld [vmem:[%s3155 + $0x18] sm:$0xff]
        %v3160 = vadd.f32 %v3146, %v3151
        %v3161 = vadd.f32 %v3147, %v3152
        %v3162 = vadd.f32 %v3148, %v3153
        %v3163 = vadd.f32 %v3149, %v3154
        %v3164 = vadd.f32 %v3160, %v3156
        %v3165 = vadd.f32 %v3161, %v3157
        %v3166 = vadd.f32 %v3162, %v3158
        %v3167 = vadd.f32 %v3163, %v3159
        %v3168 = vmul.f32 %v3164, 0.33333334
        %v3169 = vmul.f32 %v3165, 0.33333334
        %v3170 = vmul.f32 %v3166, 0.33333334
        %v3171 = vmul.f32 %v3167, 0.33333334
        %v3172 = vld [vmem:[#allocation2] sm:$0xff]
        %v3173 = vld [vmem:[#allocation2 + $0x8] sm:$0xff]
        %v3174 = vpack.c.bf16 %v3173, %v3172
        %v3179 = vunpack.c.l.b16 %v3140
        %v3180 = vunpack.c.l.b16 %v3141
        %v3181 = vunpack.c.l.b16 %v3142
        %v3182 = vunpack.c.l.b16 %v3143
        %v3183 = vpack.c.b16 %v3180, %v3179
        %v3184 = vpack.c.b16 %v3182, %v3181
        %vm3185 = vcmask 130048
        %v3187 = vsel %vm3185, %v3183, 0
        %v3190 = vsel %vm3185, %v3184, 0
        %3192 = vmatprep.subr.bf16.mxu0 0
        %3193 = vmatpush1.bf16.msra.mxu0 %v3174
        %3194 = vmatprep.subr.bf16.mxu0 0
        %3195 = vmatpush1.bf16.msra.mxu0 0
        %3196 = vmatprep.subr.bf16.mxu0 0
        %3197 = vmatpush1.bf16.msra.mxu0 0
        %3198 = vmatprep.subr.bf16.mxu0 0
        %3199 = vmatpush1.bf16.msra.mxu0 0
        %3200 = vmatprep.subr.bf16.mxu0 0
        %3201 = vmatpush1.bf16.msra.mxu0 0
        %3202 = vmatprep.subr.bf16.mxu0 0
        %3203 = vmatpush1.bf16.msra.mxu0 0
        %3204 = vmatprep.subr.bf16.mxu0 0
        %3205 = vmatpush1.bf16.msra.mxu0 0
        %3206 = vmatprep.subr.bf16.mxu0 0
        %3207 = vmatpush1.bf16.msra.mxu0 0
        %3208 = vmatprep.subr.bf16.mxu0 0
        %3209 = vmatpush1.bf16.msra.mxu0 0
        %3210 = vmatprep.subr.bf16.mxu0 0
        %3211 = vmatpush1.bf16.msra.mxu0 0
        %3212 = vmatprep.subr.bf16.mxu0 0
        %3213 = vmatpush1.bf16.msra.mxu0 0
        %3214 = vmatprep.subr.bf16.mxu0 0
        %3215 = vmatpush1.bf16.msra.mxu0 0
        %3216 = vmatprep.subr.bf16.mxu0 0
        %3217 = vmatpush1.bf16.msra.mxu0 0
        %3218 = vmatprep.subr.bf16.mxu0 0
        %3219 = vmatpush1.bf16.msra.mxu0 0
        %3220 = vmatprep.subr.bf16.mxu0 0
        %3221 = vmatpush1.bf16.msra.mxu0 0
        %3222 = vmatprep.subr.bf16.mxu0 0
        %3223 = vmatpush1.bf16.msra.mxu0 0
        %3224 = vmatprep.mubr.bf16.mxu0 0
        %3225 = vmatmul.mubr.bf16.gmra.mrb[0].mxu0 %v3187
        %v3226 = vpop.f32.mrb[0].mxu0
        %v3227 = vadd.f32 0.0, %v3226
        %v3228 = vpop.f32.mrb[0].mxu0
        %v3229 = vpop.f32.mrb[0].mxu0
        %v3230 = vadd.f32 0.0, %v3229
        %v3231 = vpop.f32.mrb[0].mxu0
        %3232 = vmatprep.mubr.bf16.mxu0 0
        %3233 = vmatmul.mubr.bf16.gmra.mrb[0].mxu0 %v3190
        %v3234 = vpop.f32.mrb[0].mxu0
        %v3235 = vadd.f32 0.0, %v3234
        %v3236 = vpop.f32.mrb[0].mxu0
        %v3237 = vpop.f32.mrb[0].mxu0
        %v3238 = vadd.f32 0.0, %v3237
        %v3239 = vpop.f32.mrb[0].mxu0
        %3240 = vdwg.mxu0
        %v3241 = vld [vmem:[#allocation3] sm:$0xff]
        %v3242 = vld [vmem:[#allocation3 + $0x8] sm:$0xff]
        %v3243 = vpack.c.bf16 %v3242, %v3241
        %3244 = vmatprep.subr.bf16.mxu0 0
        %3245 = vmatpush1.bf16.msra.mxu0 %v3243
        %3246 = vmatprep.subr.bf16.mxu0 0
        %3247 = vmatpush1.bf16.msra.mxu0 0
        %3248 = vmatprep.subr.bf16.mxu0 0
        %3249 = vmatpush1.bf16.msra.mxu0 0
        %3250 = vmatprep.subr.bf16.mxu0 0
        %3251 = vmatpush1.bf16.msra.mxu0 0
        %3252 = vmatprep.subr.bf16.mxu0 0
        %3253 = vmatpush1.bf16.msra.mxu0 0
        %3254 = vmatprep.subr.bf16.mxu0 0
        %3255 = vmatpush1.bf16.msra.mxu0 0
        %3256 = vmatprep.subr.bf16.mxu0 0
        %3257 = vmatpush1.bf16.msra.mxu0 0
        %3258 = vmatprep.subr.bf16.mxu0 0
        %3259 = vmatpush1.bf16.msra.mxu0 0
        %3260 = vmatprep.subr.bf16.mxu0 0
        %3261 = vmatpush1.bf16.msra.mxu0 0
        %3262 = vmatprep.subr.bf16.mxu0 0
        %3263 = vmatpush1.bf16.msra.mxu0 0
        %3264 = vmatprep.subr.bf16.mxu0 0
        %3265 = vmatpush1.bf16.msra.mxu0 0
        %3266 = vmatprep.subr.bf16.mxu0 0
        %3267 = vmatpush1.bf16.msra.mxu0 0
        %3268 = vmatprep.subr.bf16.mxu0 0
        %3269 = vmatpush1.bf16.msra.mxu0 0
        %3270 = vmatprep.subr.bf16.mxu0 0
        %3271 = vmatpush1.bf16.msra.mxu0 0
        %3272 = vmatprep.subr.bf16.mxu0 0
        %3273 = vmatpush1.bf16.msra.mxu0 0
        %3274 = vmatprep.subr.bf16.mxu0 0
        %3275 = vmatpush1.bf16.msra.mxu0 0
        %3276 = vmatprep.mubr.bf16.mxu0 0
        %3277 = vmatmul.mubr.bf16.gmra.mrb[0].mxu0 %v3187
        %v3278 = vpop.f32.mrb[0].mxu0
        %v3279 = vadd.f32 0.0, %v3278
        %v3280 = vpop.f32.mrb[0].mxu0
        %v3281 = vpop.f32.mrb[0].mxu0
        %v3282 = vadd.f32 0.0, %v3281
        %v3283 = vpop.f32.mrb[0].mxu0
        %3284 = vmatprep.mubr.bf16.mxu0 0
        %3285 = vmatmul.mubr.bf16.gmra.mrb[0].mxu0 %v3190
        %v3286 = vpop.f32.mrb[0].mxu0
        %v3287 = vadd.f32 0.0, %v3286
        %v3288 = vpop.f32.mrb[0].mxu0
        %v3289 = vpop.f32.mrb[0].mxu0
        %v3290 = vadd.f32 0.0, %v3289
        %v3291 = vpop.f32.mrb[0].mxu0
        %3292 = vdwg.mxu0
        %v3293 = vpack.c.bf16 %v3230, %v3227
        %v3294 = vpack.c.bf16 %v3238, %v3235
        %v3297 = vunpack.c.l.b16 %v3144
        %v3298 = vunpack.c.l.b16 %v3145
        %v3299 = vpack.c.b16 %v3298, %v3297
        %v3302 = vsel %vm3185, %v3293, 0
        %v3305 = vsel %vm3185, %v3294, 0
        %3307 = vmatprep.subr.bf16.mxu0 0
        %3308 = vmatpush1.bf16.msra.mxu0 %v3299
        %3309 = vmatprep.subr.bf16.mxu0 0
        %3310 = vmatpush1.bf16.msra.mxu0 0
        %3311 = vmatprep.subr.bf16.mxu0 0
        %3312 = vmatpush1.bf16.msra.mxu0 0
        %3313 = vmatprep.subr.bf16.mxu0 0
        %3314 = vmatpush1.bf16.msra.mxu0 0
        %3315 = vmatprep.subr.bf16.mxu0 0
        %3316 = vmatpush1.bf16.msra.mxu0 0
        %3317 = vmatprep.subr.bf16.mxu0 0
        %3318 = vmatpush1.bf16.msra.mxu0 0
        %3319 = vmatprep.subr.bf16.mxu0 0
        %3320 = vmatpush1.bf16.msra.mxu0 0
        %3321 = vmatprep.subr.bf16.mxu0 0
        %3322 = vmatpush1.bf16.msra.mxu0 0
        %3323 = vmatprep.subr.bf16.mxu0 0
        %3324 = vmatpush1.bf16.msra.mxu0 0
        %3325 = vmatprep.subr.bf16.mxu0 0
        %3326 = vmatpush1.bf16.msra.mxu0 0
        %3327 = vmatprep.subr.bf16.mxu0 0
        %3328 = vmatpush1.bf16.msra.mxu0 0
        %3329 = vmatprep.subr.bf16.mxu0 0
        %3330 = vmatpush1.bf16.msra.mxu0 0
        %3331 = vmatprep.subr.bf16.mxu0 0
        %3332 = vmatpush1.bf16.msra.mxu0 0
        %3333 = vmatprep.subr.bf16.mxu0 0
        %3334 = vmatpush1.bf16.msra.mxu0 0
        %3335 = vmatprep.subr.bf16.mxu0 0
        %3336 = vmatpush1.bf16.msra.mxu0 0
        %3337 = vmatprep.subr.bf16.mxu0 0
        %3338 = vmatpush1.bf16.msra.mxu0 0
        %3339 = vmatprep.mubr.bf16.mxu0 0
        %3340 = vmatmul.mubr.bf16.gmra.mrb[0].mxu0 %v3302
        %v3341 = vpop.f32.mrb[0].mxu0
        %v3342 = vadd.f32 0.0, %v3341
        %v3343 = vpop.f32.mrb[0].mxu0
        %v3344 = vpop.f32.mrb[0].mxu0
        %v3345 = vadd.f32 0.0, %v3344
        %v3346 = vpop.f32.mrb[0].mxu0
        %3347 = vmatprep.mubr.bf16.mxu0 0
        %3348 = vmatmul.mubr.bf16.gmra.mrb[0].mxu0 %v3305
        %v3349 = vpop.f32.mrb[0].mxu0
        %v3350 = vadd.f32 0.0, %v3349
        %v3351 = vpop.f32.mrb[0].mxu0
        %v3352 = vpop.f32.mrb[0].mxu0
        %v3353 = vadd.f32 0.0, %v3352
        %v3354 = vpop.f32.mrb[0].mxu0
        %3355 = vdwg.mxu0
        %v3356 = vpack.c.bf16 %v3282, %v3279
        %v3357 = vpack.c.bf16 %v3290, %v3287
        %v3359 = vsel %vm3185, %v3356, 0
        %v3362 = vsel %vm3185, %v3357, 0
        %3364 = vmatprep.subr.bf16.mxu0 0
        %3365 = vmatpush1.bf16.msra.mxu0 %v3299
        %3366 = vmatprep.subr.bf16.mxu0 0
        %3367 = vmatpush1.bf16.msra.mxu0 0
        %3368 = vmatprep.subr.bf16.mxu0 0
        %3369 = vmatpush1.bf16.msra.mxu0 0
        %3370 = vmatprep.subr.bf16.mxu0 0
        %3371 = vmatpush1.bf16.msra.mxu0 0
        %3372 = vmatprep.subr.bf16.mxu0 0
        %3373 = vmatpush1.bf16.msra.mxu0 0
        %3374 = vmatprep.subr.bf16.mxu0 0
        %3375 = vmatpush1.bf16.msra.mxu0 0
        %3376 = vmatprep.subr.bf16.mxu0 0
        %3377 = vmatpush1.bf16.msra.mxu0 0
        %3378 = vmatprep.subr.bf16.mxu0 0
        %3379 = vmatpush1.bf16.msra.mxu0 0
        %3380 = vmatprep.subr.bf16.mxu0 0
        %3381 = vmatpush1.bf16.msra.mxu0 0
        %3382 = vmatprep.subr.bf16.mxu0 0
        %3383 = vmatpush1.bf16.msra.mxu0 0
        %3384 = vmatprep.subr.bf16.mxu0 0
        %3385 = vmatpush1.bf16.msra.mxu0 0
        %3386 = vmatprep.subr.bf16.mxu0 0
        %3387 = vmatpush1.bf16.msra.mxu0 0
        %3388 = vmatprep.subr.bf16.mxu0 0
        %3389 = vmatpush1.bf16.msra.mxu0 0
        %3390 = vmatprep.subr.bf16.mxu0 0
        %3391 = vmatpush1.bf16.msra.mxu0 0
        %3392 = vmatprep.subr.bf16.mxu0 0
        %3393 = vmatpush1.bf16.msra.mxu0 0
        %3394 = vmatprep.subr.bf16.mxu0 0
        %3395 = vmatpush1.bf16.msra.mxu0 0
        %3396 = vmatprep.mubr.bf16.mxu0 0
        %3397 = vmatmul.mubr.bf16.gmra.mrb[0].mxu0 %v3359
        %v3398 = vpop.f32.mrb[0].mxu0
        %v3399 = vadd.f32 0.0, %v3398
        %v3400 = vpop.f32.mrb[0].mxu0
        %v3401 = vpop.f32.mrb[0].mxu0
        %v3402 = vadd.f32 0.0, %v3401
        %v3403 = vpop.f32.mrb[0].mxu0
        %3404 = vmatprep.mubr.bf16.mxu0 0
        %3405 = vmatmul.mubr.bf16.gmra.mrb[0].mxu0 %v3362
        %v3406 = vpop.f32.mrb[0].mxu0
        %v3407 = vadd.f32 0.0, %v3406
        %v3408 = vpop.f32.mrb[0].mxu0
        %v3409 = vpop.f32.mrb[0].mxu0
        %v3410 = vadd.f32 0.0, %v3409
        %v3411 = vpop.f32.mrb[0].mxu0
        %3412 = vdwg.mxu0
        %v3413 = vmul.f32 %v3342, %v3146
        %v3414 = vmul.f32 %v3345, %v3147
        %v3415 = vmul.f32 %v3350, %v3148
        %v3416 = vmul.f32 %v3353, %v3149
        %v3417 = vadd.f32 %v3413, %v3399
        %v3418 = vadd.f32 %v3414, %v3402
        %v3419 = vadd.f32 %v3415, %v3407
        %v3420 = vadd.f32 %v3416, %v3410
        %vm3421 = vcmask 261120
        %3422 = vst.msk [vmem:[%s492] sm:$0xff] %vm3421, %v3417
        %3423 = vst.msk [vmem:[%s492 + $0x8] sm:$0xff] %vm3421, %v3418
        %3424 = vst.msk [vmem:[%s492 + $0x10] sm:$0xff] %vm3421, %v3419
        %3425 = vst.msk [vmem:[%s492 + $0x18] sm:$0xff] %vm3421, %v3420
        %s3426 = scalar_lea.vmem [#allocation2], 16
        %v3427 = vld [vmem:[%s3426] sm:$0xff]
        %v3428 = vld [vmem:[%s3426 + $0x8] sm:$0xff]
        %v3429 = vpack.c.bf16 %v3428, %v3427
        %3430 = vmatprep.subr.bf16.mxu0 0
        %3431 = vmatpush1.bf16.msra.mxu0 %v3429
        %3432 = vmatprep.subr.bf16.mxu0 0
        %3433 = vmatpush1.bf16.msra.mxu0 0
        %3434 = vmatprep.subr.bf16.mxu0 0
        %3435 = vmatpush1.bf16.msra.mxu0 0
        %3436 = vmatprep.subr.bf16.mxu0 0
        %3437 = vmatpush1.bf16.msra.mxu0 0
        %3438 = vmatprep.subr.bf16.mxu0 0
        %3439 = vmatpush1.bf16.msra.mxu0 0
        %3440 = vmatprep.subr.bf16.mxu0 0
        %3441 = vmatpush1.bf16.msra.mxu0 0
        %3442 = vmatprep.subr.bf16.mxu0 0
        %3443 = vmatpush1.bf16.msra.mxu0 0
        %3444 = vmatprep.subr.bf16.mxu0 0
        %3445 = vmatpush1.bf16.msra.mxu0 0
        %3446 = vmatprep.subr.bf16.mxu0 0
        %3447 = vmatpush1.bf16.msra.mxu0 0
        %3448 = vmatprep.subr.bf16.mxu0 0
        %3449 = vmatpush1.bf16.msra.mxu0 0
        %3450 = vmatprep.subr.bf16.mxu0 0
        %3451 = vmatpush1.bf16.msra.mxu0 0
        %3452 = vmatprep.subr.bf16.mxu0 0
        %3453 = vmatpush1.bf16.msra.mxu0 0
        %3454 = vmatprep.subr.bf16.mxu0 0
        %3455 = vmatpush1.bf16.msra.mxu0 0
        %3456 = vmatprep.subr.bf16.mxu0 0
        %3457 = vmatpush1.bf16.msra.mxu0 0
        %3458 = vmatprep.subr.bf16.mxu0 0
        %3459 = vmatpush1.bf16.msra.mxu0 0
        %3460 = vmatprep.subr.bf16.mxu0 0
        %3461 = vmatpush1.bf16.msra.mxu0 0
        %3462 = vmatprep.mubr.bf16.mxu0 0
        %3463 = vmatmul.mubr.bf16.gmra.mrb[0].mxu0 %v3187
        %v3464 = vpop.f32.mrb[0].mxu0
        %v3465 = vadd.f32 0.0, %v3464
        %v3466 = vpop.f32.mrb[0].mxu0
        %v3467 = vpop.f32.mrb[0].mxu0
        %v3468 = vadd.f32 0.0, %v3467
        %v3469 = vpop.f32.mrb[0].mxu0
        %3470 = vmatprep.mubr.bf16.mxu0 0
        %3471 = vmatmul.mubr.bf16.gmra.mrb[0].mxu0 %v3190
        %v3472 = vpop.f32.mrb[0].mxu0
        %v3473 = vadd.f32 0.0, %v3472
        %v3474 = vpop.f32.mrb[0].mxu0
        %v3475 = vpop.f32.mrb[0].mxu0
        %v3476 = vadd.f32 0.0, %v3475
        %v3477 = vpop.f32.mrb[0].mxu0
        %3478 = vdwg.mxu0
        %s3479 = scalar_lea.vmem [#allocation3], 16
        %v3480 = vld [vmem:[%s3479] sm:$0xff]
        %v3481 = vld [vmem:[%s3479 + $0x8] sm:$0xff]
        %v3482 = vpack.c.bf16 %v3481, %v3480
        %3483 = vmatprep.subr.bf16.mxu0 0
        %3484 = vmatpush1.bf16.msra.mxu0 %v3482
        %3485 = vmatprep.subr.bf16.mxu0 0
        %3486 = vmatpush1.bf16.msra.mxu0 0
        %3487 = vmatprep.subr.bf16.mxu0 0
        %3488 = vmatpush1.bf16.msra.mxu0 0
        %3489 = vmatprep.subr.bf16.mxu0 0
        %3490 = vmatpush1.bf16.msra.mxu0 0
        %3491 = vmatprep.subr.bf16.mxu0 0
        %3492 = vmatpush1.bf16.msra.mxu0 0
        %3493 = vmatprep.subr.bf16.mxu0 0
        %3494 = vmatpush1.bf16.msra.mxu0 0
        %3495 = vmatprep.subr.bf16.mxu0 0
        %3496 = vmatpush1.bf16.msra.mxu0 0
        %3497 = vmatprep.subr.bf16.mxu0 0
        %3498 = vmatpush1.bf16.msra.mxu0 0
        %3499 = vmatprep.subr.bf16.mxu0 0
        %3500 = vmatpush1.bf16.msra.mxu0 0
        %3501 = vmatprep.subr.bf16.mxu0 0
        %3502 = vmatpush1.bf16.msra.mxu0 0
        %3503 = vmatprep.subr.bf16.mxu0 0
        %3504 = vmatpush1.bf16.msra.mxu0 0
        %3505 = vmatprep.subr.bf16.mxu0 0
        %3506 = vmatpush1.bf16.msra.mxu0 0
        %3507 = vmatprep.subr.bf16.mxu0 0
        %3508 = vmatpush1.bf16.msra.mxu0 0
        %3509 = vmatprep.subr.bf16.mxu0 0
        %3510 = vmatpush1.bf16.msra.mxu0 0
        %3511 = vmatprep.subr.bf16.mxu0 0
        %3512 = vmatpush1.bf16.msra.mxu0 0
        %3513 = vmatprep.subr.bf16.mxu0 0
        %3514 = vmatpush1.bf16.msra.mxu0 0
        %3515 = vmatprep.mubr.bf16.mxu0 0
        %3516 = vmatmul.mubr.bf16.gmra.mrb[0].mxu0 %v3187
        %v3517 = vpop.f32.mrb[0].mxu0
        %v3518 = vadd.f32 0.0, %v3517
        %v3519 = vpop.f32.mrb[0].mxu0
        %v3520 = vpop.f32.mrb[0].mxu0
        %v3521 = vadd.f32 0.0, %v3520
        %v3522 = vpop.f32.mrb[0].mxu0
        %3523 = vmatprep.mubr.bf16.mxu0 0
        %3524 = vmatmul.mubr.bf16.gmra.mrb[0].mxu0 %v3190
        %v3525 = vpop.f32.mrb[0].mxu0
        %v3526 = vadd.f32 0.0, %v3525
        %v3527 = vpop.f32.mrb[0].mxu0
        %v3528 = vpop.f32.mrb[0].mxu0
        %v3529 = vadd.f32 0.0, %v3528
        %v3530 = vpop.f32.mrb[0].mxu0
        %3531 = vdwg.mxu0
        %v3532 = vpack.c.bf16 %v3468, %v3465
        %v3533 = vpack.c.bf16 %v3476, %v3473
        %v3535 = vsel %vm3185, %v3532, 0
        %v3538 = vsel %vm3185, %v3533, 0
        %3540 = vmatprep.subr.bf16.mxu0 0
        %3541 = vmatpush1.bf16.msra.mxu0 %v3299
        %3542 = vmatprep.subr.bf16.mxu0 0
        %3543 = vmatpush1.bf16.msra.mxu0 0
        %3544 = vmatprep.subr.bf16.mxu0 0
        %3545 = vmatpush1.bf16.msra.mxu0 0
        %3546 = vmatprep.subr.bf16.mxu0 0
        %3547 = vmatpush1.bf16.msra.mxu0 0
        %3548 = vmatprep.subr.bf16.mxu0 0
        %3549 = vmatpush1.bf16.msra.mxu0 0
        %3550 = vmatprep.subr.bf16.mxu0 0
        %3551 = vmatpush1.bf16.msra.mxu0 0
        %3552 = vmatprep.subr.bf16.mxu0 0
        %3553 = vmatpush1.bf16.msra.mxu0 0
        %3554 = vmatprep.subr.bf16.mxu0 0
        %3555 = vmatpush1.bf16.msra.mxu0 0
        %3556 = vmatprep.subr.bf16.mxu0 0
        %3557 = vmatpush1.bf16.msra.mxu0 0
        %3558 = vmatprep.subr.bf16.mxu0 0
        %3559 = vmatpush1.bf16.msra.mxu0 0
        %3560 = vmatprep.subr.bf16.mxu0 0
        %3561 = vmatpush1.bf16.msra.mxu0 0
        %3562 = vmatprep.subr.bf16.mxu0 0
        %3563 = vmatpush1.bf16.msra.mxu0 0
        %3564 = vmatprep.subr.bf16.mxu0 0
        %3565 = vmatpush1.bf16.msra.mxu0 0
        %3566 = vmatprep.subr.bf16.mxu0 0
        %3567 = vmatpush1.bf16.msra.mxu0 0
        %3568 = vmatprep.subr.bf16.mxu0 0
        %3569 = vmatpush1.bf16.msra.mxu0 0
        %3570 = vmatprep.subr.bf16.mxu0 0
        %3571 = vmatpush1.bf16.msra.mxu0 0
        %3572 = vmatprep.mubr.bf16.mxu0 0
        %3573 = vmatmul.mubr.bf16.gmra.mrb[0].mxu0 %v3535
        %v3574 = vpop.f32.mrb[0].mxu0
        %v3575 = vadd.f32 0.0, %v3574
        %v3576 = vpop.f32.mrb[0].mxu0
        %v3577 = vpop.f32.mrb[0].mxu0
        %v3578 = vadd.f32 0.0, %v3577
        %v3579 = vpop.f32.mrb[0].mxu0
        %3580 = vmatprep.mubr.bf16.mxu0 0
        %3581 = vmatmul.mubr.bf16.gmra.mrb[0].mxu0 %v3538
        %v3582 = vpop.f32.mrb[0].mxu0
        %v3583 = vadd.f32 0.0, %v3582
        %v3584 = vpop.f32.mrb[0].mxu0
        %v3585 = vpop.f32.mrb[0].mxu0
        %v3586 = vadd.f32 0.0, %v3585
        %v3587 = vpop.f32.mrb[0].mxu0
        %3588 = vdwg.mxu0
        %v3589 = vpack.c.bf16 %v3521, %v3518
        %v3590 = vpack.c.bf16 %v3529, %v3526
        %v3592 = vsel %vm3185, %v3589, 0
        %v3595 = vsel %vm3185, %v3590, 0
        %3597 = vmatprep.subr.bf16.mxu0 0
        %3598 = vmatpush1.bf16.msra.mxu0 %v3299
        %3599 = vmatprep.subr.bf16.mxu0 0
        %3600 = vmatpush1.bf16.msra.mxu0 0
        %3601 = vmatprep.subr.bf16.mxu0 0
        %3602 = vmatpush1.bf16.msra.mxu0 0
        %3603 = vmatprep.subr.bf16.mxu0 0
        %3604 = vmatpush1.bf16.msra.mxu0 0
        %3605 = vmatprep.subr.bf16.mxu0 0
        %3606 = vmatpush1.bf16.msra.mxu0 0
        %3607 = vmatprep.subr.bf16.mxu0 0
        %3608 = vmatpush1.bf16.msra.mxu0 0
        %3609 = vmatprep.subr.bf16.mxu0 0
        %3610 = vmatpush1.bf16.msra.mxu0 0
        %3611 = vmatprep.subr.bf16.mxu0 0
        %3612 = vmatpush1.bf16.msra.mxu0 0
        %3613 = vmatprep.subr.bf16.mxu0 0
        %3614 = vmatpush1.bf16.msra.mxu0 0
        %3615 = vmatprep.subr.bf16.mxu0 0
        %3616 = vmatpush1.bf16.msra.mxu0 0
        %3617 = vmatprep.subr.bf16.mxu0 0
        %3618 = vmatpush1.bf16.msra.mxu0 0
        %3619 = vmatprep.subr.bf16.mxu0 0
        %3620 = vmatpush1.bf16.msra.mxu0 0
        %3621 = vmatprep.subr.bf16.mxu0 0
        %3622 = vmatpush1.bf16.msra.mxu0 0
        %3623 = vmatprep.subr.bf16.mxu0 0
        %3624 = vmatpush1.bf16.msra.mxu0 0
        %3625 = vmatprep.subr.bf16.mxu0 0
        %3626 = vmatpush1.bf16.msra.mxu0 0
        %3627 = vmatprep.subr.bf16.mxu0 0
        %3628 = vmatpush1.bf16.msra.mxu0 0
        %3629 = vmatprep.mubr.bf16.mxu0 0
        %3630 = vmatmul.mubr.bf16.gmra.mrb[0].mxu0 %v3592
        %v3631 = vpop.f32.mrb[0].mxu0
        %v3632 = vadd.f32 0.0, %v3631
        %v3633 = vpop.f32.mrb[0].mxu0
        %v3634 = vpop.f32.mrb[0].mxu0
        %v3635 = vadd.f32 0.0, %v3634
        %v3636 = vpop.f32.mrb[0].mxu0
        %3637 = vmatprep.mubr.bf16.mxu0 0
        %3638 = vmatmul.mubr.bf16.gmra.mrb[0].mxu0 %v3595
        %v3639 = vpop.f32.mrb[0].mxu0
        %v3640 = vadd.f32 0.0, %v3639
        %v3641 = vpop.f32.mrb[0].mxu0
        %v3642 = vpop.f32.mrb[0].mxu0
        %v3643 = vadd.f32 0.0, %v3642
        %v3644 = vpop.f32.mrb[0].mxu0
        %3645 = vdwg.mxu0
        %v3646 = vmul.f32 %v3575, %v3151
        %v3647 = vmul.f32 %v3578, %v3152
        %v3648 = vmul.f32 %v3583, %v3153
        %v3649 = vmul.f32 %v3586, %v3154
        %v3650 = vadd.f32 %v3646, %v3632
        %v3651 = vadd.f32 %v3647, %v3635
        %v3652 = vadd.f32 %v3648, %v3640
        %v3653 = vadd.f32 %v3649, %v3643
        %s3654 = scalar_lea.vmem %s492, 32
        %3655 = vst.msk [vmem:[%s3654] sm:$0xff] %vm3421, %v3650
        %3656 = vst.msk [vmem:[%s3654 + $0x8] sm:$0xff] %vm3421, %v3651
        %3657 = vst.msk [vmem:[%s3654 + $0x10] sm:$0xff] %vm3421, %v3652
        %3658 = vst.msk [vmem:[%s3654 + $0x18] sm:$0xff] %vm3421, %v3653
        %s3659 = scalar_lea.vmem [#allocation2], 32
        %v3660 = vld [vmem:[%s3659] sm:$0xff]
        %v3661 = vld [vmem:[%s3659 + $0x8] sm:$0xff]
        %v3662 = vpack.c.bf16 %v3661, %v3660
        %3663 = vmatprep.subr.bf16.mxu0 0
        %3664 = vmatpush1.bf16.msra.mxu0 %v3662
        %3665 = vmatprep.subr.bf16.mxu0 0
        %3666 = vmatpush1.bf16.msra.mxu0 0
        %3667 = vmatprep.subr.bf16.mxu0 0
        %3668 = vmatpush1.bf16.msra.mxu0 0
        %3669 = vmatprep.subr.bf16.mxu0 0
        %3670 = vmatpush1.bf16.msra.mxu0 0
        %3671 = vmatprep.subr.bf16.mxu0 0
        %3672 = vmatpush1.bf16.msra.mxu0 0
        %3673 = vmatprep.subr.bf16.mxu0 0
        %3674 = vmatpush1.bf16.msra.mxu0 0
        %3675 = vmatprep.subr.bf16.mxu0 0
        %3676 = vmatpush1.bf16.msra.mxu0 0
        %3677 = vmatprep.subr.bf16.mxu0 0
        %3678 = vmatpush1.bf16.msra.mxu0 0
        %3679 = vmatprep.subr.bf16.mxu0 0
        %3680 = vmatpush1.bf16.msra.mxu0 0
        %3681 = vmatprep.subr.bf16.mxu0 0
        %3682 = vmatpush1.bf16.msra.mxu0 0
        %3683 = vmatprep.subr.bf16.mxu0 0
        %3684 = vmatpush1.bf16.msra.mxu0 0
        %3685 = vmatprep.subr.bf16.mxu0 0
        %3686 = vmatpush1.bf16.msra.mxu0 0
        %3687 = vmatprep.subr.bf16.mxu0 0
        %3688 = vmatpush1.bf16.msra.mxu0 0
        %3689 = vmatprep.subr.bf16.mxu0 0
        %3690 = vmatpush1.bf16.msra.mxu0 0
        %3691 = vmatprep.subr.bf16.mxu0 0
        %3692 = vmatpush1.bf16.msra.mxu0 0
        %3693 = vmatprep.subr.bf16.mxu0 0
        %3694 = vmatpush1.bf16.msra.mxu0 0
        %3695 = vmatprep.mubr.bf16.mxu0 0
        %3696 = vmatmul.mubr.bf16.gmra.mrb[0].mxu0 %v3187
        %v3697 = vpop.f32.mrb[0].mxu0
        %v3698 = vadd.f32 0.0, %v3697
        %v3699 = vpop.f32.mrb[0].mxu0
        %v3700 = vpop.f32.mrb[0].mxu0
        %v3701 = vadd.f32 0.0, %v3700
        %v3702 = vpop.f32.mrb[0].mxu0
        %3703 = vmatprep.mubr.bf16.mxu0 0
        %3704 = vmatmul.mubr.bf16.gmra.mrb[0].mxu0 %v3190
        %v3705 = vpop.f32.mrb[0].mxu0
        %v3706 = vadd.f32 0.0, %v3705
        %v3707 = vpop.f32.mrb[0].mxu0
        %v3708 = vpop.f32.mrb[0].mxu0
        %v3709 = vadd.f32 0.0, %v3708
        %v3710 = vpop.f32.mrb[0].mxu0
        %3711 = vdwg.mxu0
        %s3712 = scalar_lea.vmem [#allocation3], 32
        %v3713 = vld [vmem:[%s3712] sm:$0xff]
        %v3714 = vld [vmem:[%s3712 + $0x8] sm:$0xff]
        %v3715 = vpack.c.bf16 %v3714, %v3713
        %3716 = vmatprep.subr.bf16.mxu0 0
        %3717 = vmatpush1.bf16.msra.mxu0 %v3715
        %3718 = vmatprep.subr.bf16.mxu0 0
        %3719 = vmatpush1.bf16.msra.mxu0 0
        %3720 = vmatprep.subr.bf16.mxu0 0
        %3721 = vmatpush1.bf16.msra.mxu0 0
        %3722 = vmatprep.subr.bf16.mxu0 0
        %3723 = vmatpush1.bf16.msra.mxu0 0
        %3724 = vmatprep.subr.bf16.mxu0 0
        %3725 = vmatpush1.bf16.msra.mxu0 0
        %3726 = vmatprep.subr.bf16.mxu0 0
        %3727 = vmatpush1.bf16.msra.mxu0 0
        %3728 = vmatprep.subr.bf16.mxu0 0
        %3729 = vmatpush1.bf16.msra.mxu0 0
        %3730 = vmatprep.subr.bf16.mxu0 0
        %3731 = vmatpush1.bf16.msra.mxu0 0
        %3732 = vmatprep.subr.bf16.mxu0 0
        %3733 = vmatpush1.bf16.msra.mxu0 0
        %3734 = vmatprep.subr.bf16.mxu0 0
        %3735 = vmatpush1.bf16.msra.mxu0 0
        %3736 = vmatprep.subr.bf16.mxu0 0
        %3737 = vmatpush1.bf16.msra.mxu0 0
        %3738 = vmatprep.subr.bf16.mxu0 0
        %3739 = vmatpush1.bf16.msra.mxu0 0
        %3740 = vmatprep.subr.bf16.mxu0 0
        %3741 = vmatpush1.bf16.msra.mxu0 0
        %3742 = vmatprep.subr.bf16.mxu0 0
        %3743 = vmatpush1.bf16.msra.mxu0 0
        %3744 = vmatprep.subr.bf16.mxu0 0
        %3745 = vmatpush1.bf16.msra.mxu0 0
        %3746 = vmatprep.subr.bf16.mxu0 0
        %3747 = vmatpush1.bf16.msra.mxu0 0
        %3748 = vmatprep.mubr.bf16.mxu0 0
        %3749 = vmatmul.mubr.bf16.gmra.mrb[0].mxu0 %v3187
        %v3750 = vpop.f32.mrb[0].mxu0
        %v3751 = vadd.f32 0.0, %v3750
        %v3752 = vpop.f32.mrb[0].mxu0
        %v3753 = vpop.f32.mrb[0].mxu0
        %v3754 = vadd.f32 0.0, %v3753
        %v3755 = vpop.f32.mrb[0].mxu0
        %3756 = vmatprep.mubr.bf16.mxu0 0
        %3757 = vmatmul.mubr.bf16.gmra.mrb[0].mxu0 %v3190
        %v3758 = vpop.f32.mrb[0].mxu0
        %v3759 = vadd.f32 0.0, %v3758
        %v3760 = vpop.f32.mrb[0].mxu0
        %v3761 = vpop.f32.mrb[0].mxu0
        %v3762 = vadd.f32 0.0, %v3761
        %v3763 = vpop.f32.mrb[0].mxu0
        %3764 = vdwg.mxu0
        %v3765 = vpack.c.bf16 %v3701, %v3698
        %v3766 = vpack.c.bf16 %v3709, %v3706
        %v3768 = vsel %vm3185, %v3765, 0
        %v3771 = vsel %vm3185, %v3766, 0
        %3773 = vmatprep.subr.bf16.mxu0 0
        %3774 = vmatpush1.bf16.msra.mxu0 %v3299
        %3775 = vmatprep.subr.bf16.mxu0 0
        %3776 = vmatpush1.bf16.msra.mxu0 0
        %3777 = vmatprep.subr.bf16.mxu0 0
        %3778 = vmatpush1.bf16.msra.mxu0 0
        %3779 = vmatprep.subr.bf16.mxu0 0
        %3780 = vmatpush1.bf16.msra.mxu0 0
        %3781 = vmatprep.subr.bf16.mxu0 0
        %3782 = vmatpush1.bf16.msra.mxu0 0
        %3783 = vmatprep.subr.bf16.mxu0 0
        %3784 = vmatpush1.bf16.msra.mxu0 0
        %3785 = vmatprep.subr.bf16.mxu0 0
        %3786 = vmatpush1.bf16.msra.mxu0 0
        %3787 = vmatprep.subr.bf16.mxu0 0
        %3788 = vmatpush1.bf16.msra.mxu0 0
        %3789 = vmatprep.subr.bf16.mxu0 0
        %3790 = vmatpush1.bf16.msra.mxu0 0
        %3791 = vmatprep.subr.bf16.mxu0 0
        %3792 = vmatpush1.bf16.msra.mxu0 0
        %3793 = vmatprep.subr.bf16.mxu0 0
        %3794 = vmatpush1.bf16.msra.mxu0 0
        %3795 = vmatprep.subr.bf16.mxu0 0
        %3796 = vmatpush1.bf16.msra.mxu0 0
        %3797 = vmatprep.subr.bf16.mxu0 0
        %3798 = vmatpush1.bf16.msra.mxu0 0
        %3799 = vmatprep.subr.bf16.mxu0 0
        %3800 = vmatpush1.bf16.msra.mxu0 0
        %3801 = vmatprep.subr.bf16.mxu0 0
        %3802 = vmatpush1.bf16.msra.mxu0 0
        %3803 = vmatprep.subr.bf16.mxu0 0
        %3804 = vmatpush1.bf16.msra.mxu0 0
        %3805 = vmatprep.mubr.bf16.mxu0 0
        %3806 = vmatmul.mubr.bf16.gmra.mrb[0].mxu0 %v3768
        %v3807 = vpop.f32.mrb[0].mxu0
        %v3808 = vadd.f32 0.0, %v3807
        %v3809 = vpop.f32.mrb[0].mxu0
        %v3810 = vpop.f32.mrb[0].mxu0
        %v3811 = vadd.f32 0.0, %v3810
        %v3812 = vpop.f32.mrb[0].mxu0
        %3813 = vmatprep.mubr.bf16.mxu0 0
        %3814 = vmatmul.mubr.bf16.gmra.mrb[0].mxu0 %v3771
        %v3815 = vpop.f32.mrb[0].mxu0
        %v3816 = vadd.f32 0.0, %v3815
        %v3817 = vpop.f32.mrb[0].mxu0
        %v3818 = vpop.f32.mrb[0].mxu0
        %v3819 = vadd.f32 0.0, %v3818
        %v3820 = vpop.f32.mrb[0].mxu0
        %3821 = vdwg.mxu0
        %v3822 = vpack.c.bf16 %v3754, %v3751
        %v3823 = vpack.c.bf16 %v3762, %v3759
        %v3825 = vsel %vm3185, %v3822, 0
        %v3828 = vsel %vm3185, %v3823, 0
        %3830 = vmatprep.subr.bf16.mxu0 0
        %3831 = vmatpush1.bf16.msra.mxu0 %v3299
        %3832 = vmatprep.subr.bf16.mxu0 0
        %3833 = vmatpush1.bf16.msra.mxu0 0
        %3834 = vmatprep.subr.bf16.mxu0 0
        %3835 = vmatpush1.bf16.msra.mxu0 0
        %3836 = vmatprep.subr.bf16.mxu0 0
        %3837 = vmatpush1.bf16.msra.mxu0 0
        %3838 = vmatprep.subr.bf16.mxu0 0
        %3839 = vmatpush1.bf16.msra.mxu0 0
        %3840 = vmatprep.subr.bf16.mxu0 0
        %3841 = vmatpush1.bf16.msra.mxu0 0
        %3842 = vmatprep.subr.bf16.mxu0 0
        %3843 = vmatpush1.bf16.msra.mxu0 0
        %3844 = vmatprep.subr.bf16.mxu0 0
        %3845 = vmatpush1.bf16.msra.mxu0 0
        %3846 = vmatprep.subr.bf16.mxu0 0
        %3847 = vmatpush1.bf16.msra.mxu0 0
        %3848 = vmatprep.subr.bf16.mxu0 0
        %3849 = vmatpush1.bf16.msra.mxu0 0
        %3850 = vmatprep.subr.bf16.mxu0 0
        %3851 = vmatpush1.bf16.msra.mxu0 0
        %3852 = vmatprep.subr.bf16.mxu0 0
        %3853 = vmatpush1.bf16.msra.mxu0 0
        %3854 = vmatprep.subr.bf16.mxu0 0
        %3855 = vmatpush1.bf16.msra.mxu0 0
        %3856 = vmatprep.subr.bf16.mxu0 0
        %3857 = vmatpush1.bf16.msra.mxu0 0
        %3858 = vmatprep.subr.bf16.mxu0 0
        %3859 = vmatpush1.bf16.msra.mxu0 0
        %3860 = vmatprep.subr.bf16.mxu0 0
        %3861 = vmatpush1.bf16.msra.mxu0 0
        %3862 = vmatprep.mubr.bf16.mxu0 0
        %3863 = vmatmul.mubr.bf16.gmra.mrb[0].mxu0 %v3825
        %v3864 = vpop.f32.mrb[0].mxu0
        %v3865 = vadd.f32 0.0, %v3864
        %v3866 = vpop.f32.mrb[0].mxu0
        %v3867 = vpop.f32.mrb[0].mxu0
        %v3868 = vadd.f32 0.0, %v3867
        %v3869 = vpop.f32.mrb[0].mxu0
        %3870 = vmatprep.mubr.bf16.mxu0 0
        %3871 = vmatmul.mubr.bf16.gmra.mrb[0].mxu0 %v3828
        %v3872 = vpop.f32.mrb[0].mxu0
        %v3873 = vadd.f32 0.0, %v3872
        %v3874 = vpop.f32.mrb[0].mxu0
        %v3875 = vpop.f32.mrb[0].mxu0
        %v3876 = vadd.f32 0.0, %v3875
        %v3877 = vpop.f32.mrb[0].mxu0
        %3878 = vdwg.mxu0
        %v3879 = vmul.f32 %v3808, %v3156
        %v3880 = vmul.f32 %v3811, %v3157
        %v3881 = vmul.f32 %v3816, %v3158
        %v3882 = vmul.f32 %v3819, %v3159
        %v3883 = vadd.f32 %v3879, %v3865
        %v3884 = vadd.f32 %v3880, %v3868
        %v3885 = vadd.f32 %v3881, %v3873
        %v3886 = vadd.f32 %v3882, %v3876
        %s3887 = scalar_lea.vmem %s492, 64
        %3888 = vst.msk [vmem:[%s3887] sm:$0xff] %vm3421, %v3883
        %3889 = vst.msk [vmem:[%s3887 + $0x8] sm:$0xff] %vm3421, %v3884
        %3890 = vst.msk [vmem:[%s3887 + $0x10] sm:$0xff] %vm3421, %v3885
        %3891 = vst.msk [vmem:[%s3887 + $0x18] sm:$0xff] %vm3421, %v3886
        %s3892 = scalar_lea.vmem [#allocation2], 48
        %v3893 = vld [vmem:[%s3892] sm:$0xff]
        %v3894 = vld [vmem:[%s3892 + $0x8] sm:$0xff]
        %v3895 = vpack.c.bf16 %v3894, %v3893
        %3896 = vmatprep.subr.bf16.mxu0 0
        %3897 = vmatpush1.bf16.msra.mxu0 %v3895
        %3898 = vmatprep.subr.bf16.mxu0 0
        %3899 = vmatpush1.bf16.msra.mxu0 0
        %3900 = vmatprep.subr.bf16.mxu0 0
        %3901 = vmatpush1.bf16.msra.mxu0 0
        %3902 = vmatprep.subr.bf16.mxu0 0
        %3903 = vmatpush1.bf16.msra.mxu0 0
        %3904 = vmatprep.subr.bf16.mxu0 0
        %3905 = vmatpush1.bf16.msra.mxu0 0
        %3906 = vmatprep.subr.bf16.mxu0 0
        %3907 = vmatpush1.bf16.msra.mxu0 0
        %3908 = vmatprep.subr.bf16.mxu0 0
        %3909 = vmatpush1.bf16.msra.mxu0 0
        %3910 = vmatprep.subr.bf16.mxu0 0
        %3911 = vmatpush1.bf16.msra.mxu0 0
        %3912 = vmatprep.subr.bf16.mxu0 0
        %3913 = vmatpush1.bf16.msra.mxu0 0
        %3914 = vmatprep.subr.bf16.mxu0 0
        %3915 = vmatpush1.bf16.msra.mxu0 0
        %3916 = vmatprep.subr.bf16.mxu0 0
        %3917 = vmatpush1.bf16.msra.mxu0 0
        %3918 = vmatprep.subr.bf16.mxu0 0
        %3919 = vmatpush1.bf16.msra.mxu0 0
        %3920 = vmatprep.subr.bf16.mxu0 0
        %3921 = vmatpush1.bf16.msra.mxu0 0
        %3922 = vmatprep.subr.bf16.mxu0 0
        %3923 = vmatpush1.bf16.msra.mxu0 0
        %3924 = vmatprep.subr.bf16.mxu0 0
        %3925 = vmatpush1.bf16.msra.mxu0 0
        %3926 = vmatprep.subr.bf16.mxu0 0
        %3927 = vmatpush1.bf16.msra.mxu0 0
        %3928 = vmatprep.mubr.bf16.mxu0 0
        %3929 = vmatmul.mubr.bf16.gmra.mrb[0].mxu0 %v3187
        %v3930 = vpop.f32.mrb[0].mxu0
        %v3931 = vadd.f32 0.0, %v3930
        %v3932 = vpop.f32.mrb[0].mxu0
        %v3933 = vpop.f32.mrb[0].mxu0
        %v3934 = vadd.f32 0.0, %v3933
        %v3935 = vpop.f32.mrb[0].mxu0
        %3936 = vmatprep.mubr.bf16.mxu0 0
        %3937 = vmatmul.mubr.bf16.gmra.mrb[0].mxu0 %v3190
        %v3938 = vpop.f32.mrb[0].mxu0
        %v3939 = vadd.f32 0.0, %v3938
        %v3940 = vpop.f32.mrb[0].mxu0
        %v3941 = vpop.f32.mrb[0].mxu0
        %v3942 = vadd.f32 0.0, %v3941
        %v3943 = vpop.f32.mrb[0].mxu0
        %3944 = vdwg.mxu0
        %s3945 = scalar_lea.vmem [#allocation3], 48
        %v3946 = vld [vmem:[%s3945] sm:$0xff]
        %v3947 = vld [vmem:[%s3945 + $0x8] sm:$0xff]
        %v3948 = vpack.c.bf16 %v3947, %v3946
        %3949 = vmatprep.subr.bf16.mxu0 0
        %3950 = vmatpush1.bf16.msra.mxu0 %v3948
        %3951 = vmatprep.subr.bf16.mxu0 0
        %3952 = vmatpush1.bf16.msra.mxu0 0
        %3953 = vmatprep.subr.bf16.mxu0 0
        %3954 = vmatpush1.bf16.msra.mxu0 0
        %3955 = vmatprep.subr.bf16.mxu0 0
        %3956 = vmatpush1.bf16.msra.mxu0 0
        %3957 = vmatprep.subr.bf16.mxu0 0
        %3958 = vmatpush1.bf16.msra.mxu0 0
        %3959 = vmatprep.subr.bf16.mxu0 0
        %3960 = vmatpush1.bf16.msra.mxu0 0
        %3961 = vmatprep.subr.bf16.mxu0 0
        %3962 = vmatpush1.bf16.msra.mxu0 0
        %3963 = vmatprep.subr.bf16.mxu0 0
        %3964 = vmatpush1.bf16.msra.mxu0 0
        %3965 = vmatprep.subr.bf16.mxu0 0
        %3966 = vmatpush1.bf16.msra.mxu0 0
        %3967 = vmatprep.subr.bf16.mxu0 0
        %3968 = vmatpush1.bf16.msra.mxu0 0
        %3969 = vmatprep.subr.bf16.mxu0 0
        %3970 = vmatpush1.bf16.msra.mxu0 0
        %3971 = vmatprep.subr.bf16.mxu0 0
        %3972 = vmatpush1.bf16.msra.mxu0 0
        %3973 = vmatprep.subr.bf16.mxu0 0
        %3974 = vmatpush1.bf16.msra.mxu0 0
        %3975 = vmatprep.subr.bf16.mxu0 0
        %3976 = vmatpush1.bf16.msra.mxu0 0
        %3977 = vmatprep.subr.bf16.mxu0 0
        %3978 = vmatpush1.bf16.msra.mxu0 0
        %3979 = vmatprep.subr.bf16.mxu0 0
        %3980 = vmatpush1.bf16.msra.mxu0 0
        %3981 = vmatprep.mubr.bf16.mxu0 0
        %3982 = vmatmul.mubr.bf16.gmra.mrb[0].mxu0 %v3187
        %v3983 = vpop.f32.mrb[0].mxu0
        %v3984 = vadd.f32 0.0, %v3983
        %v3985 = vpop.f32.mrb[0].mxu0
        %v3986 = vpop.f32.mrb[0].mxu0
        %v3987 = vadd.f32 0.0, %v3986
        %v3988 = vpop.f32.mrb[0].mxu0
        %3989 = vmatprep.mubr.bf16.mxu0 0
        %3990 = vmatmul.mubr.bf16.gmra.mrb[0].mxu0 %v3190
        %v3991 = vpop.f32.mrb[0].mxu0
        %v3992 = vadd.f32 0.0, %v3991
        %v3993 = vpop.f32.mrb[0].mxu0
        %v3994 = vpop.f32.mrb[0].mxu0
        %v3995 = vadd.f32 0.0, %v3994
        %v3996 = vpop.f32.mrb[0].mxu0
        %3997 = vdwg.mxu0
        %v3998 = vpack.c.bf16 %v3934, %v3931
        %v3999 = vpack.c.bf16 %v3942, %v3939
        %v4001 = vsel %vm3185, %v3998, 0
        %v4004 = vsel %vm3185, %v3999, 0
        %4006 = vmatprep.subr.bf16.mxu0 0
        %4007 = vmatpush1.bf16.msra.mxu0 %v3299
        %4008 = vmatprep.subr.bf16.mxu0 0
        %4009 = vmatpush1.bf16.msra.mxu0 0
        %4010 = vmatprep.subr.bf16.mxu0 0
        %4011 = vmatpush1.bf16.msra.mxu0 0
        %4012 = vmatprep.subr.bf16.mxu0 0
        %4013 = vmatpush1.bf16.msra.mxu0 0
        %4014 = vmatprep.subr.bf16.mxu0 0
        %4015 = vmatpush1.bf16.msra.mxu0 0
        %4016 = vmatprep.subr.bf16.mxu0 0
        %4017 = vmatpush1.bf16.msra.mxu0 0
        %4018 = vmatprep.subr.bf16.mxu0 0
        %4019 = vmatpush1.bf16.msra.mxu0 0
        %4020 = vmatprep.subr.bf16.mxu0 0
        %4021 = vmatpush1.bf16.msra.mxu0 0
        %4022 = vmatprep.subr.bf16.mxu0 0
        %4023 = vmatpush1.bf16.msra.mxu0 0
        %4024 = vmatprep.subr.bf16.mxu0 0
        %4025 = vmatpush1.bf16.msra.mxu0 0
        %4026 = vmatprep.subr.bf16.mxu0 0
        %4027 = vmatpush1.bf16.msra.mxu0 0
        %4028 = vmatprep.subr.bf16.mxu0 0
        %4029 = vmatpush1.bf16.msra.mxu0 0
        %4030 = vmatprep.subr.bf16.mxu0 0
        %4031 = vmatpush1.bf16.msra.mxu0 0
        %4032 = vmatprep.subr.bf16.mxu0 0
        %4033 = vmatpush1.bf16.msra.mxu0 0
        %4034 = vmatprep.subr.bf16.mxu0 0
        %4035 = vmatpush1.bf16.msra.mxu0 0
        %4036 = vmatprep.subr.bf16.mxu0 0
        %4037 = vmatpush1.bf16.msra.mxu0 0
        %4038 = vmatprep.mubr.bf16.mxu0 0
        %4039 = vmatmul.mubr.bf16.gmra.mrb[0].mxu0 %v4001
        %v4040 = vpop.f32.mrb[0].mxu0
        %v4041 = vadd.f32 0.0, %v4040
        %v4042 = vpop.f32.mrb[0].mxu0
        %v4043 = vpop.f32.mrb[0].mxu0
        %v4044 = vadd.f32 0.0, %v4043
        %v4045 = vpop.f32.mrb[0].mxu0
        %4046 = vmatprep.mubr.bf16.mxu0 0
        %4047 = vmatmul.mubr.bf16.gmra.mrb[0].mxu0 %v4004
        %v4048 = vpop.f32.mrb[0].mxu0
        %v4049 = vadd.f32 0.0, %v4048
        %v4050 = vpop.f32.mrb[0].mxu0
        %v4051 = vpop.f32.mrb[0].mxu0
        %v4052 = vadd.f32 0.0, %v4051
        %v4053 = vpop.f32.mrb[0].mxu0
        %4054 = vdwg.mxu0
        %v4055 = vpack.c.bf16 %v3987, %v3984
        %v4056 = vpack.c.bf16 %v3995, %v3992
        %v4058 = vsel %vm3185, %v4055, 0
        %v4061 = vsel %vm3185, %v4056, 0
        %4063 = vmatprep.subr.bf16.mxu0 0
        %4064 = vmatpush1.bf16.msra.mxu0 %v3299
        %4065 = vmatprep.subr.bf16.mxu0 0
        %4066 = vmatpush1.bf16.msra.mxu0 0
        %4067 = vmatprep.subr.bf16.mxu0 0
        %4068 = vmatpush1.bf16.msra.mxu0 0
        %4069 = vmatprep.subr.bf16.mxu0 0
        %4070 = vmatpush1.bf16.msra.mxu0 0
        %4071 = vmatprep.subr.bf16.mxu0 0
        %4072 = vmatpush1.bf16.msra.mxu0 0
        %4073 = vmatprep.subr.bf16.mxu0 0
        %4074 = vmatpush1.bf16.msra.mxu0 0
        %4075 = vmatprep.subr.bf16.mxu0 0
        %4076 = vmatpush1.bf16.msra.mxu0 0
        %4077 = vmatprep.subr.bf16.mxu0 0
        %4078 = vmatpush1.bf16.msra.mxu0 0
        %4079 = vmatprep.subr.bf16.mxu0 0
        %4080 = vmatpush1.bf16.msra.mxu0 0
        %4081 = vmatprep.subr.bf16.mxu0 0
        %4082 = vmatpush1.bf16.msra.mxu0 0
        %4083 = vmatprep.subr.bf16.mxu0 0
        %4084 = vmatpush1.bf16.msra.mxu0 0
        %4085 = vmatprep.subr.bf16.mxu0 0
        %4086 = vmatpush1.bf16.msra.mxu0 0
        %4087 = vmatprep.subr.bf16.mxu0 0
        %4088 = vmatpush1.bf16.msra.mxu0 0
        %4089 = vmatprep.subr.bf16.mxu0 0
        %4090 = vmatpush1.bf16.msra.mxu0 0
        %4091 = vmatprep.subr.bf16.mxu0 0
        %4092 = vmatpush1.bf16.msra.mxu0 0
        %4093 = vmatprep.subr.bf16.mxu0 0
        %4094 = vmatpush1.bf16.msra.mxu0 0
        %4095 = vmatprep.mubr.bf16.mxu0 0
        %4096 = vmatmul.mubr.bf16.gmra.mrb[0].mxu0 %v4058
        %v4097 = vpop.f32.mrb[0].mxu0
        %v4098 = vadd.f32 0.0, %v4097
        %v4099 = vpop.f32.mrb[0].mxu0
        %v4100 = vpop.f32.mrb[0].mxu0
        %v4101 = vadd.f32 0.0, %v4100
        %v4102 = vpop.f32.mrb[0].mxu0
        %4103 = vmatprep.mubr.bf16.mxu0 0
        %4104 = vmatmul.mubr.bf16.gmra.mrb[0].mxu0 %v4061
        %v4105 = vpop.f32.mrb[0].mxu0
        %v4106 = vadd.f32 0.0, %v4105
        %v4107 = vpop.f32.mrb[0].mxu0
        %v4108 = vpop.f32.mrb[0].mxu0
        %v4109 = vadd.f32 0.0, %v4108
        %v4110 = vpop.f32.mrb[0].mxu0
        %4111 = vdwg.mxu0
        %v4112 = vmul.f32 %v4041, %v3168
        %v4113 = vmul.f32 %v4044, %v3169
        %v4114 = vmul.f32 %v4049, %v3170
        %v4115 = vmul.f32 %v4052, %v3171
        %v4116 = vadd.f32 %v4112, %v4098
        %v4117 = vadd.f32 %v4113, %v4101
        %v4118 = vadd.f32 %v4114, %v4106
        %v4119 = vadd.f32 %v4115, %v4109
        %s4120 = scalar_lea.vmem %s492, 96
        %4121 = vst.msk [vmem:[%s4120] sm:$0xff] %vm3421, %v4116
        %4122 = vst.msk [vmem:[%s4120 + $0x8] sm:$0xff] %vm3421, %v4117
        %4123 = vst.msk [vmem:[%s4120 + $0x10] sm:$0xff] %vm3421, %v4118
        %4124 = vst.msk [vmem:[%s4120 + $0x18] sm:$0xff] %vm3421, %v4119
        %s4125 = smul.u32 4, %s33
        %p4126 = scmp.lt.s32.totalorder %s32, 1
        %s4127 = scalar_select %p4126, %s32, 1
        %p4128 = scmp.lt.s32.totalorder %s4125, 3
        %s4129 = scalar_select %p4128, %s4125, 3
        %s4130 = smul.addr %s4127, 16
        %s4131 = sadd.s32 %s4129, %s4130
        %s4132 = smul.addr %s4131, 8
        %s4133 = scalar_lea.vmem %s8, %s4132
        // Predicated region
        $region77: #{fast_guided_filter_refiner.1} parent=51 // pred_check
          %p4134 = pneg %p255
        $region78: #{fast_guided_filter_refiner.1} parent=51 // pred_check_branch
          %4136 = sbr.rel (%p4134) target = $region80
        $region79: #{fast_guided_filter_refiner.1} parent=51 // pred_region
          %s4137 = smul.u32 4, %s33
        $region80: #{fast_guided_filter_refiner.1} parent=51 // pred_fallthru
          _
      $region52: #{fast_guided_filter_refiner.1} parent=5 // pred_fallthru
        _
      %p4138 = scmp.le.s32.totalorder 2, %s23
      // Predicated region
      $region81: #{fast_guided_filter_refiner.1} parent=5 // pred_check
        %p4139 = pneg %p4138
      $region82: #{fast_guided_filter_refiner.1} parent=5 // pred_check_branch
        %4141 = sbr.rel (%p4139) target = $region84
      $region83: #{fast_guided_filter_refiner.1} parent=5 // pred_region
        %s4142 = ssub.s32 %s23, 2
        // Predicated region
        $region85: #{fast_guided_filter_refiner.1} parent=83 // pred_check
          %p4143 = pneg %p261
        $region86: #{fast_guided_filter_refiner.1} parent=83 // pred_check_branch
          %4145 = sbr.rel (%p4143) target = $region88
        $region87: #{fast_guided_filter_refiner.1} parent=83 // pred_region
          %s4146 = smul.u32 4, %s35
          %p4147 = scmp.lt.s32.totalorder %s34, 1
          %s4148 = scalar_select %p4147, %s34, 1
          %p4149 = scmp.lt.s32.totalorder %s4146, 3
          %s4150 = scalar_select %p4149, %s4146, 3
          %s4151 = smul.addr %s4148, 16
          %s4152 = sadd.s32 %s4150, %s4151
          %s4153 = smul.addr %s4152, 8
          %s4154 = scalar_lea.vmem %s8, %s4153
        $region88: #{fast_guided_filter_refiner.1} parent=83 // pred_fallthru
          _
      $region84: #{fast_guided_filter_refiner.1} parent=5 // pred_fallthru
        _
    $region6: #{fast_guided_filter_refiner.1} parent=1 // loop_footer
      %s27 = sadd.s32 1, %s23
    $region7: #{fast_guided_filter_refiner.1} parent=1 // loop_footer_branch
      %22 = sbr.rel target = $region3
    $region8: #{fast_guided_filter_refiner.1} parent=1 // loop_exit
      _
    %4155 = vsyncpa [#allocation5], 1
    %s4156 = scalar_lea.sflag [#allocation5], 1
    %4157 = vsyncpa %s4156, 1
    %4158 = vsyncpa [#allocation7], 1
    %s4159 = scalar_lea.sflag [#allocation7], 1
    %4160 = vsyncpa %s4159, 1
    %4161 = vsyncpa [#allocation10], 1
    %s4162 = scalar_lea.sflag [#allocation10], 1
    %4163 = vsyncpa %s4162, 1

</llo_original>
